<compile_context>
chip_gen: v6e
topology: v6e:2x2x1
jax: 0.10.0
libtpu: 0.0.40
codegen_flags: <defaults>
</compile_context>

<pallas_src>
import functools

import jax
import jax.numpy as jnp
from jax import lax
from jax.experimental import pallas as pl
from jax.experimental.pallas import tpu as pltpu

_BN_EPS = 1e-5          # PyTorch BatchNorm2d default
_LANE = 128             # lane width: pad channel dims to this
_TM = 256               # row tile (multiple of 8)
_VMEM_LIMIT = 32 * 1024 * 1024


def _ceil_to(x, m):
    return (x + m - 1) // m * m


def _pad_to(a, shape):
    return jnp.pad(a, [(0, t - s) for s, t in zip(a.shape, shape)])


# ---------------------------------------------------------------------------
# Pass 1a: tiled 1x1-conv matmul + per-channel sum / sum-of-squares
# ---------------------------------------------------------------------------
def _mm_stats_kernel(x_ref, w_ref, y_ref, sum_ref, ssq_ref):
    i = pl.program_id(0)
    y = jnp.dot(x_ref[...].astype(jnp.bfloat16), w_ref[...],
                preferred_element_type=jnp.float32)
    y_ref[...] = y

    @pl.when(i == 0)
    def _():
        sum_ref[...] = jnp.zeros_like(sum_ref)
        ssq_ref[...] = jnp.zeros_like(ssq_ref)

    sum_ref[...] += jnp.sum(y, axis=0, keepdims=True)
    ssq_ref[...] += jnp.sum(y * y, axis=0, keepdims=True)


def _matmul_stats(x_pad, w_bf16, tm=_TM):
    mp, kp = x_pad.shape
    cp = w_bf16.shape[1]
    return pl.pallas_call(
        _mm_stats_kernel,
        out_shape=(jax.ShapeDtypeStruct((mp, cp), jnp.float32),
                   jax.ShapeDtypeStruct((1, cp), jnp.float32),
                   jax.ShapeDtypeStruct((1, cp), jnp.float32)),
        grid=(mp // tm,),
        in_specs=[pl.BlockSpec((tm, kp), lambda i: (i, 0)),
                  pl.BlockSpec((kp, cp), lambda i: (0, 0))],
        out_specs=(pl.BlockSpec((tm, cp), lambda i: (i, 0)),
                   pl.BlockSpec((1, cp), lambda i: (0, 0)),
                   pl.BlockSpec((1, cp), lambda i: (0, 0))),
        compiler_params=pltpu.CompilerParams(
            dimension_semantics=("arbitrary",),
            vmem_limit_bytes=_VMEM_LIMIT),
    )(x_pad, w_bf16)


# ---------------------------------------------------------------------------
# Pass 1b: 3x3 conv (pad=1, stride=1) streamed tap-by-tap + statistics.
# One spatially padded image per grid step; no 9x im2col slab ever hits HBM.
# ---------------------------------------------------------------------------
def _conv3x3_stats_kernel(xp_ref, w_ref, y_ref, sum_ref, ssq_ref, *, H, W):
    n = pl.program_id(0)
    cin_p = xp_ref.shape[-1]
    cout_p = w_ref.shape[-1]

    acc = jnp.zeros((H * W, cout_p), jnp.float32)
    for tap in range(9):                       # static unrolled: 9 MXU matmuls
        dh, dw = tap // 3, tap % 3
        xt = xp_ref[dh:dh + H, dw:dw + W, :].reshape(H * W, cin_p)
        acc = acc + jnp.dot(xt.astype(jnp.bfloat16), w_ref[tap],
                            preferred_element_type=jnp.float32)
    y_ref[...] = acc

    @pl.when(n == 0)
    def _():
        sum_ref[...] = jnp.zeros_like(sum_ref)
        ssq_ref[...] = jnp.zeros_like(ssq_ref)

    sum_ref[...] += jnp.sum(acc, axis=0, keepdims=True)
    ssq_ref[...] += jnp.sum(acc * acc, axis=0, keepdims=True)


def _conv3x3_stats(x_img_pad, w2_bf16):
    n, hp2, wp2, cin_p = x_img_pad.shape
    h, w = hp2 - 2, wp2 - 2
    cout_p = w2_bf16.shape[2]
    kern = functools.partial(_conv3x3_stats_kernel, H=h, W=w)
    y, s, q = pl.pallas_call(
        kern,
        out_shape=(jax.ShapeDtypeStruct((n, h * w, cout_p), jnp.float32),
                   jax.ShapeDtypeStruct((1, cout_p), jnp.float32),
                   jax.ShapeDtypeStruct((1, cout_p), jnp.float32)),
        grid=(n,),
        in_specs=[pl.BlockSpec((None, hp2, wp2, cin_p), lambda i: (i, 0, 0, 0)),
                  pl.BlockSpec((9, cin_p, cout_p), lambda i: (0, 0, 0))],
        out_specs=(pl.BlockSpec((None, h * w, cout_p), lambda i: (i, 0, 0)),
                   pl.BlockSpec((1, cout_p), lambda i: (0, 0)),
                   pl.BlockSpec((1, cout_p), lambda i: (0, 0))),
        compiler_params=pltpu.CompilerParams(
            dimension_semantics=("arbitrary",),
            vmem_limit_bytes=_VMEM_LIMIT),
    )(x_img_pad, w2_bf16)
    return y.reshape(n * h * w, cout_p), s, q


# ---------------------------------------------------------------------------
# Pass 2: tiled normalize (single FMA) [+ residual] [+ relu], row-masked
# ---------------------------------------------------------------------------
def _norm_kernel(y_ref, s_ref, t_ref, o_ref, *, relu, m_real, tm, masked):
    out = y_ref[...] * s_ref[...] + t_ref[...]
    if relu:
        out = jnp.maximum(out, 0.0)
    if masked:   # zero padded rows so downstream statistics stay exact
        rows = pl.program_id(0) * tm + lax.broadcasted_iota(jnp.int32, out.shape, 0)
        out = jnp.where(rows < m_real, out, 0.0)
    o_ref[...] = out


def _norm2_add_relu_kernel(y_ref, s_ref, t_ref, r_ref, rs_ref, rt_ref, o_ref,
                           *, m_real, tm, masked):
    out = y_ref[...] * s_ref[...] + t_ref[...]
    out = out + r_ref[...] * rs_ref[...] + rt_ref[...]
    out = jnp.maximum(out, 0.0)
    if masked:
        rows = pl.program_id(0) * tm + lax.broadcasted_iota(jnp.int32, out.shape, 0)
        out = jnp.where(rows < m_real, out, 0.0)
    o_ref[...] = out


def _normalize(y, scale, shift, *, relu, m_real, tm=_TM):
    mp, cp = y.shape
    kern = functools.partial(_norm_kernel, relu=relu, m_real=m_real, tm=tm,
                             masked=(mp != m_real))
    return pl.pallas_call(
        kern,
        out_shape=jax.ShapeDtypeStruct((mp, cp), jnp.float32),
        grid=(mp // tm,),
        in_specs=[pl.BlockSpec((tm, cp), lambda i: (i, 0)),
                  pl.BlockSpec((1, cp), lambda i: (0, 0)),
                  pl.BlockSpec((1, cp), lambda i: (0, 0))],
        out_specs=pl.BlockSpec((tm, cp), lambda i: (i, 0)),
        compiler_params=pltpu.CompilerParams(
            dimension_semantics=("parallel",),
            vmem_limit_bytes=_VMEM_LIMIT),
    )(y, scale, shift)


def _normalize2_add_relu(y, scale, shift, res, r_scale, r_shift, *, m_real, tm=_TM):
    mp, cp = y.shape
    kern = functools.partial(_norm2_add_relu_kernel, m_real=m_real, tm=tm,
                             masked=(mp != m_real))
    return pl.pallas_call(
        kern,
        out_shape=jax.ShapeDtypeStruct((mp, cp), jnp.float32),
        grid=(mp // tm,),
        in_specs=[pl.BlockSpec((tm, cp), lambda i: (i, 0)),
                  pl.BlockSpec((1, cp), lambda i: (0, 0)),
                  pl.BlockSpec((1, cp), lambda i: (0, 0)),
                  pl.BlockSpec((tm, cp), lambda i: (i, 0)),
                  pl.BlockSpec((1, cp), lambda i: (0, 0)),
                  pl.BlockSpec((1, cp), lambda i: (0, 0))],
        out_specs=pl.BlockSpec((tm, cp), lambda i: (i, 0)),
        compiler_params=pltpu.CompilerParams(
            dimension_semantics=("parallel",),
            vmem_limit_bytes=_VMEM_LIMIT),
    )(y, scale, shift, res, r_scale, r_shift)


def _bn_affine(col_sum, col_ssq, gamma_p, beta_p, m_real):
    """Per-channel affine (scale, shift) from train-mode batch statistics."""
    mean = col_sum / m_real
    var = jnp.maximum(col_ssq / m_real - mean * mean, 0.0)
    scale = gamma_p * lax.rsqrt(var + _BN_EPS)
    shift = beta_p - mean * scale
    return scale, shift


# ---------------------------------------------------------------------------
# Bottleneck forward
# ---------------------------------------------------------------------------
def bottleneck_forward(x_nchw, params, *, stride=(1, 1), down_sample=False, tm=_TM):
    x = jnp.transpose(x_nchw, (0, 2, 3, 1))            # NCHW -> NHWC
    sh, sw = stride
    xs = x[:, ::sh, ::sw, :]                            # 1x1 conv stride == subsample
    N, H1, W1, Cin = xs.shape
    M = N * H1 * W1
    C = params["w1"].shape[1]
    C4 = 4 * C

    Kp = _ceil_to(Cin, _LANE)
    Cp = _ceil_to(C, _LANE)
    C4p = _ceil_to(C4, _LANE)
    Mp = _ceil_to(M, tm)

    # lane-dense, tile-friendly padded operands (padding is zero-filled so it
    # contributes nothing to matmuls or batch statistics)
    x_flat = _pad_to(xs.reshape(M, Cin), (Mp, Kp))
    w1 = _pad_to(params["w1"], (Kp, Cp)).astype(jnp.bfloat16)
    w2 = _pad_to(params["w2"].reshape(9, C, C), (9, Cp, Cp)).astype(jnp.bfloat16)
    w3 = _pad_to(params["w3"], (Cp, C4p)).astype(jnp.bfloat16)
    g1, be1 = _pad_to(params["g1"], (1, Cp)), _pad_to(params["be1"], (1, Cp))
    g2, be2 = _pad_to(params["g2"], (1, Cp)), _pad_to(params["be2"], (1, Cp))
    g3, be3 = _pad_to(params["g3"], (1, C4p)), _pad_to(params["be3"], (1, C4p))

    # --- conv1 (1x1, stride) + bn1 + relu ----------------------------------
    y1, s1, q1 = _matmul_stats(x_flat, w1, tm)
    sc1, sh1 = _bn_affine(s1, q1, g1, be1, M)
    out1 = _normalize(y1, sc1, sh1, relu=True, m_real=M, tm=tm)

    # --- conv2 (3x3, pad=1) + bn2 + relu -----------------------------------
    out1_img = out1[:M].reshape(N, H1, W1, Cp)
    out1_sp = jnp.pad(out1_img, ((0, 0), (1, 1), (1, 1), (0, 0)))  # spatial halo
    y2, s2, q2 = _conv3x3_stats(out1_sp, w2)
    sc2, sh2 = _bn_affine(s2, q2, g2, be2, M)
    out2 = _normalize(_pad_to(y2, (Mp, Cp)), sc2, sh2, relu=True, m_real=M, tm=tm)

    # --- residual branch ----------------------------------------------------
    if down_sample:
        ws = _pad_to(params["ws"], (Kp, C4p)).astype(jnp.bfloat16)
        gs, bes = _pad_to(params["gs"], (1, C4p)), _pad_to(params["bes"], (1, C4p))
        res, sr, qr = _matmul_stats(x_flat, ws, tm)          # pre-BN conv output
        r_scale, r_shift = _bn_affine(sr, qr, gs, bes, M)    # fused in final pass
    else:
        assert Cin == C4 and (sh, sw) == (1, 1), (
            "identity residual needs in_channel == 4*out_channel and stride (1,1)")
        res = x_flat                                         # Kp == C4p here
        r_scale = jnp.ones((1, C4p), jnp.float32)
        r_shift = jnp.zeros((1, C4p), jnp.float32)

    # --- conv3 (1x1) + bn3 + residual add + relu ---------------------------
    y3, s3, q3 = _matmul_stats(out2, w3, tm)
    sc3, sh3 = _bn_affine(s3, q3, g3, be3, M)
    out3 = _normalize2_add_relu(y3, sc3, sh3, res, r_scale, r_shift,
                                m_real=M, tm=tm)

    out3 = out3[:M, :C4].reshape(N, H1, W1, C4)
    return jnp.transpose(out3, (0, 3, 1, 2))                 # NHWC -> NCHW


# ---------------------------------------------------------------------------
# Deterministic synthetic parameters (shapes per Bottleneck.__init__).
# Conv biases are omitted: train-mode BN cancels per-channel biases exactly.
# ---------------------------------------------------------------------------
def init_params(key, in_channel, out_channel):
    C, C4 = out_channel, 4 * out_channel
    ks = jax.random.split(key, 4)
    return {
        "w1": jax.random.normal(ks[0], (in_channel, C), jnp.float32) * 0.1,
        "g1": jnp.ones((1, C), jnp.float32), "be1": jnp.zeros((1, C), jnp.float32),
        "w2": jax.random.normal(ks[1], (3, 3, C, C), jnp.float32) * 0.1,
        "g2": jnp.ones((1, C), jnp.float32), "be2": jnp.zeros((1, C), jnp.float32),
        "w3": jax.random.normal(ks[2], (C, C4), jnp.float32) * 0.1,
        "g3": jnp.ones((1, C4), jnp.float32), "be3": jnp.zeros((1, C4), jnp.float32),
        "ws": jax.random.normal(ks[3], (in_channel, C4), jnp.float32) * 0.1,
        "gs": jnp.ones((1, C4), jnp.float32), "bes": jnp.zeros((1, C4), jnp.float32),
    }


# ---------------------------------------------------------------------------
# Pure-JAX reference (same semantics, same bf16 MXU operands) for sanity check
# ---------------------------------------------------------------------------
def _ref_mm_bn(x2d, w, g, be, relu):
    y = jnp.dot(x2d.astype(jnp.bfloat16), w.astype(jnp.bfloat16),
                preferred_element_type=jnp.float32)
    mean = jnp.mean(y, axis=0, keepdims=True)
    var = jnp.mean((y - mean) ** 2, axis=0, keepdims=True)
    out = (y - mean) * lax.rsqrt(var + _BN_EPS) * g + be
    return jnp.maximum(out, 0.0) if relu else out


def _im2col_3x3(x_nhwc):
    N, H, W, C = x_nhwc.shape
    xp = jnp.pad(x_nhwc, ((0, 0), (1, 1), (1, 1), (0, 0)))
    taps = [xp[:, dh:dh + H, dw:dw + W, :] for dh in range(3) for dw in range(3)]
    return jnp.stack(taps, axis=3).reshape(N * H * W, 9 * C)


def bottleneck_reference(x_nchw, params, *, stride=(1, 1), down_sample=False):
    x = jnp.transpose(x_nchw, (0, 2, 3, 1))
    sh, sw = stride
    xs = x[:, ::sh, ::sw, :]
    N, H1, W1, Cin = xs.shape
    x_flat = xs.reshape(N * H1 * W1, Cin)
    C = params["w1"].shape[1]
    out1 = _ref_mm_bn(x_flat, params["w1"], params["g1"], params["be1"], True)
    patches = _im2col_3x3(out1.reshape(N, H1, W1, C))
    out2 = _ref_mm_bn(patches, params["w2"].reshape(9 * C, C),
                      params["g2"], params["be2"], True)
    res = (_ref_mm_bn(x_flat, params["ws"], params["gs"], params["bes"], False)
           if down_sample else x_flat)
    out3 = _ref_mm_bn(out2, params["w3"], params["g3"], params["be3"], False)
    out3 = jnp.maximum(out3 + res, 0.0)
    return jnp.transpose(out3.reshape(N, H1, W1, 4 * C), (0, 3, 1, 2))


if __name__ == "__main__":
    key = jax.random.PRNGKey(0)
    k1, k2, k3, k4 = jax.random.split(key, 4)

    fwd = jax.jit(bottleneck_forward, static_argnames=("stride", "down_sample", "tm"))

    # case 1: down-sample branch (in_channel != 4*out_channel)
    N, Cin, H, W, C = 2, 8, 16, 16, 4
    x = jax.random.normal(k1, (N, Cin, H, W), jnp.float32)
    p = init_params(k2, Cin, C)
    y = jax.block_until_ready(fwd(x, p, down_sample=True))
    assert y.shape == (N, 4 * C, H, W), y.shape
    err = float(jnp.max(jnp.abs(y - bottleneck_reference(x, p, down_sample=True))))
    assert err < 2e-2, err          # bf16 MXU operands -> ~1e-3 level differences

    # case 2: identity residual (in_channel == 4*out_channel, stride 1)
    Cin2 = 4 * C
    x2 = jax.random.normal(k3, (N, Cin2, H, W), jnp.float32)
    p2 = init_params(k4, Cin2, C)
    y2 = jax.block_until_ready(fwd(x2, p2, down_sample=False))
    assert y2.shape == (N, 4 * C, H, W), y2.shape
    err2 = float(jnp.max(jnp.abs(y2 - bottleneck_reference(x2, p2, down_sample=False))))
    assert err2 < 2e-2, err2

    print("KERNEL_OK")
</pallas_src>

<mosaic_0001>
module attributes {stable_mosaic.version = 11 : i64} {
  func.func @_mm_stats_kernel(%arg0: i32, %arg1: memref<256x128xf32, #tpu.memory_space<vmem>>, %arg2: memref<128x128xbf16, #tpu.memory_space<vmem>>, %arg3: memref<256x128xf32, #tpu.memory_space<vmem>>, %arg4: memref<1x128xf32, #tpu.memory_space<vmem>>, %arg5: memref<1x128xf32, #tpu.memory_space<vmem>>) attributes {dimension_semantics = [#tpu.dimension_semantics<arbitrary>], iteration_bounds = array<i64: 2>, scalar_prefetch = 0 : i64, scratch_operands = 0 : i64, tpu.core_type = #tpu.core_type<tc>, window_params = [{transform_indices = @transform_0, window_bounds = array<i64: 256, 128>}, {pipeline_mode = #tpu.pipeline_mode<synchronous>, transform_indices = @transform_1, window_bounds = array<i64: 128, 128>}, {transform_indices = @transform_2, window_bounds = array<i64: 256, 128>}, {pipeline_mode = #tpu.pipeline_mode<synchronous>, transform_indices = @transform_3, window_bounds = array<i64: 1, 128>}, {pipeline_mode = #tpu.pipeline_mode<synchronous>, transform_indices = @transform_4, window_bounds = array<i64: 1, 128>}]} {
    %c0 = arith.constant 0 : index
    %c0_0 = arith.constant 0 : index
    %0 = vector.load %arg1[%c0, %c0_0] : memref<256x128xf32, #tpu.memory_space<vmem>>, vector<256x128xf32>
    %1 = arith.truncf %0 : vector<256x128xf32> to vector<256x128xbf16>
    %c0_1 = arith.constant 0 : index
    %c0_2 = arith.constant 0 : index
    %2 = vector.load %arg2[%c0_1, %c0_2] : memref<128x128xbf16, #tpu.memory_space<vmem>>, vector<128x128xbf16>
    %cst = arith.constant dense<0.000000e+00> : vector<256x128xf32>
    %3 = tpu.matmul %1, %2, %cst {dimension_numbers = #tpu.dot_dimension_numbers<[1], [0], [0], [1], [0, 0, 1, 1], [], []>} : vector<256x128xbf16>, vector<128x128xbf16>, vector<256x128xf32> -> vector<256x128xf32>
    %c0_3 = arith.constant 0 : index
    %c0_4 = arith.constant 0 : index
    %4 = vector.load %arg3[%c0_3, %c0_4] : memref<256x128xf32, #tpu.memory_space<vmem>>, vector<256x128xf32>
    tpu.vector_store %arg3[%c0_3, %c0_4], %3 {strides = array<i32>} : memref<256x128xf32, #tpu.memory_space<vmem>>, vector<256x128xf32>,
    %c0_i32 = arith.constant 0 : i32
    %5 = arith.cmpi eq, %arg0, %c0_i32 : i32
    %6 = arith.extui %5 : i1 to i32
    %c0_i32_5 = arith.constant 0 : i32
    %7 = arith.cmpi ne, %6, %c0_i32_5 : i32
    scf.if %7 {
      %cst_16 = arith.constant 0.000000e+00 : f32
      %19 = vector.broadcast %cst_16 : f32 to vector<1x128xf32>
      %c0_17 = arith.constant 0 : index
      %c0_18 = arith.constant 0 : index
      %20 = vector.load %arg4[%c0_17, %c0_18] : memref<1x128xf32, #tpu.memory_space<vmem>>, vector<1x128xf32>
      tpu.vector_store %arg4[%c0_17, %c0_18], %19 {strides = array<i32>} : memref<1x128xf32, #tpu.memory_space<vmem>>, vector<1x128xf32>,
      %cst_19 = arith.constant 0.000000e+00 : f32
      %21 = vector.broadcast %cst_19 : f32 to vector<1x128xf32>
      %c0_20 = arith.constant 0 : index
      %c0_21 = arith.constant 0 : index
      %22 = vector.load %arg5[%c0_20, %c0_21] : memref<1x128xf32, #tpu.memory_space<vmem>>, vector<1x128xf32>
      tpu.vector_store %arg5[%c0_20, %c0_21], %21 {strides = array<i32>} : memref<1x128xf32, #tpu.memory_space<vmem>>, vector<1x128xf32>,
    } else {
    }
    %c0_6 = arith.constant 0 : index
    %c0_7 = arith.constant 0 : index
    %8 = vector.load %arg4[%c0_6, %c0_7] : memref<1x128xf32, #tpu.memory_space<vmem>>, vector<1x128xf32>
    %cst_8 = arith.constant dense<0.000000e+00> : vector<128xf32>
    %9 = vector.multi_reduction <add>, %3, %cst_8 [0] : vector<256x128xf32> to vector<128xf32>
    %10 = vector.shape_cast %9 : vector<128xf32> to vector<1x128xf32>
    %11 = arith.addf %8, %10 : vector<1x128xf32>
    %c0_9 = arith.constant 0 : index
    %c0_10 = arith.constant 0 : index
    %12 = vector.load %arg4[%c0_9, %c0_10] : memref<1x128xf32, #tpu.memory_space<vmem>>, vector<1x128xf32>
    tpu.vector_store %arg4[%c0_9, %c0_10], %11 {strides = array<i32>} : memref<1x128xf32, #tpu.memory_space<vmem>>, vector<1x128xf32>,
    %c0_11 = arith.constant 0 : index
    %c0_12 = arith.constant 0 : index
    %13 = vector.load %arg5[%c0_11, %c0_12] : memref<1x128xf32, #tpu.memory_space<vmem>>, vector<1x128xf32>
    %14 = arith.mulf %3, %3 : vector<256x128xf32>
    %cst_13 = arith.constant dense<0.000000e+00> : vector<128xf32>
    %15 = vector.multi_reduction <add>, %14, %cst_13 [0] : vector<256x128xf32> to vector<128xf32>
    %16 = vector.shape_cast %15 : vector<128xf32> to vector<1x128xf32>
    %17 = arith.addf %13, %16 : vector<1x128xf32>
    %c0_14 = arith.constant 0 : index
    %c0_15 = arith.constant 0 : index
    %18 = vector.load %arg5[%c0_14, %c0_15] : memref<1x128xf32, #tpu.memory_space<vmem>>, vector<1x128xf32>
    tpu.vector_store %arg5[%c0_14, %c0_15], %17 {strides = array<i32>} : memref<1x128xf32, #tpu.memory_space<vmem>>, vector<1x128xf32>,
    return
  }
  func.func @transform_0(%arg0: i32) -> (i32, i32) {
    %c0_i32 = arith.constant 0 : i32
    %c0_i32_0 = arith.constant 0 : i32
    return %arg0, %c0_i32 : i32, i32
  }
  func.func @transform_1(%arg0: i32) -> (i32, i32) {
    %c0_i32 = arith.constant 0 : i32
    %c0_i32_0 = arith.constant 0 : i32
    %c0_i32_1 = arith.constant 0 : i32
    return %c0_i32, %c0_i32_0 : i32, i32
  }
  func.func @transform_2(%arg0: i32) -> (i32, i32) {
    %c0_i32 = arith.constant 0 : i32
    %c0_i32_0 = arith.constant 0 : i32
    return %arg0, %c0_i32 : i32, i32
  }
  func.func @transform_3(%arg0: i32) -> (i32, i32) {
    %c0_i32 = arith.constant 0 : i32
    %c0_i32_0 = arith.constant 0 : i32
    %c0_i32_1 = arith.constant 0 : i32
    return %c0_i32, %c0_i32_0 : i32, i32
  }
  func.func @transform_4(%arg0: i32) -> (i32, i32) {
    %c0_i32 = arith.constant 0 : i32
    %c0_i32_0 = arith.constant 0 : i32
    %c0_i32_1 = arith.constant 0 : i32
    return %c0_i32, %c0_i32_0 : i32, i32
  }
}

module attributes {stable_mosaic.version = 11 : i64} {
  func.func @_norm_kernel(%arg0: i32, %arg1: memref<256x128xf32, #tpu.memory_space<vmem>>, %arg2: memref<1x128xf32, #tpu.memory_space<vmem>>, %arg3: memref<1x128xf32, #tpu.memory_space<vmem>>, %arg4: memref<256x128xf32, #tpu.memory_space<vmem>>) attributes {dimension_semantics = [#tpu.dimension_semantics<parallel>], iteration_bounds = array<i64: 2>, scalar_prefetch = 0 : i64, scratch_operands = 0 : i64, tpu.core_type = #tpu.core_type<tc>, window_params = [{transform_indices = @transform_0, window_bounds = array<i64: 256, 128>}, {pipeline_mode = #tpu.pipeline_mode<synchronous>, transform_indices = @transform_1, window_bounds = array<i64: 1, 128>}, {pipeline_mode = #tpu.pipeline_mode<synchronous>, transform_indices = @transform_2, window_bounds = array<i64: 1, 128>}, {transform_indices = @transform_3, window_bounds = array<i64: 256, 128>}]} {
    %c0 = arith.constant 0 : index
    %c0_0 = arith.constant 0 : index
    %0 = vector.load %arg1[%c0, %c0_0] : memref<256x128xf32, #tpu.memory_space<vmem>>, vector<256x128xf32>
    %c0_1 = arith.constant 0 : index
    %c0_2 = arith.constant 0 : index
    %1 = vector.load %arg2[%c0_1, %c0_2] : memref<1x128xf32, #tpu.memory_space<vmem>>, vector<1x128xf32>
    %2 = vector.broadcast %1 : vector<1x128xf32> to vector<256x128xf32>
    %3 = arith.mulf %0, %2 : vector<256x128xf32>
    %c0_3 = arith.constant 0 : index
    %c0_4 = arith.constant 0 : index
    %4 = vector.load %arg3[%c0_3, %c0_4] : memref<1x128xf32, #tpu.memory_space<vmem>>, vector<1x128xf32>
    %5 = vector.broadcast %4 : vector<1x128xf32> to vector<256x128xf32>
    %6 = arith.addf %3, %5 : vector<256x128xf32>
    %cst = arith.constant 0.000000e+00 : f32
    %7 = vector.broadcast %cst : f32 to vector<256x128xf32>
    %8 = arith.maximumf %6, %7 : vector<256x128xf32>
    %c0_5 = arith.constant 0 : index
    %c0_6 = arith.constant 0 : index
    %9 = vector.load %arg4[%c0_5, %c0_6] : memref<256x128xf32, #tpu.memory_space<vmem>>, vector<256x128xf32>
    tpu.vector_store %arg4[%c0_5, %c0_6], %8 {strides = array<i32>} : memref<256x128xf32, #tpu.memory_space<vmem>>, vector<256x128xf32>,
    return
  }
  func.func @transform_0(%arg0: i32) -> (i32, i32) {
    %c0_i32 = arith.constant 0 : i32
    %c0_i32_0 = arith.constant 0 : i32
    return %arg0, %c0_i32 : i32, i32
  }
  func.func @transform_1(%arg0: i32) -> (i32, i32) {
    %c0_i32 = arith.constant 0 : i32
    %c0_i32_0 = arith.constant 0 : i32
    %c0_i32_1 = arith.constant 0 : i32
    return %c0_i32, %c0_i32_0 : i32, i32
  }
  func.func @transform_2(%arg0: i32) -> (i32, i32) {
    %c0_i32 = arith.constant 0 : i32
    %c0_i32_0 = arith.constant 0 : i32
    %c0_i32_1 = arith.constant 0 : i32
    return %c0_i32, %c0_i32_0 : i32, i32
  }
  func.func @transform_3(%arg0: i32) -> (i32, i32) {
    %c0_i32 = arith.constant 0 : i32
    %c0_i32_0 = arith.constant 0 : i32
    return %arg0, %c0_i32 : i32, i32
  }
}

module attributes {stable_mosaic.version = 11 : i64} {
  func.func @_conv3x3_stats_kernel(%arg0: i32, %arg1: memref<1x18x18x128xf32, #tpu.memory_space<vmem>>, %arg2: memref<9x128x128xbf16, #tpu.memory_space<vmem>>, %arg3: memref<1x256x128xf32, #tpu.memory_space<vmem>>, %arg4: memref<1x128xf32, #tpu.memory_space<vmem>>, %arg5: memref<1x128xf32, #tpu.memory_space<vmem>>) attributes {dimension_semantics = [#tpu.dimension_semantics<arbitrary>], iteration_bounds = array<i64: 2>, scalar_prefetch = 0 : i64, scratch_operands = 0 : i64, tpu.core_type = #tpu.core_type<tc>, window_params = [{transform_indices = @transform_0, window_bounds = array<i64: 1, 18, 18, 128>}, {pipeline_mode = #tpu.pipeline_mode<synchronous>, transform_indices = @transform_1, window_bounds = array<i64: 9, 128, 128>}, {transform_indices = @transform_2, window_bounds = array<i64: 1, 256, 128>}, {pipeline_mode = #tpu.pipeline_mode<synchronous>, transform_indices = @transform_3, window_bounds = array<i64: 1, 128>}, {pipeline_mode = #tpu.pipeline_mode<synchronous>, transform_indices = @transform_4, window_bounds = array<i64: 1, 128>}]} {
    %cst = arith.constant 0.000000e+00 : f32
    %0 = vector.broadcast %cst : f32 to vector<256x128xf32>
    %c0 = arith.constant 0 : index
    %c0_0 = arith.constant 0 : index
    %c0_1 = arith.constant 0 : index
    %c0_2 = arith.constant 0 : index
    %1 = vector.load %arg1[%c0, %c0_0, %c0_1, %c0_2] : memref<1x18x18x128xf32, #tpu.memory_space<vmem>>, vector<1x16x16x128xf32>
    %2 = vector.shape_cast %1 : vector<1x16x16x128xf32> to vector<16x16x128xf32>
    %3 = vector.shape_cast %2 : vector<16x16x128xf32> to vector<256x128xf32>
    %4 = arith.truncf %3 : vector<256x128xf32> to vector<256x128xbf16>
    %c0_3 = arith.constant 0 : index
    %c0_4 = arith.constant 0 : index
    %c0_5 = arith.constant 0 : index
    %5 = vector.load %arg2[%c0_3, %c0_4, %c0_5] : memref<9x128x128xbf16, #tpu.memory_space<vmem>>, vector<1x128x128xbf16>
    %6 = vector.shape_cast %5 : vector<1x128x128xbf16> to vector<128x128xbf16>
    %cst_6 = arith.constant dense<0.000000e+00> : vector<256x128xf32>
    %7 = tpu.matmul %4, %6, %cst_6 {dimension_numbers = #tpu.dot_dimension_numbers<[1], [0], [0], [1], [0, 0, 1, 1], [], []>} : vector<256x128xbf16>, vector<128x128xbf16>, vector<256x128xf32> -> vector<256x128xf32>
    %8 = arith.addf %0, %7 : vector<256x128xf32>
    %c0_7 = arith.constant 0 : index
    %c0_8 = arith.constant 0 : index
    %c1 = arith.constant 1 : index
    %c0_9 = arith.constant 0 : index
    %9 = vector.load %arg1[%c0_7, %c0_8, %c1, %c0_9] : memref<1x18x18x128xf32, #tpu.memory_space<vmem>>, vector<1x16x16x128xf32>
    %10 = vector.shape_cast %9 : vector<1x16x16x128xf32> to vector<16x16x128xf32>
    %11 = vector.shape_cast %10 : vector<16x16x128xf32> to vector<256x128xf32>
    %12 = arith.truncf %11 : vector<256x128xf32> to vector<256x128xbf16>
    %c1_10 = arith.constant 1 : index
    %c0_11 = arith.constant 0 : index
    %c0_12 = arith.constant 0 : index
    %13 = vector.load %arg2[%c1_10, %c0_11, %c0_12] : memref<9x128x128xbf16, #tpu.memory_space<vmem>>, vector<1x128x128xbf16>
    %14 = vector.shape_cast %13 : vector<1x128x128xbf16> to vector<128x128xbf16>
    %cst_13 = arith.constant dense<0.000000e+00> : vector<256x128xf32>
    %15 = tpu.matmul %12, %14, %cst_13 {dimension_numbers = #tpu.dot_dimension_numbers<[1], [0], [0], [1], [0, 0, 1, 1], [], []>} : vector<256x128xbf16>, vector<128x128xbf16>, vector<256x128xf32> -> vector<256x128xf32>
    %16 = arith.addf %8, %15 : vector<256x128xf32>
    %c0_14 = arith.constant 0 : index
    %c0_15 = arith.constant 0 : index
    %c2 = arith.constant 2 : index
    %c0_16 = arith.constant 0 : index
    %17 = vector.load %arg1[%c0_14, %c0_15, %c2, %c0_16] : memref<1x18x18x128xf32, #tpu.memory_space<vmem>>, vector<1x16x16x128xf32>
    %18 = vector.shape_cast %17 : vector<1x16x16x128xf32> to vector<16x16x128xf32>
    %19 = vector.shape_cast %18 : vector<16x16x128xf32> to vector<256x128xf32>
    %20 = arith.truncf %19 : vector<256x128xf32> to vector<256x128xbf16>
    %c2_17 = arith.constant 2 : index
    %c0_18 = arith.constant 0 : index
    %c0_19 = arith.constant 0 : index
    %21 = vector.load %arg2[%c2_17, %c0_18, %c0_19] : memref<9x128x128xbf16, #tpu.memory_space<vmem>>, vector<1x128x128xbf16>
    %22 = vector.shape_cast %21 : vector<1x128x128xbf16> to vector<128x128xbf16>
    %cst_20 = arith.constant dense<0.000000e+00> : vector<256x128xf32>
    %23 = tpu.matmul %20, %22, %cst_20 {dimension_numbers = #tpu.dot_dimension_numbers<[1], [0], [0], [1], [0, 0, 1, 1], [], []>} : vector<256x128xbf16>, vector<128x128xbf16>, vector<256x128xf32> -> vector<256x128xf32>
    %24 = arith.addf %16, %23 : vector<256x128xf32>
    %c0_21 = arith.constant 0 : index
    %c1_22 = arith.constant 1 : index
    %c0_23 = arith.constant 0 : index
    %c0_24 = arith.constant 0 : index
    %25 = vector.load %arg1[%c0_21, %c1_22, %c0_23, %c0_24] : memref<1x18x18x128xf32, #tpu.memory_space<vmem>>, vector<1x16x16x128xf32>
    %26 = vector.shape_cast %25 : vector<1x16x16x128xf32> to vector<16x16x128xf32>
    %27 = vector.shape_cast %26 : vector<16x16x128xf32> to vector<256x128xf32>
    %28 = arith.truncf %27 : vector<256x128xf32> to vector<256x128xbf16>
    %c3 = arith.constant 3 : index
    %c0_25 = arith.constant 0 : index
    %c0_26 = arith.constant 0 : index
    %29 = vector.load %arg2[%c3, %c0_25, %c0_26] : memref<9x128x128xbf16, #tpu.memory_space<vmem>>, vector<1x128x128xbf16>
    %30 = vector.shape_cast %29 : vector<1x128x128xbf16> to vector<128x128xbf16>
    %cst_27 = arith.constant dense<0.000000e+00> : vector<256x128xf32>
    %31 = tpu.matmul %28, %30, %cst_27 {dimension_numbers = #tpu.dot_dimension_numbers<[1], [0], [0], [1], [0, 0, 1, 1], [], []>} : vector<256x128xbf16>, vector<128x128xbf16>, vector<256x128xf32> -> vector<256x128xf32>
    %32 = arith.addf %24, %31 : vector<256x128xf32>
    %c0_28 = arith.constant 0 : index
    %c1_29 = arith.constant 1 : index
    %c1_30 = arith.constant 1 : index
    %c0_31 = arith.constant 0 : index
    %33 = vector.load %arg1[%c0_28, %c1_29, %c1_30, %c0_31] : memref<1x18x18x128xf32, #tpu.memory_space<vmem>>, vector<1x16x16x128xf32>
    %34 = vector.shape_cast %33 : vector<1x16x16x128xf32> to vector<16x16x128xf32>
    %35 = vector.shape_cast %34 : vector<16x16x128xf32> to vector<256x128xf32>
    %36 = arith.truncf %35 : vector<256x128xf32> to vector<256x128xbf16>
    %c4 = arith.constant 4 : index
    %c0_32 = arith.constant 0 : index
    %c0_33 = arith.constant 0 : index
    %37 = vector.load %arg2[%c4, %c0_32, %c0_33] : memref<9x128x128xbf16, #tpu.memory_space<vmem>>, vector<1x128x128xbf16>
    %38 = vector.shape_cast %37 : vector<1x128x128xbf16> to vector<128x128xbf16>
    %cst_34 = arith.constant dense<0.000000e+00> : vector<256x128xf32>
    %39 = tpu.matmul %36, %38, %cst_34 {dimension_numbers = #tpu.dot_dimension_numbers<[1], [0], [0], [1], [0, 0, 1, 1], [], []>} : vector<256x128xbf16>, vector<128x128xbf16>, vector<256x128xf32> -> vector<256x128xf32>
    %40 = arith.addf %32, %39 : vector<256x128xf32>
    %c0_35 = arith.constant 0 : index
    %c1_36 = arith.constant 1 : index
    %c2_37 = arith.constant 2 : index
    %c0_38 = arith.constant 0 : index
    %41 = vector.load %arg1[%c0_35, %c1_36, %c2_37, %c0_38] : memref<1x18x18x128xf32, #tpu.memory_space<vmem>>, vector<1x16x16x128xf32>
    %42 = vector.shape_cast %41 : vector<1x16x16x128xf32> to vector<16x16x128xf32>
    %43 = vector.shape_cast %42 : vector<16x16x128xf32> to vector<256x128xf32>
    %44 = arith.truncf %43 : vector<256x128xf32> to vector<256x128xbf16>
    %c5 = arith.constant 5 : index
    %c0_39 = arith.constant 0 : index
    %c0_40 = arith.constant 0 : index
    %45 = vector.load %arg2[%c5, %c0_39, %c0_40] : memref<9x128x128xbf16, #tpu.memory_space<vmem>>, vector<1x128x128xbf16>
    %46 = vector.shape_cast %45 : vector<1x128x128xbf16> to vector<128x128xbf16>
    %cst_41 = arith.constant dense<0.000000e+00> : vector<256x128xf32>
    %47 = tpu.matmul %44, %46, %cst_41 {dimension_numbers = #tpu.dot_dimension_numbers<[1], [0], [0], [1], [0, 0, 1, 1], [], []>} : vector<256x128xbf16>, vector<128x128xbf16>, vector<256x128xf32> -> vector<256x128xf32>
    %48 = arith.addf %40, %47 : vector<256x128xf32>
    %c0_42 = arith.constant 0 : index
    %c2_43 = arith.constant 2 : index
    %c0_44 = arith.constant 0 : index
    %c0_45 = arith.constant 0 : index
    %49 = vector.load %arg1[%c0_42, %c2_43, %c0_44, %c0_45] : memref<1x18x18x128xf32, #tpu.memory_space<vmem>>, vector<1x16x16x128xf32>
    %50 = vector.shape_cast %49 : vector<1x16x16x128xf32> to vector<16x16x128xf32>
    %51 = vector.shape_cast %50 : vector<16x16x128xf32> to vector<256x128xf32>
    %52 = arith.truncf %51 : vector<256x128xf32> to vector<256x128xbf16>
    %c6 = arith.constant 6 : index
    %c0_46 = arith.constant 0 : index
    %c0_47 = arith.constant 0 : index
    %53 = vector.load %arg2[%c6, %c0_46, %c0_47] : memref<9x128x128xbf16, #tpu.memory_space<vmem>>, vector<1x128x128xbf16>
    %54 = vector.shape_cast %53 : vector<1x128x128xbf16> to vector<128x128xbf16>
    %cst_48 = arith.constant dense<0.000000e+00> : vector<256x128xf32>
    %55 = tpu.matmul %52, %54, %cst_48 {dimension_numbers = #tpu.dot_dimension_numbers<[1], [0], [0], [1], [0, 0, 1, 1], [], []>} : vector<256x128xbf16>, vector<128x128xbf16>, vector<256x128xf32> -> vector<256x128xf32>
    %56 = arith.addf %48, %55 : vector<256x128xf32>
    %c0_49 = arith.constant 0 : index
    %c2_50 = arith.constant 2 : index
    %c1_51 = arith.constant 1 : index
    %c0_52 = arith.constant 0 : index
    %57 = vector.load %arg1[%c0_49, %c2_50, %c1_51, %c0_52] : memref<1x18x18x128xf32, #tpu.memory_space<vmem>>, vector<1x16x16x128xf32>
    %58 = vector.shape_cast %57 : vector<1x16x16x128xf32> to vector<16x16x128xf32>
    %59 = vector.shape_cast %58 : vector<16x16x128xf32> to vector<256x128xf32>
    %60 = arith.truncf %59 : vector<256x128xf32> to vector<256x128xbf16>
    %c7 = arith.constant 7 : index
    %c0_53 = arith.constant 0 : index
    %c0_54 = arith.constant 0 : index
    %61 = vector.load %arg2[%c7, %c0_53, %c0_54] : memref<9x128x128xbf16, #tpu.memory_space<vmem>>, vector<1x128x128xbf16>
    %62 = vector.shape_cast %61 : vector<1x128x128xbf16> to vector<128x128xbf16>
    %cst_55 = arith.constant dense<0.000000e+00> : vector<256x128xf32>
    %63 = tpu.matmul %60, %62, %cst_55 {dimension_numbers = #tpu.dot_dimension_numbers<[1], [0], [0], [1], [0, 0, 1, 1], [], []>} : vector<256x128xbf16>, vector<128x128xbf16>, vector<256x128xf32> -> vector<256x128xf32>
    %64 = arith.addf %56, %63 : vector<256x128xf32>
    %c0_56 = arith.constant 0 : index
    %c2_57 = arith.constant 2 : index
    %c2_58 = arith.constant 2 : index
    %c0_59 = arith.constant 0 : index
    %65 = vector.load %arg1[%c0_56, %c2_57, %c2_58, %c0_59] : memref<1x18x18x128xf32, #tpu.memory_space<vmem>>, vector<1x16x16x128xf32>
    %66 = vector.shape_cast %65 : vector<1x16x16x128xf32> to vector<16x16x128xf32>
    %67 = vector.shape_cast %66 : vector<16x16x128xf32> to vector<256x128xf32>
    %68 = arith.truncf %67 : vector<256x128xf32> to vector<256x128xbf16>
    %c8 = arith.constant 8 : index
    %c0_60 = arith.constant 0 : index
    %c0_61 = arith.constant 0 : index
    %69 = vector.load %arg2[%c8, %c0_60, %c0_61] : memref<9x128x128xbf16, #tpu.memory_space<vmem>>, vector<1x128x128xbf16>
    %70 = vector.shape_cast %69 : vector<1x128x128xbf16> to vector<128x128xbf16>
    %cst_62 = arith.constant dense<0.000000e+00> : vector<256x128xf32>
    %71 = tpu.matmul %68, %70, %cst_62 {dimension_numbers = #tpu.dot_dimension_numbers<[1], [0], [0], [1], [0, 0, 1, 1], [], []>} : vector<256x128xbf16>, vector<128x128xbf16>, vector<256x128xf32> -> vector<256x128xf32>
    %72 = arith.addf %64, %71 : vector<256x128xf32>
    %c0_63 = arith.constant 0 : index
    %c0_64 = arith.constant 0 : index
    %c0_65 = arith.constant 0 : index
    %73 = vector.load %arg3[%c0_63, %c0_64, %c0_65] : memref<1x256x128xf32, #tpu.memory_space<vmem>>, vector<1x256x128xf32>
    %74 = vector.shape_cast %73 : vector<1x256x128xf32> to vector<256x128xf32>
    %75 = vector.shape_cast %72 : vector<256x128xf32> to vector<1x256x128xf32>
    tpu.vector_store %arg3[%c0_63, %c0_64, %c0_65], %75 {strides = array<i32>} : memref<1x256x128xf32, #tpu.memory_space<vmem>>, vector<1x256x128xf32>,
    %c0_i32 = arith.constant 0 : i32
    %76 = arith.cmpi eq, %arg0, %c0_i32 : i32
    %77 = arith.extui %76 : i1 to i32
    %c0_i32_66 = arith.constant 0 : i32
    %78 = arith.cmpi ne, %77, %c0_i32_66 : i32
    scf.if %78 {
      %cst_77 = arith.constant 0.000000e+00 : f32
      %90 = vector.broadcast %cst_77 : f32 to vector<1x128xf32>
      %c0_78 = arith.constant 0 : index
      %c0_79 = arith.constant 0 : index
      %91 = vector.load %arg4[%c0_78, %c0_79] : memref<1x128xf32, #tpu.memory_space<vmem>>, vector<1x128xf32>
      tpu.vector_store %arg4[%c0_78, %c0_79], %90 {strides = array<i32>} : memref<1x128xf32, #tpu.memory_space<vmem>>, vector<1x128xf32>,
      %cst_80 = arith.constant 0.000000e+00 : f32
      %92 = vector.broadcast %cst_80 : f32 to vector<1x128xf32>
      %c0_81 = arith.constant 0 : index
      %c0_82 = arith.constant 0 : index
      %93 = vector.load %arg5[%c0_81, %c0_82] : memref<1x128xf32, #tpu.memory_space<vmem>>, vector<1x128xf32>
      tpu.vector_store %arg5[%c0_81, %c0_82], %92 {strides = array<i32>} : memref<1x128xf32, #tpu.memory_space<vmem>>, vector<1x128xf32>,
    } else {
    }
    %c0_67 = arith.constant 0 : index
    %c0_68 = arith.constant 0 : index
    %79 = vector.load %arg4[%c0_67, %c0_68] : memref<1x128xf32, #tpu.memory_space<vmem>>, vector<1x128xf32>
    %cst_69 = arith.constant dense<0.000000e+00> : vector<128xf32>
    %80 = vector.multi_reduction <add>, %72, %cst_69 [0] : vector<256x128xf32> to vector<128xf32>
    %81 = vector.shape_cast %80 : vector<128xf32> to vector<1x128xf32>
    %82 = arith.addf %79, %81 : vector<1x128xf32>
    %c0_70 = arith.constant 0 : index
    %c0_71 = arith.constant 0 : index
    %83 = vector.load %arg4[%c0_70, %c0_71] : memref<1x128xf32, #tpu.memory_space<vmem>>, vector<1x128xf32>
    tpu.vector_store %arg4[%c0_70, %c0_71], %82 {strides = array<i32>} : memref<1x128xf32, #tpu.memory_space<vmem>>, vector<1x128xf32>,
    %c0_72 = arith.constant 0 : index
    %c0_73 = arith.constant 0 : index
    %84 = vector.load %arg5[%c0_72, %c0_73] : memref<1x128xf32, #tpu.memory_space<vmem>>, vector<1x128xf32>
    %85 = arith.mulf %72, %72 : vector<256x128xf32>
    %cst_74 = arith.constant dense<0.000000e+00> : vector<128xf32>
    %86 = vector.multi_reduction <add>, %85, %cst_74 [0] : vector<256x128xf32> to vector<128xf32>
    %87 = vector.shape_cast %86 : vector<128xf32> to vector<1x128xf32>
    %88 = arith.addf %84, %87 : vector<1x128xf32>
    %c0_75 = arith.constant 0 : index
    %c0_76 = arith.constant 0 : index
    %89 = vector.load %arg5[%c0_75, %c0_76] : memref<1x128xf32, #tpu.memory_space<vmem>>, vector<1x128xf32>
    tpu.vector_store %arg5[%c0_75, %c0_76], %88 {strides = array<i32>} : memref<1x128xf32, #tpu.memory_space<vmem>>, vector<1x128xf32>,
    return
  }
  func.func @transform_0(%arg0: i32) -> (i32, i32, i32, i32) {
    %c0_i32 = arith.constant 0 : i32
    %c0_i32_0 = arith.constant 0 : i32
    %c0_i32_1 = arith.constant 0 : i32
    %c0_i32_2 = arith.constant 0 : i32
    return %arg0, %c0_i32, %c0_i32_0, %c0_i32_1 : i32, i32, i32, i32
  }
  func.func @transform_1(%arg0: i32) -> (i32, i32, i32) {
    %c0_i32 = arith.constant 0 : i32
    %c0_i32_0 = arith.constant 0 : i32
    %c0_i32_1 = arith.constant 0 : i32
    %c0_i32_2 = arith.constant 0 : i32
    return %c0_i32, %c0_i32_0, %c0_i32_1 : i32, i32, i32
  }
  func.func @transform_2(%arg0: i32) -> (i32, i32, i32) {
    %c0_i32 = arith.constant 0 : i32
    %c0_i32_0 = arith.constant 0 : i32
    %c0_i32_1 = arith.constant 0 : i32
    return %arg0, %c0_i32, %c0_i32_0 : i32, i32, i32
  }
  func.func @transform_3(%arg0: i32) -> (i32, i32) {
    %c0_i32 = arith.constant 0 : i32
    %c0_i32_0 = arith.constant 0 : i32
    %c0_i32_1 = arith.constant 0 : i32
    return %c0_i32, %c0_i32_0 : i32, i32
  }
  func.func @transform_4(%arg0: i32) -> (i32, i32) {
    %c0_i32 = arith.constant 0 : i32
    %c0_i32_0 = arith.constant 0 : i32
    %c0_i32_1 = arith.constant 0 : i32
    return %c0_i32, %c0_i32_0 : i32, i32
  }
}

module attributes {stable_mosaic.version = 11 : i64} {
  func.func @_norm2_add_relu_kernel(%arg0: i32, %arg1: memref<256x128xf32, #tpu.memory_space<vmem>>, %arg2: memref<1x128xf32, #tpu.memory_space<vmem>>, %arg3: memref<1x128xf32, #tpu.memory_space<vmem>>, %arg4: memref<256x128xf32, #tpu.memory_space<vmem>>, %arg5: memref<1x128xf32, #tpu.memory_space<vmem>>, %arg6: memref<1x128xf32, #tpu.memory_space<vmem>>, %arg7: memref<256x128xf32, #tpu.memory_space<vmem>>) attributes {dimension_semantics = [#tpu.dimension_semantics<parallel>], iteration_bounds = array<i64: 2>, scalar_prefetch = 0 : i64, scratch_operands = 0 : i64, tpu.core_type = #tpu.core_type<tc>, window_params = [{transform_indices = @transform_0, window_bounds = array<i64: 256, 128>}, {pipeline_mode = #tpu.pipeline_mode<synchronous>, transform_indices = @transform_1, window_bounds = array<i64: 1, 128>}, {pipeline_mode = #tpu.pipeline_mode<synchronous>, transform_indices = @transform_2, window_bounds = array<i64: 1, 128>}, {transform_indices = @transform_3, window_bounds = array<i64: 256, 128>}, {pipeline_mode = #tpu.pipeline_mode<synchronous>, transform_indices = @transform_4, window_bounds = array<i64: 1, 128>}, {pipeline_mode = #tpu.pipeline_mode<synchronous>, transform_indices = @transform_5, window_bounds = array<i64: 1, 128>}, {transform_indices = @transform_6, window_bounds = array<i64: 256, 128>}]} {
    %c0 = arith.constant 0 : index
    %c0_0 = arith.constant 0 : index
    %0 = vector.load %arg1[%c0, %c0_0] : memref<256x128xf32, #tpu.memory_space<vmem>>, vector<256x128xf32>
    %c0_1 = arith.constant 0 : index
    %c0_2 = arith.constant 0 : index
    %1 = vector.load %arg2[%c0_1, %c0_2] : memref<1x128xf32, #tpu.memory_space<vmem>>, vector<1x128xf32>
    %2 = vector.broadcast %1 : vector<1x128xf32> to vector<256x128xf32>
    %3 = arith.mulf %0, %2 : vector<256x128xf32>
    %c0_3 = arith.constant 0 : index
    %c0_4 = arith.constant 0 : index
    %4 = vector.load %arg3[%c0_3, %c0_4] : memref<1x128xf32, #tpu.memory_space<vmem>>, vector<1x128xf32>
    %5 = vector.broadcast %4 : vector<1x128xf32> to vector<256x128xf32>
    %6 = arith.addf %3, %5 : vector<256x128xf32>
    %c0_5 = arith.constant 0 : index
    %c0_6 = arith.constant 0 : index
    %7 = vector.load %arg4[%c0_5, %c0_6] : memref<256x128xf32, #tpu.memory_space<vmem>>, vector<256x128xf32>
    %c0_7 = arith.constant 0 : index
    %c0_8 = arith.constant 0 : index
    %8 = vector.load %arg5[%c0_7, %c0_8] : memref<1x128xf32, #tpu.memory_space<vmem>>, vector<1x128xf32>
    %9 = vector.broadcast %8 : vector<1x128xf32> to vector<256x128xf32>
    %10 = arith.mulf %7, %9 : vector<256x128xf32>
    %11 = arith.addf %6, %10 : vector<256x128xf32>
    %c0_9 = arith.constant 0 : index
    %c0_10 = arith.constant 0 : index
    %12 = vector.load %arg6[%c0_9, %c0_10] : memref<1x128xf32, #tpu.memory_space<vmem>>, vector<1x128xf32>
    %13 = vector.broadcast %12 : vector<1x128xf32> to vector<256x128xf32>
    %14 = arith.addf %11, %13 : vector<256x128xf32>
    %cst = arith.constant 0.000000e+00 : f32
    %15 = vector.broadcast %cst : f32 to vector<256x128xf32>
    %16 = arith.maximumf %14, %15 : vector<256x128xf32>
    %c0_11 = arith.constant 0 : index
    %c0_12 = arith.constant 0 : index
    %17 = vector.load %arg7[%c0_11, %c0_12] : memref<256x128xf32, #tpu.memory_space<vmem>>, vector<256x128xf32>
    tpu.vector_store %arg7[%c0_11, %c0_12], %16 {strides = array<i32>} : memref<256x128xf32, #tpu.memory_space<vmem>>, vector<256x128xf32>,
    return
  }
  func.func @transform_0(%arg0: i32) -> (i32, i32) {
    %c0_i32 = arith.constant 0 : i32
    %c0_i32_0 = arith.constant 0 : i32
    return %arg0, %c0_i32 : i32, i32
  }
  func.func @transform_1(%arg0: i32) -> (i32, i32) {
    %c0_i32 = arith.constant 0 : i32
    %c0_i32_0 = arith.constant 0 : i32
    %c0_i32_1 = arith.constant 0 : i32
    return %c0_i32, %c0_i32_0 : i32, i32
  }
  func.func @transform_2(%arg0: i32) -> (i32, i32) {
    %c0_i32 = arith.constant 0 : i32
    %c0_i32_0 = arith.constant 0 : i32
    %c0_i32_1 = arith.constant 0 : i32
    return %c0_i32, %c0_i32_0 : i32, i32
  }
  func.func @transform_3(%arg0: i32) -> (i32, i32) {
    %c0_i32 = arith.constant 0 : i32
    %c0_i32_0 = arith.constant 0 : i32
    return %arg0, %c0_i32 : i32, i32
  }
  func.func @transform_4(%arg0: i32) -> (i32, i32) {
    %c0_i32 = arith.constant 0 : i32
    %c0_i32_0 = arith.constant 0 : i32
    %c0_i32_1 = arith.constant 0 : i32
    return %c0_i32, %c0_i32_0 : i32, i32
  }
  func.func @transform_5(%arg0: i32) -> (i32, i32) {
    %c0_i32 = arith.constant 0 : i32
    %c0_i32_0 = arith.constant 0 : i32
    %c0_i32_1 = arith.constant 0 : i32
    return %c0_i32, %c0_i32_0 : i32, i32
  }
  func.func @transform_6(%arg0: i32) -> (i32, i32) {
    %c0_i32 = arith.constant 0 : i32
    %c0_i32_0 = arith.constant 0 : i32
    return %arg0, %c0_i32 : i32, i32
  }
}

</mosaic_0001>

<llo_original>
// kernel: bottleneck_forward.8
$region0: #{bottleneck_forward.8}
  #allocation0 [shape = 'u32[]', space=smem, size = 0x4, offset = 0x4, fixed_abs, tag = 'smem constant byte address 0x4 - core index']
  #allocation1 [shape = 'u32[144,128]{1,0:T(1,128)}', space=vmem, size = 0x12000, scoped, tag = 'internal scratch']
  %s0 = inlined_call_operand.vmem [shape: f32[512,128], index: 0, kind: input, shape index: {}]
  %s1 = inlined_call_operand.vmem [shape: f32[1,128], index: 1, kind: input, shape index: {}]
  %s2 = inlined_call_operand.vmem [shape: f32[1,128], index: 2, kind: input, shape index: {}]
  %s3 = inlined_call_operand.vmem [shape: f32[512,128], index: 3, kind: output, shape index: {}]
  %s4 = sld [smem:[#allocation0]]
  $region45: #{bottleneck_forward.8} parent=0
    _
  %s6 = ssub.s32 1, %s4
  %s7 = scalar_select 0, %s6, %s4
  loop: start=0, step=1, limit=4
  $region2: #{bottleneck_forward.8} parent=0 // loop_pre_header
    _
  $region3: #{bottleneck_forward.8} parent=0 // loop_header
    %s9 = sphi 0, %s13
    %p10 = scmp.ge.s32.totalorder %s9, 4
    %s19 = sphi 0, %s21
    %s22 = sphi 0, %s19
    %s23 = sphi 0, %s22
    %s39 = sphi 0, %s23
    %s43 = sphi 0, %s43
    %s45 = sphi 0, %s43
    %s46 = sphi 0, %s45
    %s60 = sphi 0, %s46
    %s64 = sphi 0, %s64
    %s66 = sphi 0, %s64
    %s67 = sphi 0, %s66
    %s81 = sphi 0, %s67
    %s87 = sphi 0, %s89
    %s90 = sphi 0, %s87
    %s91 = sphi 0, %s90
    %s107 = sphi 0, %s91
  $region4: #{bottleneck_forward.8} parent=0 // loop_header_branch
    %12 = sbr.rel (%p10) target = $region8
  $region5: #{bottleneck_forward.8} parent=0 // loop_body
    %s14 = ssub.s32 %s9, 1
    %s15 = ssub.s32 %s9, 2
    %s16 = sadd.s32 %s9, 1
    %s17 = ssub.s32 %s9, %s16
    %p18 = scmp.eq.s32.totalorder %s17, 0
    %s20 = sadd.s32 %s19, 1
    %s21 = scalar_select %p18, %s19, %s20
    %p24 = pneg %p18
    %p25 = scmp.eq.s32.totalorder %s9, 1
    %p26 = por %p24, %p25
    %p27 = scmp.ne.s32.totalorder %s19, %s22
    %p28 = scmp.eq.s32.totalorder %s9, 0
    %p29 = por %p27, %p28
    %p30 = scmp.ne.s32.totalorder %s19, %s22
    %p31 = scmp.eq.s32.totalorder %s14, 1
    %p32 = por %p30, %p31
    %p33 = scmp.ne.s32.totalorder %s22, %s23
    %p34 = scmp.eq.s32.totalorder %s14, 0
    %p35 = por %p33, %p34
    %p36 = scmp.ne.s32.totalorder %s22, %s23
    %p37 = scmp.eq.s32.totalorder %s15, 1
    %p38 = por %p36, %p37
    %p40 = scmp.ne.s32.totalorder %s23, %s39
    %p41 = scmp.eq.s32.totalorder %s15, 0
    %p42 = por %p40, %p41
    %s44 = sadd.s32 %s43, 1
    %p47 = scmp.eq.s32.totalorder %s9, 1
    %p48 = scmp.ne.s32.totalorder %s43, %s45
    %p49 = scmp.eq.s32.totalorder %s9, 0
    %p50 = por %p48, %p49
    %p51 = scmp.ne.s32.totalorder %s43, %s45
    %p52 = scmp.eq.s32.totalorder %s14, 1
    %p53 = por %p51, %p52
    %p54 = scmp.ne.s32.totalorder %s45, %s46
    %p55 = scmp.eq.s32.totalorder %s14, 0
    %p56 = por %p54, %p55
    %p57 = scmp.ne.s32.totalorder %s45, %s46
    %p58 = scmp.eq.s32.totalorder %s15, 1
    %p59 = por %p57, %p58
    %p61 = scmp.ne.s32.totalorder %s46, %s60
    %p62 = scmp.eq.s32.totalorder %s15, 0
    %p63 = por %p61, %p62
    %s65 = sadd.s32 %s64, 1
    %p68 = scmp.eq.s32.totalorder %s9, 1
    %p69 = scmp.ne.s32.totalorder %s64, %s66
    %p70 = scmp.eq.s32.totalorder %s9, 0
    %p71 = por %p69, %p70
    %p72 = scmp.ne.s32.totalorder %s64, %s66
    %p73 = scmp.eq.s32.totalorder %s14, 1
    %p74 = por %p72, %p73
    %p75 = scmp.ne.s32.totalorder %s66, %s67
    %p76 = scmp.eq.s32.totalorder %s14, 0
    %p77 = por %p75, %p76
    %p78 = scmp.ne.s32.totalorder %s66, %s67
    %p79 = scmp.eq.s32.totalorder %s15, 1
    %p80 = por %p78, %p79
    %p82 = scmp.ne.s32.totalorder %s67, %s81
    %p83 = scmp.eq.s32.totalorder %s15, 0
    %p84 = por %p82, %p83
    %s85 = ssub.s32 %s9, %s16
    %p86 = scmp.eq.s32.totalorder %s85, 0
    %s88 = sadd.s32 %s87, 1
    %s89 = scalar_select %p86, %s87, %s88
    %p92 = pneg %p86
    %p93 = scmp.eq.s32.totalorder %s9, 1
    %p94 = por %p92, %p93
    %p95 = scmp.ne.s32.totalorder %s87, %s90
    %p96 = scmp.eq.s32.totalorder %s9, 0
    %p97 = por %p95, %p96
    %p98 = scmp.ne.s32.totalorder %s87, %s90
    %p99 = scmp.eq.s32.totalorder %s14, 1
    %p100 = por %p98, %p99
    %p101 = scmp.ne.s32.totalorder %s90, %s91
    %p102 = scmp.eq.s32.totalorder %s14, 0
    %p103 = por %p101, %p102
    %p104 = scmp.ne.s32.totalorder %s90, %s91
    %p105 = scmp.eq.s32.totalorder %s15, 1
    %p106 = por %p104, %p105
    %p108 = scmp.ne.s32.totalorder %s91, %s107
    %p109 = scmp.eq.s32.totalorder %s15, 0
    %p110 = por %p108, %p109
    %p111 = scmp.le.s32.totalorder 1, %s9
    %p112 = scmp.lt.s32.totalorder %s9, 3
    %p113 = pnand %p111, %p112
    %p114 = pneg %p113
    // Predicated region
    $region9: #{bottleneck_forward.8} parent=5 // pred_check
      _
    $region10: #{bottleneck_forward.8} parent=5 // pred_check_branch
      %116 = sbr.rel (%p113) target = $region12
    $region11: #{bottleneck_forward.8} parent=5 // pred_region
      %s117 = ssub.s32 %s9, 1
      // Predicated region
      $region13: #{bottleneck_forward.8} parent=11 // pred_check
        %p118 = pneg %p56
      $region14: #{bottleneck_forward.8} parent=11 // pred_check_branch
        %120 = sbr.rel (%p118) target = $region16
      $region15: #{bottleneck_forward.8} parent=11 // pred_region
        _
      $region16: #{bottleneck_forward.8} parent=11 // pred_fallthru
        _
      // Predicated region
      $region17: #{bottleneck_forward.8} parent=11 // pred_check
        %p121 = pneg %p77
      $region18: #{bottleneck_forward.8} parent=11 // pred_check_branch
        %123 = sbr.rel (%p121) target = $region20
      $region19: #{bottleneck_forward.8} parent=11 // pred_region
        _
      $region20: #{bottleneck_forward.8} parent=11 // pred_fallthru
        _
    $region12: #{bottleneck_forward.8} parent=5 // pred_fallthru
      _
    %p124 = scmp.lt.s32.totalorder %s9, 2
    // Predicated region
    $region21: #{bottleneck_forward.8} parent=5 // pred_check
      %p125 = pneg %p124
    $region22: #{bottleneck_forward.8} parent=5 // pred_check_branch
      %127 = sbr.rel (%p125) target = $region24
    $region23: #{bottleneck_forward.8} parent=5 // pred_region
      // Predicated region
      $region25: #{bottleneck_forward.8} parent=23 // pred_check
        %p128 = pneg %p29
      $region26: #{bottleneck_forward.8} parent=23 // pred_check_branch
        %130 = sbr.rel (%p128) target = $region28
      $region27: #{bottleneck_forward.8} parent=23 // pred_region
        %s131 = smul.u32 32, %s9
        %p132 = scmp.lt.s32.totalorder %s131, 63
        %s133 = scalar_select %p132, %s131, 63
        %s134 = smul.addr %s133, 8
        %s135 = scalar_lea.vmem %s0, %s134
        %s136 = smul.u32 32, %s9
      $region28: #{bottleneck_forward.8} parent=23 // pred_fallthru
        _
    $region24: #{bottleneck_forward.8} parent=5 // pred_fallthru
      _
    %p137 = scmp.le.s32.totalorder 1, %s9
    %p138 = scmp.lt.s32.totalorder %s9, 3
    %p139 = pnand %p137, %p138
    %p140 = pneg %p139
    // Predicated region
    $region29: #{bottleneck_forward.8} parent=5 // pred_check
      _
    $region30: #{bottleneck_forward.8} parent=5 // pred_check_branch
      %142 = sbr.rel (%p139) target = $region32
    $region31: #{bottleneck_forward.8} parent=5 // pred_region
      %s143 = ssub.s32 %s9, 1
      %s144 = smul.u32 32, %s14
      %p145 = scmp.lt.s32.totalorder %s144, 63
      %s146 = scalar_select %p145, %s144, 63
      %s147 = smul.addr %s146, 8
      %s148 = scalar_lea.vmem %s0, %s147
      %p149 = pneg %p35
      %p150 = pneg %p32
      %p151 = pneg %p56
      %p152 = pneg %p53
      %p153 = pneg %p77
      %p154 = pneg %p74
      %p155 = pneg %p103
      %p156 = pneg %p100
      %s157 = smul.u32 32, %s14
      %p158 = scmp.lt.s32.totalorder %s157, 63
      %s159 = scalar_select %p158, %s157, 63
      %s160 = smul.addr %s159, 8
      %s161 = scalar_lea.vmem %s3, %s160
      %s162 = smul.u32 32, %s14
      %p163 = scmp.lt.s32.totalorder %s162, 63
      %s164 = scalar_select %p163, %s162, 63
      %s165 = smul.addr %s164, 8
      %s166 = scalar_lea.vmem %s0, %s165
      %s167 = smul.u32 32, %s14
      %s168 = smul.u32 32, %s14
      %p169 = scmp.lt.s32.totalorder %s168, 63
      %s170 = scalar_select %p169, %s168, 63
      %s171 = smul.addr %s170, 8
      %s172 = scalar_lea.vmem %s3, %s171
      %s173 = smul.u32 32, %s14
      %v174 = vld [vmem:[%s166] sm:$0xff]
      %v175 = vld [vmem:[%s166 + $0x8] sm:$0xff]
      %v176 = vld [vmem:[%s166 + $0x10] sm:$0xff]
      %v177 = vld [vmem:[%s166 + $0x18] sm:$0xff]
      %v178 = vld [vmem:[%s166 + $0x20] sm:$0xff]
      %v179 = vld [vmem:[%s166 + $0x28] sm:$0xff]
      %v180 = vld [vmem:[%s166 + $0x30] sm:$0xff]
      %v181 = vld [vmem:[%s166 + $0x38] sm:$0xff]
      %v182 = vld [vmem:[%s166 + $0x40] sm:$0xff]
      %v183 = vld [vmem:[%s166 + $0x48] sm:$0xff]
      %v184 = vld [vmem:[%s166 + $0x50] sm:$0xff]
      %v185 = vld [vmem:[%s166 + $0x58] sm:$0xff]
      %v186 = vld [vmem:[%s166 + $0x60] sm:$0xff]
      %v187 = vld [vmem:[%s166 + $0x68] sm:$0xff]
      %v188 = vld [vmem:[%s166 + $0x70] sm:$0xff]
      %v189 = vld [vmem:[%s166 + $0x78] sm:$0xff]
      %v190 = vld [vmem:[%s166 + $0x80] sm:$0xff]
      %v191 = vld [vmem:[%s166 + $0x88] sm:$0xff]
      %v192 = vld [vmem:[%s166 + $0x90] sm:$0xff]
      %v193 = vld [vmem:[%s166 + $0x98] sm:$0xff]
      %v194 = vld [vmem:[%s166 + $0xa0] sm:$0xff]
      %v195 = vld [vmem:[%s166 + $0xa8] sm:$0xff]
      %v196 = vld [vmem:[%s166 + $0xb0] sm:$0xff]
      %v197 = vld [vmem:[%s166 + $0xb8] sm:$0xff]
      %v198 = vld [vmem:[%s166 + $0xc0] sm:$0xff]
      %v199 = vld [vmem:[%s166 + $0xc8] sm:$0xff]
      %v200 = vld [vmem:[%s166 + $0xd0] sm:$0xff]
      %v201 = vld [vmem:[%s166 + $0xd8] sm:$0xff]
      %v202 = vld [vmem:[%s166 + $0xe0] sm:$0xff]
      %v203 = vld [vmem:[%s166 + $0xe8] sm:$0xff]
      %v204 = vld [vmem:[%s166 + $0xf0] sm:$0xff]
      %v205 = vld [vmem:[%s166 + $0xf8] sm:$0xff]
      %v206 = vld [vmem:[%s1] sm:$0x1]
      %v208 = vlaneseq
      %v209 = vshrl.u32 %v208, 7
      %v210 = vsub.s32 0, %v209
      %v211 = vrot.slane %v206, %v210
      %v213 = vmul.f32 %v174, %v211
      %v214 = vmul.f32 %v175, %v211
      %v215 = vmul.f32 %v176, %v211
      %v216 = vmul.f32 %v177, %v211
      %v217 = vmul.f32 %v178, %v211
      %v218 = vmul.f32 %v179, %v211
      %v219 = vmul.f32 %v180, %v211
      %v220 = vmul.f32 %v181, %v211
      %v221 = vmul.f32 %v182, %v211
      %v222 = vmul.f32 %v183, %v211
      %v223 = vmul.f32 %v184, %v211
      %v224 = vmul.f32 %v185, %v211
      %v225 = vmul.f32 %v186, %v211
      %v226 = vmul.f32 %v187, %v211
      %v227 = vmul.f32 %v188, %v211
      %v228 = vmul.f32 %v189, %v211
      %v229 = vmul.f32 %v190, %v211
      %v230 = vmul.f32 %v191, %v211
      %v231 = vmul.f32 %v192, %v211
      %v232 = vmul.f32 %v193, %v211
      %v233 = vmul.f32 %v194, %v211
      %v234 = vmul.f32 %v195, %v211
      %v235 = vmul.f32 %v196, %v211
      %v236 = vmul.f32 %v197, %v211
      %v237 = vmul.f32 %v198, %v211
      %v238 = vmul.f32 %v199, %v211
      %v239 = vmul.f32 %v200, %v211
      %v240 = vmul.f32 %v201, %v211
      %v241 = vmul.f32 %v202, %v211
      %v242 = vmul.f32 %v203, %v211
      %v243 = vmul.f32 %v204, %v211
      %v244 = vmul.f32 %v205, %v211
      %v245 = vld [vmem:[%s2] sm:$0x1]
      %v247 = vlaneseq
      %v248 = vshrl.u32 %v247, 7
      %v249 = vsub.s32 0, %v248
      %v250 = vrot.slane %v245, %v249
      %v252 = vadd.f32 %v213, %v250
      %v253 = vadd.f32 %v214, %v250
      %v254 = vadd.f32 %v215, %v250
      %v255 = vadd.f32 %v216, %v250
      %v256 = vadd.f32 %v217, %v250
      %v257 = vadd.f32 %v218, %v250
      %v258 = vadd.f32 %v219, %v250
      %v259 = vadd.f32 %v220, %v250
      %v260 = vadd.f32 %v221, %v250
      %v261 = vadd.f32 %v222, %v250
      %v262 = vadd.f32 %v223, %v250
      %v263 = vadd.f32 %v224, %v250
      %v264 = vadd.f32 %v225, %v250
      %v265 = vadd.f32 %v226, %v250
      %v266 = vadd.f32 %v227, %v250
      %v267 = vadd.f32 %v228, %v250
      %v268 = vadd.f32 %v229, %v250
      %v269 = vadd.f32 %v230, %v250
      %v270 = vadd.f32 %v231, %v250
      %v271 = vadd.f32 %v232, %v250
      %v272 = vadd.f32 %v233, %v250
      %v273 = vadd.f32 %v234, %v250
      %v274 = vadd.f32 %v235, %v250
      %v275 = vadd.f32 %v236, %v250
      %v276 = vadd.f32 %v237, %v250
      %v277 = vadd.f32 %v238, %v250
      %v278 = vadd.f32 %v239, %v250
      %v279 = vadd.f32 %v240, %v250
      %v280 = vadd.f32 %v241, %v250
      %v281 = vadd.f32 %v242, %v250
      %v282 = vadd.f32 %v243, %v250
      %v283 = vadd.f32 %v244, %v250
      %v284 = vmax.f32 %v252, 0.0
      %v285 = vmax.f32 %v253, 0.0
      %v286 = vmax.f32 %v254, 0.0
      %v287 = vmax.f32 %v255, 0.0
      %v288 = vmax.f32 %v256, 0.0
      %v289 = vmax.f32 %v257, 0.0
      %v290 = vmax.f32 %v258, 0.0
      %v291 = vmax.f32 %v259, 0.0
      %v292 = vmax.f32 %v260, 0.0
      %v293 = vmax.f32 %v261, 0.0
      %v294 = vmax.f32 %v262, 0.0
      %v295 = vmax.f32 %v263, 0.0
      %v296 = vmax.f32 %v264, 0.0
      %v297 = vmax.f32 %v265, 0.0
      %v298 = vmax.f32 %v266, 0.0
      %v299 = vmax.f32 %v267, 0.0
      %v300 = vmax.f32 %v268, 0.0
      %v301 = vmax.f32 %v269, 0.0
      %v302 = vmax.f32 %v270, 0.0
      %v303 = vmax.f32 %v271, 0.0
      %v304 = vmax.f32 %v272, 0.0
      %v305 = vmax.f32 %v273, 0.0
      %v306 = vmax.f32 %v274, 0.0
      %v307 = vmax.f32 %v275, 0.0
      %v308 = vmax.f32 %v276, 0.0
      %v309 = vmax.f32 %v277, 0.0
      %v310 = vmax.f32 %v278, 0.0
      %v311 = vmax.f32 %v279, 0.0
      %v312 = vmax.f32 %v280, 0.0
      %v313 = vmax.f32 %v281, 0.0
      %v314 = vmax.f32 %v282, 0.0
      %v315 = vmax.f32 %v283, 0.0
      %316 = vst [vmem:[%s172] sm:$0xff] %v284
      %317 = vst [vmem:[%s172 + $0x8] sm:$0xff] %v285
      %318 = vst [vmem:[%s172 + $0x10] sm:$0xff] %v286
      %319 = vst [vmem:[%s172 + $0x18] sm:$0xff] %v287
      %320 = vst [vmem:[%s172 + $0x20] sm:$0xff] %v288
      %321 = vst [vmem:[%s172 + $0x28] sm:$0xff] %v289
      %322 = vst [vmem:[%s172 + $0x30] sm:$0xff] %v290
      %323 = vst [vmem:[%s172 + $0x38] sm:$0xff] %v291
      %324 = vst [vmem:[%s172 + $0x40] sm:$0xff] %v292
      %325 = vst [vmem:[%s172 + $0x48] sm:$0xff] %v293
      %326 = vst [vmem:[%s172 + $0x50] sm:$0xff] %v294
      %327 = vst [vmem:[%s172 + $0x58] sm:$0xff] %v295
      %328 = vst [vmem:[%s172 + $0x60] sm:$0xff] %v296
      %329 = vst [vmem:[%s172 + $0x68] sm:$0xff] %v297
      %330 = vst [vmem:[%s172 + $0x70] sm:$0xff] %v298
      %331 = vst [vmem:[%s172 + $0x78] sm:$0xff] %v299
      %332 = vst [vmem:[%s172 + $0x80] sm:$0xff] %v300
      %333 = vst [vmem:[%s172 + $0x88] sm:$0xff] %v301
      %334 = vst [vmem:[%s172 + $0x90] sm:$0xff] %v302
      %335 = vst [vmem:[%s172 + $0x98] sm:$0xff] %v303
      %336 = vst [vmem:[%s172 + $0xa0] sm:$0xff] %v304
      %337 = vst [vmem:[%s172 + $0xa8] sm:$0xff] %v305
      %338 = vst [vmem:[%s172 + $0xb0] sm:$0xff] %v306
      %339 = vst [vmem:[%s172 + $0xb8] sm:$0xff] %v307
      %340 = vst [vmem:[%s172 + $0xc0] sm:$0xff] %v308
      %341 = vst [vmem:[%s172 + $0xc8] sm:$0xff] %v309
      %342 = vst [vmem:[%s172 + $0xd0] sm:$0xff] %v310
      %343 = vst [vmem:[%s172 + $0xd8] sm:$0xff] %v311
      %344 = vst [vmem:[%s172 + $0xe0] sm:$0xff] %v312
      %345 = vst [vmem:[%s172 + $0xe8] sm:$0xff] %v313
      %346 = vst [vmem:[%s172 + $0xf0] sm:$0xff] %v314
      %347 = vst [vmem:[%s172 + $0xf8] sm:$0xff] %v315
      %s348 = smul.u32 32, %s14
      %p349 = scmp.lt.s32.totalorder %s348, 63
      %s350 = scalar_select %p349, %s348, 63
      %s351 = smul.addr %s350, 8
      %s352 = scalar_lea.vmem %s3, %s351
      // Predicated region
      $region33: #{bottleneck_forward.8} parent=31 // pred_check
        %p353 = pneg %p100
      $region34: #{bottleneck_forward.8} parent=31 // pred_check_branch
        %355 = sbr.rel (%p353) target = $region36
      $region35: #{bottleneck_forward.8} parent=31 // pred_region
        %s356 = smul.u32 32, %s14
      $region36: #{bottleneck_forward.8} parent=31 // pred_fallthru
        _
    $region32: #{bottleneck_forward.8} parent=5 // pred_fallthru
      _
    %p357 = scmp.le.s32.totalorder 2, %s9
    // Predicated region
    $region37: #{bottleneck_forward.8} parent=5 // pred_check
      %p358 = pneg %p357
    $region38: #{bottleneck_forward.8} parent=5 // pred_check_branch
      %360 = sbr.rel (%p358) target = $region40
    $region39: #{bottleneck_forward.8} parent=5 // pred_region
      %s361 = ssub.s32 %s9, 2
      // Predicated region
      $region41: #{bottleneck_forward.8} parent=39 // pred_check
        %p362 = pneg %p106
      $region42: #{bottleneck_forward.8} parent=39 // pred_check_branch
        %364 = sbr.rel (%p362) target = $region44
      $region43: #{bottleneck_forward.8} parent=39 // pred_region
        %s365 = smul.u32 32, %s15
        %p366 = scmp.lt.s32.totalorder %s365, 63
        %s367 = scalar_select %p366, %s365, 63
        %s368 = smul.addr %s367, 8
        %s369 = scalar_lea.vmem %s3, %s368
      $region44: #{bottleneck_forward.8} parent=39 // pred_fallthru
        _
    $region40: #{bottleneck_forward.8} parent=5 // pred_fallthru
      _
  $region6: #{bottleneck_forward.8} parent=0 // loop_footer
    %s13 = sadd.s32 1, %s9
  $region7: #{bottleneck_forward.8} parent=0 // loop_footer_branch
    %8 = sbr.rel target = $region3
  $region8: #{bottleneck_forward.8} parent=0 // loop_exit
    _

// kernel: bottleneck_forward.7
$region0: #{bottleneck_forward.7}
  #allocation0 [shape = 'u32[]', space=smem, size = 0x4, offset = 0x4, fixed_abs, tag = 'smem constant byte address 0x4 - core index']
  #allocation1 [shape = 'u32[144,128]{1,0:T(1,128)}', space=vmem, size = 0x12000, scoped, tag = 'internal scratch']
  %s0 = inlined_call_operand.vmem [shape: f32[512,128], index: 0, kind: input, shape index: {}]
  %s1 = inlined_call_operand.vmem [shape: bf16[128,128], index: 1, kind: input, shape index: {}]
  %s2 = inlined_call_operand.vmem [shape: f32[512,128], index: 2, kind: output, shape index: {0}]
  %s3 = inlined_call_operand.vmem [shape: f32[1,128], index: 3, kind: output, shape index: {1}]
  %s4 = inlined_call_operand.vmem [shape: f32[1,128], index: 4, kind: output, shape index: {2}]
  %5 = xla_tuple %s2, %s3, %s4
  %s6 = sld [smem:[#allocation0]]
  $region61: #{bottleneck_forward.7} parent=0
    _
  %s8 = ssub.s32 1, %s6
  %s9 = scalar_select 0, %s8, %s6
  loop: start=0, step=1, limit=4
  $region2: #{bottleneck_forward.7} parent=0 // loop_pre_header
    _
  $region3: #{bottleneck_forward.7} parent=0 // loop_header
    %s11 = sphi 0, %s15
    %p12 = scmp.ge.s32.totalorder %s11, 4
    %s21 = sphi 0, %s23
    %s24 = sphi 0, %s21
    %s25 = sphi 0, %s24
    %s41 = sphi 0, %s25
    %s45 = sphi 0, %s45
    %s47 = sphi 0, %s45
    %s48 = sphi 0, %s47
    %s62 = sphi 0, %s48
    %s68 = sphi 0, %s70
    %s71 = sphi 0, %s68
    %s72 = sphi 0, %s71
    %s88 = sphi 0, %s72
    %s92 = sphi 0, %s92
    %s94 = sphi 0, %s92
    %s95 = sphi 0, %s94
    %s109 = sphi 0, %s95
    %s113 = sphi 0, %s113
    %s115 = sphi 0, %s113
    %s116 = sphi 0, %s115
    %s130 = sphi 0, %s116
  $region4: #{bottleneck_forward.7} parent=0 // loop_header_branch
    %14 = sbr.rel (%p12) target = $region8
  $region5: #{bottleneck_forward.7} parent=0 // loop_body
    %s16 = ssub.s32 %s11, 1
    %s17 = ssub.s32 %s11, 2
    %s18 = sadd.s32 %s11, 1
    %s19 = ssub.s32 %s11, %s18
    %p20 = scmp.eq.s32.totalorder %s19, 0
    %s22 = sadd.s32 %s21, 1
    %s23 = scalar_select %p20, %s21, %s22
    %p26 = pneg %p20
    %p27 = scmp.eq.s32.totalorder %s11, 1
    %p28 = por %p26, %p27
    %p29 = scmp.ne.s32.totalorder %s21, %s24
    %p30 = scmp.eq.s32.totalorder %s11, 0
    %p31 = por %p29, %p30
    %p32 = scmp.ne.s32.totalorder %s21, %s24
    %p33 = scmp.eq.s32.totalorder %s16, 1
    %p34 = por %p32, %p33
    %p35 = scmp.ne.s32.totalorder %s24, %s25
    %p36 = scmp.eq.s32.totalorder %s16, 0
    %p37 = por %p35, %p36
    %p38 = scmp.ne.s32.totalorder %s24, %s25
    %p39 = scmp.eq.s32.totalorder %s17, 1
    %p40 = por %p38, %p39
    %p42 = scmp.ne.s32.totalorder %s25, %s41
    %p43 = scmp.eq.s32.totalorder %s17, 0
    %p44 = por %p42, %p43
    %s46 = sadd.s32 %s45, 1
    %p49 = scmp.eq.s32.totalorder %s11, 1
    %p50 = scmp.ne.s32.totalorder %s45, %s47
    %p51 = scmp.eq.s32.totalorder %s11, 0
    %p52 = por %p50, %p51
    %p53 = scmp.ne.s32.totalorder %s45, %s47
    %p54 = scmp.eq.s32.totalorder %s16, 1
    %p55 = por %p53, %p54
    %p56 = scmp.ne.s32.totalorder %s47, %s48
    %p57 = scmp.eq.s32.totalorder %s16, 0
    %p58 = por %p56, %p57
    %p59 = scmp.ne.s32.totalorder %s47, %s48
    %p60 = scmp.eq.s32.totalorder %s17, 1
    %p61 = por %p59, %p60
    %p63 = scmp.ne.s32.totalorder %s48, %s62
    %p64 = scmp.eq.s32.totalorder %s17, 0
    %p65 = por %p63, %p64
    %s66 = ssub.s32 %s11, %s18
    %p67 = scmp.eq.s32.totalorder %s66, 0
    %s69 = sadd.s32 %s68, 1
    %s70 = scalar_select %p67, %s68, %s69
    %p73 = pneg %p67
    %p74 = scmp.eq.s32.totalorder %s11, 1
    %p75 = por %p73, %p74
    %p76 = scmp.ne.s32.totalorder %s68, %s71
    %p77 = scmp.eq.s32.totalorder %s11, 0
    %p78 = por %p76, %p77
    %p79 = scmp.ne.s32.totalorder %s68, %s71
    %p80 = scmp.eq.s32.totalorder %s16, 1
    %p81 = por %p79, %p80
    %p82 = scmp.ne.s32.totalorder %s71, %s72
    %p83 = scmp.eq.s32.totalorder %s16, 0
    %p84 = por %p82, %p83
    %p85 = scmp.ne.s32.totalorder %s71, %s72
    %p86 = scmp.eq.s32.totalorder %s17, 1
    %p87 = por %p85, %p86
    %p89 = scmp.ne.s32.totalorder %s72, %s88
    %p90 = scmp.eq.s32.totalorder %s17, 0
    %p91 = por %p89, %p90
    %s93 = sadd.s32 %s92, 1
    %p96 = scmp.eq.s32.totalorder %s11, 1
    %p97 = scmp.ne.s32.totalorder %s92, %s94
    %p98 = scmp.eq.s32.totalorder %s11, 0
    %p99 = por %p97, %p98
    %p100 = scmp.ne.s32.totalorder %s92, %s94
    %p101 = scmp.eq.s32.totalorder %s16, 1
    %p102 = por %p100, %p101
    %p103 = scmp.ne.s32.totalorder %s94, %s95
    %p104 = scmp.eq.s32.totalorder %s16, 0
    %p105 = por %p103, %p104
    %p106 = scmp.ne.s32.totalorder %s94, %s95
    %p107 = scmp.eq.s32.totalorder %s17, 1
    %p108 = por %p106, %p107
    %p110 = scmp.ne.s32.totalorder %s95, %s109
    %p111 = scmp.eq.s32.totalorder %s17, 0
    %p112 = por %p110, %p111
    %s114 = sadd.s32 %s113, 1
    %p117 = scmp.eq.s32.totalorder %s11, 1
    %p118 = scmp.ne.s32.totalorder %s113, %s115
    %p119 = scmp.eq.s32.totalorder %s11, 0
    %p120 = por %p118, %p119
    %p121 = scmp.ne.s32.totalorder %s113, %s115
    %p122 = scmp.eq.s32.totalorder %s16, 1
    %p123 = por %p121, %p122
    %p124 = scmp.ne.s32.totalorder %s115, %s116
    %p125 = scmp.eq.s32.totalorder %s16, 0
    %p126 = por %p124, %p125
    %p127 = scmp.ne.s32.totalorder %s115, %s116
    %p128 = scmp.eq.s32.totalorder %s17, 1
    %p129 = por %p127, %p128
    %p131 = scmp.ne.s32.totalorder %s116, %s130
    %p132 = scmp.eq.s32.totalorder %s17, 0
    %p133 = por %p131, %p132
    %p134 = scmp.le.s32.totalorder 1, %s11
    %p135 = scmp.lt.s32.totalorder %s11, 3
    %p136 = pnand %p134, %p135
    %p137 = pneg %p136
    // Predicated region
    $region9: #{bottleneck_forward.7} parent=5 // pred_check
      _
    $region10: #{bottleneck_forward.7} parent=5 // pred_check_branch
      %139 = sbr.rel (%p136) target = $region12
    $region11: #{bottleneck_forward.7} parent=5 // pred_region
      %s140 = ssub.s32 %s11, 1
      // Predicated region
      $region13: #{bottleneck_forward.7} parent=11 // pred_check
        %p141 = pneg %p58
      $region14: #{bottleneck_forward.7} parent=11 // pred_check_branch
        %143 = sbr.rel (%p141) target = $region16
      $region15: #{bottleneck_forward.7} parent=11 // pred_region
        _
      $region16: #{bottleneck_forward.7} parent=11 // pred_fallthru
        _
    $region12: #{bottleneck_forward.7} parent=5 // pred_fallthru
      _
    %p144 = scmp.lt.s32.totalorder %s11, 2
    // Predicated region
    $region17: #{bottleneck_forward.7} parent=5 // pred_check
      %p145 = pneg %p144
    $region18: #{bottleneck_forward.7} parent=5 // pred_check_branch
      %147 = sbr.rel (%p145) target = $region20
    $region19: #{bottleneck_forward.7} parent=5 // pred_region
      // Predicated region
      $region21: #{bottleneck_forward.7} parent=19 // pred_check
        %p148 = pneg %p31
      $region22: #{bottleneck_forward.7} parent=19 // pred_check_branch
        %150 = sbr.rel (%p148) target = $region24
      $region23: #{bottleneck_forward.7} parent=19 // pred_region
        %s151 = smul.u32 32, %s11
        %p152 = scmp.lt.s32.totalorder %s151, 63
        %s153 = scalar_select %p152, %s151, 63
        %s154 = smul.addr %s153, 8
        %s155 = scalar_lea.vmem %s0, %s154
        %s156 = smul.u32 32, %s11
      $region24: #{bottleneck_forward.7} parent=19 // pred_fallthru
        _
    $region20: #{bottleneck_forward.7} parent=5 // pred_fallthru
      _
    %p157 = scmp.le.s32.totalorder 1, %s11
    %p158 = scmp.lt.s32.totalorder %s11, 3
    %p159 = pnand %p157, %p158
    %p160 = pneg %p159
    // Predicated region
    $region25: #{bottleneck_forward.7} parent=5 // pred_check
      _
    $region26: #{bottleneck_forward.7} parent=5 // pred_check_branch
      %162 = sbr.rel (%p159) target = $region28
    $region27: #{bottleneck_forward.7} parent=5 // pred_region
      %s163 = ssub.s32 %s11, 1
      %s164 = smul.u32 32, %s16
      %p165 = scmp.lt.s32.totalorder %s164, 63
      %s166 = scalar_select %p165, %s164, 63
      %s167 = smul.addr %s166, 8
      %s168 = scalar_lea.vmem %s0, %s167
      %p169 = pneg %p37
      %p170 = pneg %p34
      %p171 = pneg %p58
      %p172 = pneg %p55
      %p173 = pneg %p84
      %p174 = pneg %p81
      %s175 = smul.u32 32, %s16
      %p176 = scmp.lt.s32.totalorder %s175, 63
      %s177 = scalar_select %p176, %s175, 63
      %s178 = smul.addr %s177, 8
      %s179 = scalar_lea.vmem %s2, %s178
      %p180 = pneg %p105
      %p181 = pneg %p102
      %p182 = pneg %p126
      %p183 = pneg %p123
      %s184 = smul.u32 32, %s16
      %p185 = scmp.lt.s32.totalorder %s184, 63
      %s186 = scalar_select %p185, %s184, 63
      %s187 = smul.addr %s186, 8
      %s188 = scalar_lea.vmem %s0, %s187
      %s189 = smul.u32 32, %s16
      %s190 = smul.u32 32, %s16
      %p191 = scmp.lt.s32.totalorder %s190, 63
      %s192 = scalar_select %p191, %s190, 63
      %s193 = smul.addr %s192, 8
      %s194 = scalar_lea.vmem %s2, %s193
      %s195 = smul.u32 32, %s16
      %v197 = vld [vmem:[%s188] sm:$0xff]
      %v198 = vld [vmem:[%s188 + $0x8] sm:$0xff]
      %v199 = vld [vmem:[%s188 + $0x10] sm:$0xff]
      %v200 = vld [vmem:[%s188 + $0x18] sm:$0xff]
      %v201 = vld [vmem:[%s188 + $0x20] sm:$0xff]
      %v202 = vld [vmem:[%s188 + $0x28] sm:$0xff]
      %v203 = vld [vmem:[%s188 + $0x30] sm:$0xff]
      %v204 = vld [vmem:[%s188 + $0x38] sm:$0xff]
      %v205 = vld [vmem:[%s188 + $0x40] sm:$0xff]
      %v206 = vld [vmem:[%s188 + $0x48] sm:$0xff]
      %v207 = vld [vmem:[%s188 + $0x50] sm:$0xff]
      %v208 = vld [vmem:[%s188 + $0x58] sm:$0xff]
      %v209 = vld [vmem:[%s188 + $0x60] sm:$0xff]
      %v210 = vld [vmem:[%s188 + $0x68] sm:$0xff]
      %v211 = vld [vmem:[%s188 + $0x70] sm:$0xff]
      %v212 = vld [vmem:[%s188 + $0x78] sm:$0xff]
      %v213 = vld [vmem:[%s188 + $0x80] sm:$0xff]
      %v214 = vld [vmem:[%s188 + $0x88] sm:$0xff]
      %v215 = vld [vmem:[%s188 + $0x90] sm:$0xff]
      %v216 = vld [vmem:[%s188 + $0x98] sm:$0xff]
      %v217 = vld [vmem:[%s188 + $0xa0] sm:$0xff]
      %v218 = vld [vmem:[%s188 + $0xa8] sm:$0xff]
      %v219 = vld [vmem:[%s188 + $0xb0] sm:$0xff]
      %v220 = vld [vmem:[%s188 + $0xb8] sm:$0xff]
      %v221 = vld [vmem:[%s188 + $0xc0] sm:$0xff]
      %v222 = vld [vmem:[%s188 + $0xc8] sm:$0xff]
      %v223 = vld [vmem:[%s188 + $0xd0] sm:$0xff]
      %v224 = vld [vmem:[%s188 + $0xd8] sm:$0xff]
      %v225 = vld [vmem:[%s188 + $0xe0] sm:$0xff]
      %v226 = vld [vmem:[%s188 + $0xe8] sm:$0xff]
      %v227 = vld [vmem:[%s188 + $0xf0] sm:$0xff]
      %v228 = vld [vmem:[%s188 + $0xf8] sm:$0xff]
      %v229 = vpack.c.bf16 %v198, %v197
      %v230 = vpack.c.bf16 %v200, %v199
      %v231 = vpack.c.bf16 %v202, %v201
      %v232 = vpack.c.bf16 %v204, %v203
      %v233 = vpack.c.bf16 %v206, %v205
      %v234 = vpack.c.bf16 %v208, %v207
      %v235 = vpack.c.bf16 %v210, %v209
      %v236 = vpack.c.bf16 %v212, %v211
      %v237 = vpack.c.bf16 %v214, %v213
      %v238 = vpack.c.bf16 %v216, %v215
      %v239 = vpack.c.bf16 %v218, %v217
      %v240 = vpack.c.bf16 %v220, %v219
      %v241 = vpack.c.bf16 %v222, %v221
      %v242 = vpack.c.bf16 %v224, %v223
      %v243 = vpack.c.bf16 %v226, %v225
      %v244 = vpack.c.bf16 %v228, %v227
      %v245 = vld [vmem:[%s1] sm:$0xf]
      %v246 = vld [vmem:[%s1 + $0x4] sm:$0xf]
      %v247 = vld [vmem:[%s1 + $0x8] sm:$0xf]
      %v248 = vld [vmem:[%s1 + $0xc] sm:$0xf]
      %v249 = vld [vmem:[%s1 + $0x10] sm:$0xf]
      %v250 = vld [vmem:[%s1 + $0x14] sm:$0xf]
      %v251 = vld [vmem:[%s1 + $0x18] sm:$0xf]
      %v252 = vld [vmem:[%s1 + $0x1c] sm:$0xf]
      %v253 = vld [vmem:[%s1 + $0x20] sm:$0xf]
      %v254 = vld [vmem:[%s1 + $0x24] sm:$0xf]
      %v255 = vld [vmem:[%s1 + $0x28] sm:$0xf]
      %v256 = vld [vmem:[%s1 + $0x2c] sm:$0xf]
      %v257 = vld [vmem:[%s1 + $0x30] sm:$0xf]
      %v258 = vld [vmem:[%s1 + $0x34] sm:$0xf]
      %v259 = vld [vmem:[%s1 + $0x38] sm:$0xf]
      %v260 = vld [vmem:[%s1 + $0x3c] sm:$0xf]
      %v277 = vunpack.c.l.b16 %v245
      %v278 = vunpack.c.l.b16 %v246
      %v279 = vunpack.c.l.b16 %v247
      %v280 = vunpack.c.l.b16 %v248
      %v281 = vunpack.c.l.b16 %v249
      %v282 = vunpack.c.l.b16 %v250
      %v283 = vunpack.c.l.b16 %v251
      %v284 = vunpack.c.l.b16 %v252
      %v285 = vunpack.c.l.b16 %v253
      %v286 = vunpack.c.l.b16 %v254
      %v287 = vunpack.c.l.b16 %v255
      %v288 = vunpack.c.l.b16 %v256
      %v289 = vunpack.c.l.b16 %v257
      %v290 = vunpack.c.l.b16 %v258
      %v291 = vunpack.c.l.b16 %v259
      %v292 = vunpack.c.l.b16 %v260
      %v293 = vpack.c.b16 %v278, %v277
      %v294 = vpack.c.b16 %v280, %v279
      %v295 = vpack.c.b16 %v282, %v281
      %v296 = vpack.c.b16 %v284, %v283
      %v297 = vpack.c.b16 %v286, %v285
      %v298 = vpack.c.b16 %v288, %v287
      %v299 = vpack.c.b16 %v290, %v289
      %v300 = vpack.c.b16 %v292, %v291
      %309 = vmatprep.subr.bf16.mxu0 0
      %310 = vmatpush1.bf16.msra.mxu0 %v300
      %311 = vmatprep.subr.bf16.mxu0 0
      %312 = vmatpush1.bf16.msra.mxu0 %v299
      %313 = vmatprep.subr.bf16.mxu0 0
      %314 = vmatpush1.bf16.msra.mxu0 %v298
      %315 = vmatprep.subr.bf16.mxu0 0
      %316 = vmatpush1.bf16.msra.mxu0 %v297
      %317 = vmatprep.subr.bf16.mxu0 0
      %318 = vmatpush1.bf16.msra.mxu0 %v296
      %319 = vmatprep.subr.bf16.mxu0 0
      %320 = vmatpush1.bf16.msra.mxu0 %v295
      %321 = vmatprep.subr.bf16.mxu0 0
      %322 = vmatpush1.bf16.msra.mxu0 %v294
      %323 = vmatprep.subr.bf16.mxu0 0
      %324 = vmatpush1.bf16.msra.mxu0 %v293
      %325 = vmatprep.subr.bf16.mxu0 0
      %326 = vmatpush2.bf16.msra.mxu0 0
      %327 = vmatprep.subr.bf16.mxu0 0
      %328 = vmatpush2.bf16.msra.mxu0 0
      %329 = vmatprep.subr.bf16.mxu0 0
      %330 = vmatpush2.bf16.msra.mxu0 0
      %331 = vmatprep.subr.bf16.mxu0 0
      %332 = vmatpush2.bf16.msra.mxu0 0
      %333 = vmatprep.subr.bf16.mxu0 0
      %334 = vmatpush2.bf16.msra.mxu0 0
      %335 = vmatprep.subr.bf16.mxu0 0
      %336 = vmatpush2.bf16.msra.mxu0 0
      %337 = vmatprep.subr.bf16.mxu0 0
      %338 = vmatpush2.bf16.msra.mxu0 0
      %339 = vmatprep.subr.bf16.mxu0 0
      %340 = vmatpush2.bf16.msra.mxu0 0
      %341 = vmatprep.mubr.bf16.mxu0 0
      %342 = vmatmul.mubr.bf16.gmra.mxu0 %v229
      %v343 = vpop.f32.mrf.mxu0
      %v344 = vadd.f32 0.0, %v343
      %v345 = vpop.f32.mrf.mxu0
      %v346 = vpop.f32.mrf.mxu0
      %v347 = vadd.f32 0.0, %v346
      %v348 = vpop.f32.mrf.mxu0
      %349 = vmatprep.mubr.bf16.mxu0 0
      %350 = vmatmul.mubr.bf16.gmra.mxu0 %v230
      %v351 = vpop.f32.mrf.mxu0
      %v352 = vadd.f32 0.0, %v351
      %v353 = vpop.f32.mrf.mxu0
      %v354 = vpop.f32.mrf.mxu0
      %v355 = vadd.f32 0.0, %v354
      %v356 = vpop.f32.mrf.mxu0
      %357 = vmatprep.mubr.bf16.mxu0 0
      %358 = vmatmul.mubr.bf16.gmra.mxu0 %v231
      %v359 = vpop.f32.mrf.mxu0
      %v360 = vadd.f32 0.0, %v359
      %v361 = vpop.f32.mrf.mxu0
      %v362 = vpop.f32.mrf.mxu0
      %v363 = vadd.f32 0.0, %v362
      %v364 = vpop.f32.mrf.mxu0
      %365 = vmatprep.mubr.bf16.mxu0 0
      %366 = vmatmul.mubr.bf16.gmra.mxu0 %v232
      %v367 = vpop.f32.mrf.mxu0
      %v368 = vadd.f32 0.0, %v367
      %v369 = vpop.f32.mrf.mxu0
      %v370 = vpop.f32.mrf.mxu0
      %v371 = vadd.f32 0.0, %v370
      %v372 = vpop.f32.mrf.mxu0
      %373 = vmatprep.mubr.bf16.mxu0 0
      %374 = vmatmul.mubr.bf16.gmra.mxu0 %v233
      %v375 = vpop.f32.mrf.mxu0
      %v376 = vadd.f32 0.0, %v375
      %v377 = vpop.f32.mrf.mxu0
      %v378 = vpop.f32.mrf.mxu0
      %v379 = vadd.f32 0.0, %v378
      %v380 = vpop.f32.mrf.mxu0
      %381 = vmatprep.mubr.bf16.mxu0 0
      %382 = vmatmul.mubr.bf16.gmra.mxu0 %v234
      %v383 = vpop.f32.mrf.mxu0
      %v384 = vadd.f32 0.0, %v383
      %v385 = vpop.f32.mrf.mxu0
      %v386 = vpop.f32.mrf.mxu0
      %v387 = vadd.f32 0.0, %v386
      %v388 = vpop.f32.mrf.mxu0
      %389 = vmatprep.mubr.bf16.mxu0 0
      %390 = vmatmul.mubr.bf16.gmra.mxu0 %v235
      %v391 = vpop.f32.mrf.mxu0
      %v392 = vadd.f32 0.0, %v391
      %v393 = vpop.f32.mrf.mxu0
      %v394 = vpop.f32.mrf.mxu0
      %v395 = vadd.f32 0.0, %v394
      %v396 = vpop.f32.mrf.mxu0
      %397 = vmatprep.mubr.bf16.mxu0 0
      %398 = vmatmul.mubr.bf16.gmra.mxu0 %v236
      %v399 = vpop.f32.mrf.mxu0
      %v400 = vadd.f32 0.0, %v399
      %v401 = vpop.f32.mrf.mxu0
      %v402 = vpop.f32.mrf.mxu0
      %v403 = vadd.f32 0.0, %v402
      %v404 = vpop.f32.mrf.mxu0
      %405 = vmatprep.mubr.bf16.mxu0 0
      %406 = vmatmul.mubr.bf16.gmra.mxu0 %v237
      %v407 = vpop.f32.mrf.mxu0
      %v408 = vadd.f32 0.0, %v407
      %v409 = vpop.f32.mrf.mxu0
      %v410 = vpop.f32.mrf.mxu0
      %v411 = vadd.f32 0.0, %v410
      %v412 = vpop.f32.mrf.mxu0
      %413 = vmatprep.mubr.bf16.mxu0 0
      %414 = vmatmul.mubr.bf16.gmra.mxu0 %v238
      %v415 = vpop.f32.mrf.mxu0
      %v416 = vadd.f32 0.0, %v415
      %v417 = vpop.f32.mrf.mxu0
      %v418 = vpop.f32.mrf.mxu0
      %v419 = vadd.f32 0.0, %v418
      %v420 = vpop.f32.mrf.mxu0
      %421 = vmatprep.mubr.bf16.mxu0 0
      %422 = vmatmul.mubr.bf16.gmra.mxu0 %v239
      %v423 = vpop.f32.mrf.mxu0
      %v424 = vadd.f32 0.0, %v423
      %v425 = vpop.f32.mrf.mxu0
      %v426 = vpop.f32.mrf.mxu0
      %v427 = vadd.f32 0.0, %v426
      %v428 = vpop.f32.mrf.mxu0
      %429 = vmatprep.mubr.bf16.mxu0 0
      %430 = vmatmul.mubr.bf16.gmra.mxu0 %v240
      %v431 = vpop.f32.mrf.mxu0
      %v432 = vadd.f32 0.0, %v431
      %v433 = vpop.f32.mrf.mxu0
      %v434 = vpop.f32.mrf.mxu0
      %v435 = vadd.f32 0.0, %v434
      %v436 = vpop.f32.mrf.mxu0
      %437 = vmatprep.mubr.bf16.mxu0 0
      %438 = vmatmul.mubr.bf16.gmra.mxu0 %v241
      %v439 = vpop.f32.mrf.mxu0
      %v440 = vadd.f32 0.0, %v439
      %v441 = vpop.f32.mrf.mxu0
      %v442 = vpop.f32.mrf.mxu0
      %v443 = vadd.f32 0.0, %v442
      %v444 = vpop.f32.mrf.mxu0
      %445 = vmatprep.mubr.bf16.mxu0 0
      %446 = vmatmul.mubr.bf16.gmra.mxu0 %v242
      %v447 = vpop.f32.mrf.mxu0
      %v448 = vadd.f32 0.0, %v447
      %v449 = vpop.f32.mrf.mxu0
      %v450 = vpop.f32.mrf.mxu0
      %v451 = vadd.f32 0.0, %v450
      %v452 = vpop.f32.mrf.mxu0
      %453 = vmatprep.mubr.bf16.mxu0 0
      %454 = vmatmul.mubr.bf16.gmra.mxu0 %v243
      %v455 = vpop.f32.mrf.mxu0
      %v456 = vadd.f32 0.0, %v455
      %v457 = vpop.f32.mrf.mxu0
      %v458 = vpop.f32.mrf.mxu0
      %v459 = vadd.f32 0.0, %v458
      %v460 = vpop.f32.mrf.mxu0
      %461 = vmatprep.mubr.bf16.mxu0 0
      %462 = vmatmul.mubr.bf16.gmra.mxu0 %v244
      %v463 = vpop.f32.mrf.mxu0
      %v464 = vadd.f32 0.0, %v463
      %v465 = vpop.f32.mrf.mxu0
      %v466 = vpop.f32.mrf.mxu0
      %v467 = vadd.f32 0.0, %v466
      %v468 = vpop.f32.mrf.mxu0
      %469 = vdwg.mxu0
      %470 = vst [vmem:[%s194] sm:$0xff] %v344
      %471 = vst [vmem:[%s194 + $0x8] sm:$0xff] %v347
      %472 = vst [vmem:[%s194 + $0x10] sm:$0xff] %v352
      %473 = vst [vmem:[%s194 + $0x18] sm:$0xff] %v355
      %474 = vst [vmem:[%s194 + $0x20] sm:$0xff] %v360
      %475 = vst [vmem:[%s194 + $0x28] sm:$0xff] %v363
      %476 = vst [vmem:[%s194 + $0x30] sm:$0xff] %v368
      %477 = vst [vmem:[%s194 + $0x38] sm:$0xff] %v371
      %478 = vst [vmem:[%s194 + $0x40] sm:$0xff] %v376
      %479 = vst [vmem:[%s194 + $0x48] sm:$0xff] %v379
      %480 = vst [vmem:[%s194 + $0x50] sm:$0xff] %v384
      %481 = vst [vmem:[%s194 + $0x58] sm:$0xff] %v387
      %482 = vst [vmem:[%s194 + $0x60] sm:$0xff] %v392
      %483 = vst [vmem:[%s194 + $0x68] sm:$0xff] %v395
      %484 = vst [vmem:[%s194 + $0x70] sm:$0xff] %v400
      %485 = vst [vmem:[%s194 + $0x78] sm:$0xff] %v403
      %486 = vst [vmem:[%s194 + $0x80] sm:$0xff] %v408
      %487 = vst [vmem:[%s194 + $0x88] sm:$0xff] %v411
      %488 = vst [vmem:[%s194 + $0x90] sm:$0xff] %v416
      %489 = vst [vmem:[%s194 + $0x98] sm:$0xff] %v419
      %490 = vst [vmem:[%s194 + $0xa0] sm:$0xff] %v424
      %491 = vst [vmem:[%s194 + $0xa8] sm:$0xff] %v427
      %492 = vst [vmem:[%s194 + $0xb0] sm:$0xff] %v432
      %493 = vst [vmem:[%s194 + $0xb8] sm:$0xff] %v435
      %494 = vst [vmem:[%s194 + $0xc0] sm:$0xff] %v440
      %495 = vst [vmem:[%s194 + $0xc8] sm:$0xff] %v443
      %496 = vst [vmem:[%s194 + $0xd0] sm:$0xff] %v448
      %497 = vst [vmem:[%s194 + $0xd8] sm:$0xff] %v451
      %498 = vst [vmem:[%s194 + $0xe0] sm:$0xff] %v456
      %499 = vst [vmem:[%s194 + $0xe8] sm:$0xff] %v459
      %500 = vst [vmem:[%s194 + $0xf0] sm:$0xff] %v464
      %501 = vst [vmem:[%s194 + $0xf8] sm:$0xff] %v467
      %p502 = scmp.eq.s32.totalorder %s16, 0
      // Predicated region
      $region29: #{bottleneck_forward.7} parent=27 // pred_check
        %p503 = pneg %p502
      $region30: #{bottleneck_forward.7} parent=27 // pred_check_branch
        %505 = sbr.rel (%p503) target = $region32
      $region31: #{bottleneck_forward.7} parent=27 // pred_region
        %506 = vst [vmem:[%s3] sm:$0x1] 0.0
        %507 = vst [vmem:[%s4] sm:$0x1] 0.0
      $region32: #{bottleneck_forward.7} parent=27 // pred_fallthru
        _
      %v508 = vld [vmem:[%s3] sm:$0x1]
      %v509 = vadd.f32 %v344, %v347
      %v510 = vadd.f32 %v509, %v352
      %v511 = vadd.f32 %v510, %v355
      %v512 = vadd.f32 %v511, %v360
      %v513 = vadd.f32 %v512, %v363
      %v514 = vadd.f32 %v513, %v368
      %v515 = vadd.f32 %v514, %v371
      %v516 = vadd.f32 %v515, %v376
      %v517 = vadd.f32 %v516, %v379
      %v518 = vadd.f32 %v517, %v384
      %v519 = vadd.f32 %v518, %v387
      %v520 = vadd.f32 %v519, %v392
      %v521 = vadd.f32 %v520, %v395
      %v522 = vadd.f32 %v521, %v400
      %v523 = vadd.f32 %v522, %v403
      %v524 = vadd.f32 %v523, %v408
      %v525 = vadd.f32 %v524, %v411
      %v526 = vadd.f32 %v525, %v416
      %v527 = vadd.f32 %v526, %v419
      %v528 = vadd.f32 %v527, %v424
      %v529 = vadd.f32 %v528, %v427
      %v530 = vadd.f32 %v529, %v432
      %v531 = vadd.f32 %v530, %v435
      %v532 = vadd.f32 %v531, %v440
      %v533 = vadd.f32 %v532, %v443
      %v534 = vadd.f32 %v533, %v448
      %v535 = vadd.f32 %v534, %v451
      %v536 = vadd.f32 %v535, %v456
      %v537 = vadd.f32 %v536, %v459
      %v538 = vadd.f32 %v537, %v464
      %v539 = vadd.f32 %v538, %v467
      %v540 = vrot.slane %v539, 4
      %v541 = vadd.f32 %v539, %v540
      %v542 = vrot.slane %v541, 2
      %v543 = vadd.f32 %v541, %v542
      %v544 = vrot.slane %v543, 1
      %v545 = vadd.f32 %v543, %v544
      %v546 = vadd.f32 %v508, %v545
      %547 = vst [vmem:[%s3] sm:$0x1] %v546
      %v548 = vld [vmem:[%s4] sm:$0x1]
      %v549 = vmul.f32 %v344, %v344
      %v550 = vmul.f32 %v347, %v347
      %v551 = vmul.f32 %v352, %v352
      %v552 = vmul.f32 %v355, %v355
      %v553 = vmul.f32 %v360, %v360
      %v554 = vmul.f32 %v363, %v363
      %v555 = vmul.f32 %v368, %v368
      %v556 = vmul.f32 %v371, %v371
      %v557 = vmul.f32 %v376, %v376
      %v558 = vmul.f32 %v379, %v379
      %v559 = vmul.f32 %v384, %v384
      %v560 = vmul.f32 %v387, %v387
      %v561 = vmul.f32 %v392, %v392
      %v562 = vmul.f32 %v395, %v395
      %v563 = vmul.f32 %v400, %v400
      %v564 = vmul.f32 %v403, %v403
      %v565 = vmul.f32 %v408, %v408
      %v566 = vmul.f32 %v411, %v411
      %v567 = vmul.f32 %v416, %v416
      %v568 = vmul.f32 %v419, %v419
      %v569 = vmul.f32 %v424, %v424
      %v570 = vmul.f32 %v427, %v427
      %v571 = vmul.f32 %v432, %v432
      %v572 = vmul.f32 %v435, %v435
      %v573 = vmul.f32 %v440, %v440
      %v574 = vmul.f32 %v443, %v443
      %v575 = vmul.f32 %v448, %v448
      %v576 = vmul.f32 %v451, %v451
      %v577 = vmul.f32 %v456, %v456
      %v578 = vmul.f32 %v459, %v459
      %v579 = vmul.f32 %v464, %v464
      %v580 = vmul.f32 %v467, %v467
      %v581 = vadd.f32 %v549, %v550
      %v582 = vadd.f32 %v581, %v551
      %v583 = vadd.f32 %v582, %v552
      %v584 = vadd.f32 %v583, %v553
      %v585 = vadd.f32 %v584, %v554
      %v586 = vadd.f32 %v585, %v555
      %v587 = vadd.f32 %v586, %v556
      %v588 = vadd.f32 %v587, %v557
      %v589 = vadd.f32 %v588, %v558
      %v590 = vadd.f32 %v589, %v559
      %v591 = vadd.f32 %v590, %v560
      %v592 = vadd.f32 %v591, %v561
      %v593 = vadd.f32 %v592, %v562
      %v594 = vadd.f32 %v593, %v563
      %v595 = vadd.f32 %v594, %v564
      %v596 = vadd.f32 %v595, %v565
      %v597 = vadd.f32 %v596, %v566
      %v598 = vadd.f32 %v597, %v567
      %v599 = vadd.f32 %v598, %v568
      %v600 = vadd.f32 %v599, %v569
      %v601 = vadd.f32 %v600, %v570
      %v602 = vadd.f32 %v601, %v571
      %v603 = vadd.f32 %v602, %v572
      %v604 = vadd.f32 %v603, %v573
      %v605 = vadd.f32 %v604, %v574
      %v606 = vadd.f32 %v605, %v575
      %v607 = vadd.f32 %v606, %v576
      %v608 = vadd.f32 %v607, %v577
      %v609 = vadd.f32 %v608, %v578
      %v610 = vadd.f32 %v609, %v579
      %v611 = vadd.f32 %v610, %v580
      %v612 = vrot.slane %v611, 4
      %v613 = vadd.f32 %v611, %v612
      %v614 = vrot.slane %v613, 2
      %v615 = vadd.f32 %v613, %v614
      %v616 = vrot.slane %v615, 1
      %v617 = vadd.f32 %v615, %v616
      %v618 = vadd.f32 %v548, %v617
      %619 = vst [vmem:[%s4] sm:$0x1] %v618
      %s620 = smul.u32 32, %s16
      %p621 = scmp.lt.s32.totalorder %s620, 63
      %s622 = scalar_select %p621, %s620, 63
      %s623 = smul.addr %s622, 8
      %s624 = scalar_lea.vmem %s2, %s623
      // Predicated region
      $region33: #{bottleneck_forward.7} parent=27 // pred_check
        %p625 = pneg %p81
      $region34: #{bottleneck_forward.7} parent=27 // pred_check_branch
        %627 = sbr.rel (%p625) target = $region36
      $region35: #{bottleneck_forward.7} parent=27 // pred_region
        %s628 = smul.u32 32, %s16
      $region36: #{bottleneck_forward.7} parent=27 // pred_fallthru
        _
      // Predicated region
      $region37: #{bottleneck_forward.7} parent=27 // pred_check
        %p629 = pneg %p102
      $region38: #{bottleneck_forward.7} parent=27 // pred_check_branch
        %631 = sbr.rel (%p629) target = $region40
      $region39: #{bottleneck_forward.7} parent=27 // pred_region
        _
      $region40: #{bottleneck_forward.7} parent=27 // pred_fallthru
        _
      // Predicated region
      $region41: #{bottleneck_forward.7} parent=27 // pred_check
        %p632 = pneg %p123
      $region42: #{bottleneck_forward.7} parent=27 // pred_check_branch
        %634 = sbr.rel (%p632) target = $region44
      $region43: #{bottleneck_forward.7} parent=27 // pred_region
        _
      $region44: #{bottleneck_forward.7} parent=27 // pred_fallthru
        _
      // Predicated region
      $region45: #{bottleneck_forward.7} parent=27 // pred_check
        %p635 = pneg %p102
      $region46: #{bottleneck_forward.7} parent=27 // pred_check_branch
        %637 = sbr.rel (%p635) target = $region48
      $region47: #{bottleneck_forward.7} parent=27 // pred_region
        _
      $region48: #{bottleneck_forward.7} parent=27 // pred_fallthru
        _
      // Predicated region
      $region49: #{bottleneck_forward.7} parent=27 // pred_check
        %p638 = pneg %p123
      $region50: #{bottleneck_forward.7} parent=27 // pred_check_branch
        %640 = sbr.rel (%p638) target = $region52
      $region51: #{bottleneck_forward.7} parent=27 // pred_region
        _
      $region52: #{bottleneck_forward.7} parent=27 // pred_fallthru
        _
    $region28: #{bottleneck_forward.7} parent=5 // pred_fallthru
      _
    %p641 = scmp.le.s32.totalorder 2, %s11
    // Predicated region
    $region53: #{bottleneck_forward.7} parent=5 // pred_check
      %p642 = pneg %p641
    $region54: #{bottleneck_forward.7} parent=5 // pred_check_branch
      %644 = sbr.rel (%p642) target = $region56
    $region55: #{bottleneck_forward.7} parent=5 // pred_region
      %s645 = ssub.s32 %s11, 2
      // Predicated region
      $region57: #{bottleneck_forward.7} parent=55 // pred_check
        %p646 = pneg %p87
      $region58: #{bottleneck_forward.7} parent=55 // pred_check_branch
        %648 = sbr.rel (%p646) target = $region60
      $region59: #{bottleneck_forward.7} parent=55 // pred_region
        %s649 = smul.u32 32, %s17
        %p650 = scmp.lt.s32.totalorder %s649, 63
        %s651 = scalar_select %p650, %s649, 63
        %s652 = smul.addr %s651, 8
        %s653 = scalar_lea.vmem %s2, %s652
      $region60: #{bottleneck_forward.7} parent=55 // pred_fallthru
        _
    $region56: #{bottleneck_forward.7} parent=5 // pred_fallthru
      _
  $region6: #{bottleneck_forward.7} parent=0 // loop_footer
    %s15 = sadd.s32 1, %s11
  $region7: #{bottleneck_forward.7} parent=0 // loop_footer_branch
    %10 = sbr.rel target = $region3
  $region8: #{bottleneck_forward.7} parent=0 // loop_exit
    _

// kernel: bottleneck_forward.13
$region0: #{bottleneck_forward.13}
  #allocation0 [shape = 'u32[]', space=smem, size = 0x4, offset = 0x4, fixed_abs, tag = 'smem constant byte address 0x4 - core index']
  #allocation1 [shape = 'u32[144,128]{1,0:T(1,128)}', space=vmem, size = 0x12000, scoped, tag = 'internal scratch']
  %s0 = inlined_call_operand.vmem [shape: f32[512,128], index: 0, kind: input, shape index: {}]
  %s1 = inlined_call_operand.vmem [shape: f32[1,128], index: 1, kind: input, shape index: {}]
  %s2 = inlined_call_operand.vmem [shape: f32[1,128], index: 2, kind: input, shape index: {}]
  %s3 = inlined_call_operand.vmem [shape: f32[512,128], index: 3, kind: input, shape index: {}]
  %s4 = inlined_call_operand.vmem [shape: f32[1,128], index: 4, kind: input, shape index: {}]
  %s5 = inlined_call_operand.vmem [shape: f32[1,128], index: 5, kind: input, shape index: {}]
  %s6 = inlined_call_operand.vmem [shape: f32[512,128], index: 6, kind: output, shape index: {}]
  %s7 = sld [smem:[#allocation0]]
  $region57: #{bottleneck_forward.13} parent=0
    _
  %s9 = ssub.s32 1, %s7
  %s10 = scalar_select 0, %s9, %s7
  loop: start=0, step=1, limit=4
  $region2: #{bottleneck_forward.13} parent=0 // loop_pre_header
    _
  $region3: #{bottleneck_forward.13} parent=0 // loop_header
    %s12 = sphi 0, %s16
    %p13 = scmp.ge.s32.totalorder %s12, 4
    %s22 = sphi 0, %s24
    %s25 = sphi 0, %s22
    %s26 = sphi 0, %s25
    %s42 = sphi 0, %s26
    %s46 = sphi 0, %s46
    %s48 = sphi 0, %s46
    %s49 = sphi 0, %s48
    %s63 = sphi 0, %s49
    %s67 = sphi 0, %s67
    %s69 = sphi 0, %s67
    %s70 = sphi 0, %s69
    %s84 = sphi 0, %s70
    %s90 = sphi 0, %s92
    %s93 = sphi 0, %s90
    %s94 = sphi 0, %s93
    %s110 = sphi 0, %s94
    %s114 = sphi 0, %s114
    %s116 = sphi 0, %s114
    %s117 = sphi 0, %s116
    %s131 = sphi 0, %s117
    %s135 = sphi 0, %s135
    %s137 = sphi 0, %s135
    %s138 = sphi 0, %s137
    %s152 = sphi 0, %s138
    %s158 = sphi 0, %s160
    %s161 = sphi 0, %s158
    %s162 = sphi 0, %s161
    %s178 = sphi 0, %s162
  $region4: #{bottleneck_forward.13} parent=0 // loop_header_branch
    %15 = sbr.rel (%p13) target = $region8
  $region5: #{bottleneck_forward.13} parent=0 // loop_body
    %s17 = ssub.s32 %s12, 1
    %s18 = ssub.s32 %s12, 2
    %s19 = sadd.s32 %s12, 1
    %s20 = ssub.s32 %s12, %s19
    %p21 = scmp.eq.s32.totalorder %s20, 0
    %s23 = sadd.s32 %s22, 1
    %s24 = scalar_select %p21, %s22, %s23
    %p27 = pneg %p21
    %p28 = scmp.eq.s32.totalorder %s12, 1
    %p29 = por %p27, %p28
    %p30 = scmp.ne.s32.totalorder %s22, %s25
    %p31 = scmp.eq.s32.totalorder %s12, 0
    %p32 = por %p30, %p31
    %p33 = scmp.ne.s32.totalorder %s22, %s25
    %p34 = scmp.eq.s32.totalorder %s17, 1
    %p35 = por %p33, %p34
    %p36 = scmp.ne.s32.totalorder %s25, %s26
    %p37 = scmp.eq.s32.totalorder %s17, 0
    %p38 = por %p36, %p37
    %p39 = scmp.ne.s32.totalorder %s25, %s26
    %p40 = scmp.eq.s32.totalorder %s18, 1
    %p41 = por %p39, %p40
    %p43 = scmp.ne.s32.totalorder %s26, %s42
    %p44 = scmp.eq.s32.totalorder %s18, 0
    %p45 = por %p43, %p44
    %s47 = sadd.s32 %s46, 1
    %p50 = scmp.eq.s32.totalorder %s12, 1
    %p51 = scmp.ne.s32.totalorder %s46, %s48
    %p52 = scmp.eq.s32.totalorder %s12, 0
    %p53 = por %p51, %p52
    %p54 = scmp.ne.s32.totalorder %s46, %s48
    %p55 = scmp.eq.s32.totalorder %s17, 1
    %p56 = por %p54, %p55
    %p57 = scmp.ne.s32.totalorder %s48, %s49
    %p58 = scmp.eq.s32.totalorder %s17, 0
    %p59 = por %p57, %p58
    %p60 = scmp.ne.s32.totalorder %s48, %s49
    %p61 = scmp.eq.s32.totalorder %s18, 1
    %p62 = por %p60, %p61
    %p64 = scmp.ne.s32.totalorder %s49, %s63
    %p65 = scmp.eq.s32.totalorder %s18, 0
    %p66 = por %p64, %p65
    %s68 = sadd.s32 %s67, 1
    %p71 = scmp.eq.s32.totalorder %s12, 1
    %p72 = scmp.ne.s32.totalorder %s67, %s69
    %p73 = scmp.eq.s32.totalorder %s12, 0
    %p74 = por %p72, %p73
    %p75 = scmp.ne.s32.totalorder %s67, %s69
    %p76 = scmp.eq.s32.totalorder %s17, 1
    %p77 = por %p75, %p76
    %p78 = scmp.ne.s32.totalorder %s69, %s70
    %p79 = scmp.eq.s32.totalorder %s17, 0
    %p80 = por %p78, %p79
    %p81 = scmp.ne.s32.totalorder %s69, %s70
    %p82 = scmp.eq.s32.totalorder %s18, 1
    %p83 = por %p81, %p82
    %p85 = scmp.ne.s32.totalorder %s70, %s84
    %p86 = scmp.eq.s32.totalorder %s18, 0
    %p87 = por %p85, %p86
    %s88 = ssub.s32 %s12, %s19
    %p89 = scmp.eq.s32.totalorder %s88, 0
    %s91 = sadd.s32 %s90, 1
    %s92 = scalar_select %p89, %s90, %s91
    %p95 = pneg %p89
    %p96 = scmp.eq.s32.totalorder %s12, 1
    %p97 = por %p95, %p96
    %p98 = scmp.ne.s32.totalorder %s90, %s93
    %p99 = scmp.eq.s32.totalorder %s12, 0
    %p100 = por %p98, %p99
    %p101 = scmp.ne.s32.totalorder %s90, %s93
    %p102 = scmp.eq.s32.totalorder %s17, 1
    %p103 = por %p101, %p102
    %p104 = scmp.ne.s32.totalorder %s93, %s94
    %p105 = scmp.eq.s32.totalorder %s17, 0
    %p106 = por %p104, %p105
    %p107 = scmp.ne.s32.totalorder %s93, %s94
    %p108 = scmp.eq.s32.totalorder %s18, 1
    %p109 = por %p107, %p108
    %p111 = scmp.ne.s32.totalorder %s94, %s110
    %p112 = scmp.eq.s32.totalorder %s18, 0
    %p113 = por %p111, %p112
    %s115 = sadd.s32 %s114, 1
    %p118 = scmp.eq.s32.totalorder %s12, 1
    %p119 = scmp.ne.s32.totalorder %s114, %s116
    %p120 = scmp.eq.s32.totalorder %s12, 0
    %p121 = por %p119, %p120
    %p122 = scmp.ne.s32.totalorder %s114, %s116
    %p123 = scmp.eq.s32.totalorder %s17, 1
    %p124 = por %p122, %p123
    %p125 = scmp.ne.s32.totalorder %s116, %s117
    %p126 = scmp.eq.s32.totalorder %s17, 0
    %p127 = por %p125, %p126
    %p128 = scmp.ne.s32.totalorder %s116, %s117
    %p129 = scmp.eq.s32.totalorder %s18, 1
    %p130 = por %p128, %p129
    %p132 = scmp.ne.s32.totalorder %s117, %s131
    %p133 = scmp.eq.s32.totalorder %s18, 0
    %p134 = por %p132, %p133
    %s136 = sadd.s32 %s135, 1
    %p139 = scmp.eq.s32.totalorder %s12, 1
    %p140 = scmp.ne.s32.totalorder %s135, %s137
    %p141 = scmp.eq.s32.totalorder %s12, 0
    %p142 = por %p140, %p141
    %p143 = scmp.ne.s32.totalorder %s135, %s137
    %p144 = scmp.eq.s32.totalorder %s17, 1
    %p145 = por %p143, %p144
    %p146 = scmp.ne.s32.totalorder %s137, %s138
    %p147 = scmp.eq.s32.totalorder %s17, 0
    %p148 = por %p146, %p147
    %p149 = scmp.ne.s32.totalorder %s137, %s138
    %p150 = scmp.eq.s32.totalorder %s18, 1
    %p151 = por %p149, %p150
    %p153 = scmp.ne.s32.totalorder %s138, %s152
    %p154 = scmp.eq.s32.totalorder %s18, 0
    %p155 = por %p153, %p154
    %s156 = ssub.s32 %s12, %s19
    %p157 = scmp.eq.s32.totalorder %s156, 0
    %s159 = sadd.s32 %s158, 1
    %s160 = scalar_select %p157, %s158, %s159
    %p163 = pneg %p157
    %p164 = scmp.eq.s32.totalorder %s12, 1
    %p165 = por %p163, %p164
    %p166 = scmp.ne.s32.totalorder %s158, %s161
    %p167 = scmp.eq.s32.totalorder %s12, 0
    %p168 = por %p166, %p167
    %p169 = scmp.ne.s32.totalorder %s158, %s161
    %p170 = scmp.eq.s32.totalorder %s17, 1
    %p171 = por %p169, %p170
    %p172 = scmp.ne.s32.totalorder %s161, %s162
    %p173 = scmp.eq.s32.totalorder %s17, 0
    %p174 = por %p172, %p173
    %p175 = scmp.ne.s32.totalorder %s161, %s162
    %p176 = scmp.eq.s32.totalorder %s18, 1
    %p177 = por %p175, %p176
    %p179 = scmp.ne.s32.totalorder %s162, %s178
    %p180 = scmp.eq.s32.totalorder %s18, 0
    %p181 = por %p179, %p180
    %p182 = scmp.le.s32.totalorder 1, %s12
    %p183 = scmp.lt.s32.totalorder %s12, 3
    %p184 = pnand %p182, %p183
    %p185 = pneg %p184
    // Predicated region
    $region9: #{bottleneck_forward.13} parent=5 // pred_check
      _
    $region10: #{bottleneck_forward.13} parent=5 // pred_check_branch
      %187 = sbr.rel (%p184) target = $region12
    $region11: #{bottleneck_forward.13} parent=5 // pred_region
      %s188 = ssub.s32 %s12, 1
      // Predicated region
      $region13: #{bottleneck_forward.13} parent=11 // pred_check
        %p189 = pneg %p59
      $region14: #{bottleneck_forward.13} parent=11 // pred_check_branch
        %191 = sbr.rel (%p189) target = $region16
      $region15: #{bottleneck_forward.13} parent=11 // pred_region
        _
      $region16: #{bottleneck_forward.13} parent=11 // pred_fallthru
        _
      // Predicated region
      $region17: #{bottleneck_forward.13} parent=11 // pred_check
        %p192 = pneg %p80
      $region18: #{bottleneck_forward.13} parent=11 // pred_check_branch
        %194 = sbr.rel (%p192) target = $region20
      $region19: #{bottleneck_forward.13} parent=11 // pred_region
        _
      $region20: #{bottleneck_forward.13} parent=11 // pred_fallthru
        _
      // Predicated region
      $region21: #{bottleneck_forward.13} parent=11 // pred_check
        %p195 = pneg %p127
      $region22: #{bottleneck_forward.13} parent=11 // pred_check_branch
        %197 = sbr.rel (%p195) target = $region24
      $region23: #{bottleneck_forward.13} parent=11 // pred_region
        _
      $region24: #{bottleneck_forward.13} parent=11 // pred_fallthru
        _
      // Predicated region
      $region25: #{bottleneck_forward.13} parent=11 // pred_check
        %p198 = pneg %p148
      $region26: #{bottleneck_forward.13} parent=11 // pred_check_branch
        %200 = sbr.rel (%p198) target = $region28
      $region27: #{bottleneck_forward.13} parent=11 // pred_region
        _
      $region28: #{bottleneck_forward.13} parent=11 // pred_fallthru
        _
    $region12: #{bottleneck_forward.13} parent=5 // pred_fallthru
      _
    %p201 = scmp.lt.s32.totalorder %s12, 2
    // Predicated region
    $region29: #{bottleneck_forward.13} parent=5 // pred_check
      %p202 = pneg %p201
    $region30: #{bottleneck_forward.13} parent=5 // pred_check_branch
      %204 = sbr.rel (%p202) target = $region32
    $region31: #{bottleneck_forward.13} parent=5 // pred_region
      // Predicated region
      $region33: #{bottleneck_forward.13} parent=31 // pred_check
        %p205 = pneg %p32
      $region34: #{bottleneck_forward.13} parent=31 // pred_check_branch
        %207 = sbr.rel (%p205) target = $region36
      $region35: #{bottleneck_forward.13} parent=31 // pred_region
        %s208 = smul.u32 32, %s12
        %p209 = scmp.lt.s32.totalorder %s208, 63
        %s210 = scalar_select %p209, %s208, 63
        %s211 = smul.addr %s210, 8
        %s212 = scalar_lea.vmem %s0, %s211
        %s213 = smul.u32 32, %s12
      $region36: #{bottleneck_forward.13} parent=31 // pred_fallthru
        _
      // Predicated region
      $region37: #{bottleneck_forward.13} parent=31 // pred_check
        %p214 = pneg %p100
      $region38: #{bottleneck_forward.13} parent=31 // pred_check_branch
        %216 = sbr.rel (%p214) target = $region40
      $region39: #{bottleneck_forward.13} parent=31 // pred_region
        %s217 = smul.u32 32, %s12
        %p218 = scmp.lt.s32.totalorder %s217, 63
        %s219 = scalar_select %p218, %s217, 63
        %s220 = smul.addr %s219, 8
        %s221 = scalar_lea.vmem %s3, %s220
        %s222 = smul.u32 32, %s12
      $region40: #{bottleneck_forward.13} parent=31 // pred_fallthru
        _
    $region32: #{bottleneck_forward.13} parent=5 // pred_fallthru
      _
    %p223 = scmp.le.s32.totalorder 1, %s12
    %p224 = scmp.lt.s32.totalorder %s12, 3
    %p225 = pnand %p223, %p224
    %p226 = pneg %p225
    // Predicated region
    $region41: #{bottleneck_forward.13} parent=5 // pred_check
      _
    $region42: #{bottleneck_forward.13} parent=5 // pred_check_branch
      %228 = sbr.rel (%p225) target = $region44
    $region43: #{bottleneck_forward.13} parent=5 // pred_region
      %s229 = ssub.s32 %s12, 1
      %s230 = smul.u32 32, %s17
      %p231 = scmp.lt.s32.totalorder %s230, 63
      %s232 = scalar_select %p231, %s230, 63
      %s233 = smul.addr %s232, 8
      %s234 = scalar_lea.vmem %s0, %s233
      %p235 = pneg %p38
      %p236 = pneg %p35
      %p237 = pneg %p59
      %p238 = pneg %p56
      %p239 = pneg %p80
      %p240 = pneg %p77
      %s241 = smul.u32 32, %s17
      %p242 = scmp.lt.s32.totalorder %s241, 63
      %s243 = scalar_select %p242, %s241, 63
      %s244 = smul.addr %s243, 8
      %s245 = scalar_lea.vmem %s3, %s244
      %p246 = pneg %p106
      %p247 = pneg %p103
      %p248 = pneg %p127
      %p249 = pneg %p124
      %p250 = pneg %p148
      %p251 = pneg %p145
      %p252 = pneg %p174
      %p253 = pneg %p171
      %s254 = smul.u32 32, %s17
      %p255 = scmp.lt.s32.totalorder %s254, 63
      %s256 = scalar_select %p255, %s254, 63
      %s257 = smul.addr %s256, 8
      %s258 = scalar_lea.vmem %s6, %s257
      %s259 = smul.u32 32, %s17
      %p260 = scmp.lt.s32.totalorder %s259, 63
      %s261 = scalar_select %p260, %s259, 63
      %s262 = smul.addr %s261, 8
      %s263 = scalar_lea.vmem %s0, %s262
      %s264 = smul.u32 32, %s17
      %s265 = smul.u32 32, %s17
      %p266 = scmp.lt.s32.totalorder %s265, 63
      %s267 = scalar_select %p266, %s265, 63
      %s268 = smul.addr %s267, 8
      %s269 = scalar_lea.vmem %s3, %s268
      %s270 = smul.u32 32, %s17
      %s271 = smul.u32 32, %s17
      %p272 = scmp.lt.s32.totalorder %s271, 63
      %s273 = scalar_select %p272, %s271, 63
      %s274 = smul.addr %s273, 8
      %s275 = scalar_lea.vmem %s6, %s274
      %s276 = smul.u32 32, %s17
      %v277 = vld [vmem:[%s263] sm:$0xff]
      %v278 = vld [vmem:[%s263 + $0x8] sm:$0xff]
      %v279 = vld [vmem:[%s263 + $0x10] sm:$0xff]
      %v280 = vld [vmem:[%s263 + $0x18] sm:$0xff]
      %v281 = vld [vmem:[%s263 + $0x20] sm:$0xff]
      %v282 = vld [vmem:[%s263 + $0x28] sm:$0xff]
      %v283 = vld [vmem:[%s263 + $0x30] sm:$0xff]
      %v284 = vld [vmem:[%s263 + $0x38] sm:$0xff]
      %v285 = vld [vmem:[%s263 + $0x40] sm:$0xff]
      %v286 = vld [vmem:[%s263 + $0x48] sm:$0xff]
      %v287 = vld [vmem:[%s263 + $0x50] sm:$0xff]
      %v288 = vld [vmem:[%s263 + $0x58] sm:$0xff]
      %v289 = vld [vmem:[%s263 + $0x60] sm:$0xff]
      %v290 = vld [vmem:[%s263 + $0x68] sm:$0xff]
      %v291 = vld [vmem:[%s263 + $0x70] sm:$0xff]
      %v292 = vld [vmem:[%s263 + $0x78] sm:$0xff]
      %v293 = vld [vmem:[%s263 + $0x80] sm:$0xff]
      %v294 = vld [vmem:[%s263 + $0x88] sm:$0xff]
      %v295 = vld [vmem:[%s263 + $0x90] sm:$0xff]
      %v296 = vld [vmem:[%s263 + $0x98] sm:$0xff]
      %v297 = vld [vmem:[%s263 + $0xa0] sm:$0xff]
      %v298 = vld [vmem:[%s263 + $0xa8] sm:$0xff]
      %v299 = vld [vmem:[%s263 + $0xb0] sm:$0xff]
      %v300 = vld [vmem:[%s263 + $0xb8] sm:$0xff]
      %v301 = vld [vmem:[%s263 + $0xc0] sm:$0xff]
      %v302 = vld [vmem:[%s263 + $0xc8] sm:$0xff]
      %v303 = vld [vmem:[%s263 + $0xd0] sm:$0xff]
      %v304 = vld [vmem:[%s263 + $0xd8] sm:$0xff]
      %v305 = vld [vmem:[%s263 + $0xe0] sm:$0xff]
      %v306 = vld [vmem:[%s263 + $0xe8] sm:$0xff]
      %v307 = vld [vmem:[%s263 + $0xf0] sm:$0xff]
      %v308 = vld [vmem:[%s263 + $0xf8] sm:$0xff]
      %v309 = vld [vmem:[%s1] sm:$0x1]
      %v311 = vlaneseq
      %v312 = vshrl.u32 %v311, 7
      %v313 = vsub.s32 0, %v312
      %v314 = vrot.slane %v309, %v313
      %v316 = vmul.f32 %v277, %v314
      %v317 = vmul.f32 %v278, %v314
      %v318 = vmul.f32 %v279, %v314
      %v319 = vmul.f32 %v280, %v314
      %v320 = vmul.f32 %v281, %v314
      %v321 = vmul.f32 %v282, %v314
      %v322 = vmul.f32 %v283, %v314
      %v323 = vmul.f32 %v284, %v314
      %v324 = vmul.f32 %v285, %v314
      %v325 = vmul.f32 %v286, %v314
      %v326 = vmul.f32 %v287, %v314
      %v327 = vmul.f32 %v288, %v314
      %v328 = vmul.f32 %v289, %v314
      %v329 = vmul.f32 %v290, %v314
      %v330 = vmul.f32 %v291, %v314
      %v331 = vmul.f32 %v292, %v314
      %v332 = vmul.f32 %v293, %v314
      %v333 = vmul.f32 %v294, %v314
      %v334 = vmul.f32 %v295, %v314
      %v335 = vmul.f32 %v296, %v314
      %v336 = vmul.f32 %v297, %v314
      %v337 = vmul.f32 %v298, %v314
      %v338 = vmul.f32 %v299, %v314
      %v339 = vmul.f32 %v300, %v314
      %v340 = vmul.f32 %v301, %v314
      %v341 = vmul.f32 %v302, %v314
      %v342 = vmul.f32 %v303, %v314
      %v343 = vmul.f32 %v304, %v314
      %v344 = vmul.f32 %v305, %v314
      %v345 = vmul.f32 %v306, %v314
      %v346 = vmul.f32 %v307, %v314
      %v347 = vmul.f32 %v308, %v314
      %v348 = vld [vmem:[%s2] sm:$0x1]
      %v350 = vlaneseq
      %v351 = vshrl.u32 %v350, 7
      %v352 = vsub.s32 0, %v351
      %v353 = vrot.slane %v348, %v352
      %v355 = vadd.f32 %v316, %v353
      %v356 = vadd.f32 %v317, %v353
      %v357 = vadd.f32 %v318, %v353
      %v358 = vadd.f32 %v319, %v353
      %v359 = vadd.f32 %v320, %v353
      %v360 = vadd.f32 %v321, %v353
      %v361 = vadd.f32 %v322, %v353
      %v362 = vadd.f32 %v323, %v353
      %v363 = vadd.f32 %v324, %v353
      %v364 = vadd.f32 %v325, %v353
      %v365 = vadd.f32 %v326, %v353
      %v366 = vadd.f32 %v327, %v353
      %v367 = vadd.f32 %v328, %v353
      %v368 = vadd.f32 %v329, %v353
      %v369 = vadd.f32 %v330, %v353
      %v370 = vadd.f32 %v331, %v353
      %v371 = vadd.f32 %v332, %v353
      %v372 = vadd.f32 %v333, %v353
      %v373 = vadd.f32 %v334, %v353
      %v374 = vadd.f32 %v335, %v353
      %v375 = vadd.f32 %v336, %v353
      %v376 = vadd.f32 %v337, %v353
      %v377 = vadd.f32 %v338, %v353
      %v378 = vadd.f32 %v339, %v353
      %v379 = vadd.f32 %v340, %v353
      %v380 = vadd.f32 %v341, %v353
      %v381 = vadd.f32 %v342, %v353
      %v382 = vadd.f32 %v343, %v353
      %v383 = vadd.f32 %v344, %v353
      %v384 = vadd.f32 %v345, %v353
      %v385 = vadd.f32 %v346, %v353
      %v386 = vadd.f32 %v347, %v353
      %v387 = vld [vmem:[%s269] sm:$0xff]
      %v388 = vld [vmem:[%s269 + $0x8] sm:$0xff]
      %v389 = vld [vmem:[%s269 + $0x10] sm:$0xff]
      %v390 = vld [vmem:[%s269 + $0x18] sm:$0xff]
      %v391 = vld [vmem:[%s269 + $0x20] sm:$0xff]
      %v392 = vld [vmem:[%s269 + $0x28] sm:$0xff]
      %v393 = vld [vmem:[%s269 + $0x30] sm:$0xff]
      %v394 = vld [vmem:[%s269 + $0x38] sm:$0xff]
      %v395 = vld [vmem:[%s269 + $0x40] sm:$0xff]
      %v396 = vld [vmem:[%s269 + $0x48] sm:$0xff]
      %v397 = vld [vmem:[%s269 + $0x50] sm:$0xff]
      %v398 = vld [vmem:[%s269 + $0x58] sm:$0xff]
      %v399 = vld [vmem:[%s269 + $0x60] sm:$0xff]
      %v400 = vld [vmem:[%s269 + $0x68] sm:$0xff]
      %v401 = vld [vmem:[%s269 + $0x70] sm:$0xff]
      %v402 = vld [vmem:[%s269 + $0x78] sm:$0xff]
      %v403 = vld [vmem:[%s269 + $0x80] sm:$0xff]
      %v404 = vld [vmem:[%s269 + $0x88] sm:$0xff]
      %v405 = vld [vmem:[%s269 + $0x90] sm:$0xff]
      %v406 = vld [vmem:[%s269 + $0x98] sm:$0xff]
      %v407 = vld [vmem:[%s269 + $0xa0] sm:$0xff]
      %v408 = vld [vmem:[%s269 + $0xa8] sm:$0xff]
      %v409 = vld [vmem:[%s269 + $0xb0] sm:$0xff]
      %v410 = vld [vmem:[%s269 + $0xb8] sm:$0xff]
      %v411 = vld [vmem:[%s269 + $0xc0] sm:$0xff]
      %v412 = vld [vmem:[%s269 + $0xc8] sm:$0xff]
      %v413 = vld [vmem:[%s269 + $0xd0] sm:$0xff]
      %v414 = vld [vmem:[%s269 + $0xd8] sm:$0xff]
      %v415 = vld [vmem:[%s269 + $0xe0] sm:$0xff]
      %v416 = vld [vmem:[%s269 + $0xe8] sm:$0xff]
      %v417 = vld [vmem:[%s269 + $0xf0] sm:$0xff]
      %v418 = vld [vmem:[%s269 + $0xf8] sm:$0xff]
      %v419 = vld [vmem:[%s4] sm:$0x1]
      %v421 = vlaneseq
      %v422 = vshrl.u32 %v421, 7
      %v423 = vsub.s32 0, %v422
      %v424 = vrot.slane %v419, %v423
      %v426 = vmul.f32 %v387, %v424
      %v427 = vmul.f32 %v388, %v424
      %v428 = vmul.f32 %v389, %v424
      %v429 = vmul.f32 %v390, %v424
      %v430 = vmul.f32 %v391, %v424
      %v431 = vmul.f32 %v392, %v424
      %v432 = vmul.f32 %v393, %v424
      %v433 = vmul.f32 %v394, %v424
      %v434 = vmul.f32 %v395, %v424
      %v435 = vmul.f32 %v396, %v424
      %v436 = vmul.f32 %v397, %v424
      %v437 = vmul.f32 %v398, %v424
      %v438 = vmul.f32 %v399, %v424
      %v439 = vmul.f32 %v400, %v424
      %v440 = vmul.f32 %v401, %v424
      %v441 = vmul.f32 %v402, %v424
      %v442 = vmul.f32 %v403, %v424
      %v443 = vmul.f32 %v404, %v424
      %v444 = vmul.f32 %v405, %v424
      %v445 = vmul.f32 %v406, %v424
      %v446 = vmul.f32 %v407, %v424
      %v447 = vmul.f32 %v408, %v424
      %v448 = vmul.f32 %v409, %v424
      %v449 = vmul.f32 %v410, %v424
      %v450 = vmul.f32 %v411, %v424
      %v451 = vmul.f32 %v412, %v424
      %v452 = vmul.f32 %v413, %v424
      %v453 = vmul.f32 %v414, %v424
      %v454 = vmul.f32 %v415, %v424
      %v455 = vmul.f32 %v416, %v424
      %v456 = vmul.f32 %v417, %v424
      %v457 = vmul.f32 %v418, %v424
      %v458 = vadd.f32 %v355, %v426
      %v459 = vadd.f32 %v356, %v427
      %v460 = vadd.f32 %v357, %v428
      %v461 = vadd.f32 %v358, %v429
      %v462 = vadd.f32 %v359, %v430
      %v463 = vadd.f32 %v360, %v431
      %v464 = vadd.f32 %v361, %v432
      %v465 = vadd.f32 %v362, %v433
      %v466 = vadd.f32 %v363, %v434
      %v467 = vadd.f32 %v364, %v435
      %v468 = vadd.f32 %v365, %v436
      %v469 = vadd.f32 %v366, %v437
      %v470 = vadd.f32 %v367, %v438
      %v471 = vadd.f32 %v368, %v439
      %v472 = vadd.f32 %v369, %v440
      %v473 = vadd.f32 %v370, %v441
      %v474 = vadd.f32 %v371, %v442
      %v475 = vadd.f32 %v372, %v443
      %v476 = vadd.f32 %v373, %v444
      %v477 = vadd.f32 %v374, %v445
      %v478 = vadd.f32 %v375, %v446
      %v479 = vadd.f32 %v376, %v447
      %v480 = vadd.f32 %v377, %v448
      %v481 = vadd.f32 %v378, %v449
      %v482 = vadd.f32 %v379, %v450
      %v483 = vadd.f32 %v380, %v451
      %v484 = vadd.f32 %v381, %v452
      %v485 = vadd.f32 %v382, %v453
      %v486 = vadd.f32 %v383, %v454
      %v487 = vadd.f32 %v384, %v455
      %v488 = vadd.f32 %v385, %v456
      %v489 = vadd.f32 %v386, %v457
      %v490 = vld [vmem:[%s5] sm:$0x1]
      %v492 = vlaneseq
      %v493 = vshrl.u32 %v492, 7
      %v494 = vsub.s32 0, %v493
      %v495 = vrot.slane %v490, %v494
      %v497 = vadd.f32 %v458, %v495
      %v498 = vadd.f32 %v459, %v495
      %v499 = vadd.f32 %v460, %v495
      %v500 = vadd.f32 %v461, %v495
      %v501 = vadd.f32 %v462, %v495
      %v502 = vadd.f32 %v463, %v495
      %v503 = vadd.f32 %v464, %v495
      %v504 = vadd.f32 %v465, %v495
      %v505 = vadd.f32 %v466, %v495
      %v506 = vadd.f32 %v467, %v495
      %v507 = vadd.f32 %v468, %v495
      %v508 = vadd.f32 %v469, %v495
      %v509 = vadd.f32 %v470, %v495
      %v510 = vadd.f32 %v471, %v495
      %v511 = vadd.f32 %v472, %v495
      %v512 = vadd.f32 %v473, %v495
      %v513 = vadd.f32 %v474, %v495
      %v514 = vadd.f32 %v475, %v495
      %v515 = vadd.f32 %v476, %v495
      %v516 = vadd.f32 %v477, %v495
      %v517 = vadd.f32 %v478, %v495
      %v518 = vadd.f32 %v479, %v495
      %v519 = vadd.f32 %v480, %v495
      %v520 = vadd.f32 %v481, %v495
      %v521 = vadd.f32 %v482, %v495
      %v522 = vadd.f32 %v483, %v495
      %v523 = vadd.f32 %v484, %v495
      %v524 = vadd.f32 %v485, %v495
      %v525 = vadd.f32 %v486, %v495
      %v526 = vadd.f32 %v487, %v495
      %v527 = vadd.f32 %v488, %v495
      %v528 = vadd.f32 %v489, %v495
      %v529 = vmax.f32 %v497, 0.0
      %v530 = vmax.f32 %v498, 0.0
      %v531 = vmax.f32 %v499, 0.0
      %v532 = vmax.f32 %v500, 0.0
      %v533 = vmax.f32 %v501, 0.0
      %v534 = vmax.f32 %v502, 0.0
      %v535 = vmax.f32 %v503, 0.0
      %v536 = vmax.f32 %v504, 0.0
      %v537 = vmax.f32 %v505, 0.0
      %v538 = vmax.f32 %v506, 0.0
      %v539 = vmax.f32 %v507, 0.0
      %v540 = vmax.f32 %v508, 0.0
      %v541 = vmax.f32 %v509, 0.0
      %v542 = vmax.f32 %v510, 0.0
      %v543 = vmax.f32 %v511, 0.0
      %v544 = vmax.f32 %v512, 0.0
      %v545 = vmax.f32 %v513, 0.0
      %v546 = vmax.f32 %v514, 0.0
      %v547 = vmax.f32 %v515, 0.0
      %v548 = vmax.f32 %v516, 0.0
      %v549 = vmax.f32 %v517, 0.0
      %v550 = vmax.f32 %v518, 0.0
      %v551 = vmax.f32 %v519, 0.0
      %v552 = vmax.f32 %v520, 0.0
      %v553 = vmax.f32 %v521, 0.0
      %v554 = vmax.f32 %v522, 0.0
      %v555 = vmax.f32 %v523, 0.0
      %v556 = vmax.f32 %v524, 0.0
      %v557 = vmax.f32 %v525, 0.0
      %v558 = vmax.f32 %v526, 0.0
      %v559 = vmax.f32 %v527, 0.0
      %v560 = vmax.f32 %v528, 0.0
      %561 = vst [vmem:[%s275] sm:$0xff] %v529
      %562 = vst [vmem:[%s275 + $0x8] sm:$0xff] %v530
      %563 = vst [vmem:[%s275 + $0x10] sm:$0xff] %v531
      %564 = vst [vmem:[%s275 + $0x18] sm:$0xff] %v532
      %565 = vst [vmem:[%s275 + $0x20] sm:$0xff] %v533
      %566 = vst [vmem:[%s275 + $0x28] sm:$0xff] %v534
      %567 = vst [vmem:[%s275 + $0x30] sm:$0xff] %v535
      %568 = vst [vmem:[%s275 + $0x38] sm:$0xff] %v536
      %569 = vst [vmem:[%s275 + $0x40] sm:$0xff] %v537
      %570 = vst [vmem:[%s275 + $0x48] sm:$0xff] %v538
      %571 = vst [vmem:[%s275 + $0x50] sm:$0xff] %v539
      %572 = vst [vmem:[%s275 + $0x58] sm:$0xff] %v540
      %573 = vst [vmem:[%s275 + $0x60] sm:$0xff] %v541
      %574 = vst [vmem:[%s275 + $0x68] sm:$0xff] %v542
      %575 = vst [vmem:[%s275 + $0x70] sm:$0xff] %v543
      %576 = vst [vmem:[%s275 + $0x78] sm:$0xff] %v544
      %577 = vst [vmem:[%s275 + $0x80] sm:$0xff] %v545
      %578 = vst [vmem:[%s275 + $0x88] sm:$0xff] %v546
      %579 = vst [vmem:[%s275 + $0x90] sm:$0xff] %v547
      %580 = vst [vmem:[%s275 + $0x98] sm:$0xff] %v548
      %581 = vst [vmem:[%s275 + $0xa0] sm:$0xff] %v549
      %582 = vst [vmem:[%s275 + $0xa8] sm:$0xff] %v550
      %583 = vst [vmem:[%s275 + $0xb0] sm:$0xff] %v551
      %584 = vst [vmem:[%s275 + $0xb8] sm:$0xff] %v552
      %585 = vst [vmem:[%s275 + $0xc0] sm:$0xff] %v553
      %586 = vst [vmem:[%s275 + $0xc8] sm:$0xff] %v554
      %587 = vst [vmem:[%s275 + $0xd0] sm:$0xff] %v555
      %588 = vst [vmem:[%s275 + $0xd8] sm:$0xff] %v556
      %589 = vst [vmem:[%s275 + $0xe0] sm:$0xff] %v557
      %590 = vst [vmem:[%s275 + $0xe8] sm:$0xff] %v558
      %591 = vst [vmem:[%s275 + $0xf0] sm:$0xff] %v559
      %592 = vst [vmem:[%s275 + $0xf8] sm:$0xff] %v560
      %s593 = smul.u32 32, %s17
      %p594 = scmp.lt.s32.totalorder %s593, 63
      %s595 = scalar_select %p594, %s593, 63
      %s596 = smul.addr %s595, 8
      %s597 = scalar_lea.vmem %s6, %s596
      // Predicated region
      $region45: #{bottleneck_forward.13} parent=43 // pred_check
        %p598 = pneg %p171
      $region46: #{bottleneck_forward.13} parent=43 // pred_check_branch
        %600 = sbr.rel (%p598) target = $region48
      $region47: #{bottleneck_forward.13} parent=43 // pred_region
        %s601 = smul.u32 32, %s17
      $region48: #{bottleneck_forward.13} parent=43 // pred_fallthru
        _
    $region44: #{bottleneck_forward.13} parent=5 // pred_fallthru
      _
    %p602 = scmp.le.s32.totalorder 2, %s12
    // Predicated region
    $region49: #{bottleneck_forward.13} parent=5 // pred_check
      %p603 = pneg %p602
    $region50: #{bottleneck_forward.13} parent=5 // pred_check_branch
      %605 = sbr.rel (%p603) target = $region52
    $region51: #{bottleneck_forward.13} parent=5 // pred_region
      %s606 = ssub.s32 %s12, 2
      // Predicated region
      $region53: #{bottleneck_forward.13} parent=51 // pred_check
        %p607 = pneg %p177
      $region54: #{bottleneck_forward.13} parent=51 // pred_check_branch
        %609 = sbr.rel (%p607) target = $region56
      $region55: #{bottleneck_forward.13} parent=51 // pred_region
        %s610 = smul.u32 32, %s18
        %p611 = scmp.lt.s32.totalorder %s610, 63
        %s612 = scalar_select %p611, %s610, 63
        %s613 = smul.addr %s612, 8
        %s614 = scalar_lea.vmem %s6, %s613
      $region56: #{bottleneck_forward.13} parent=51 // pred_fallthru
        _
    $region52: #{bottleneck_forward.13} parent=5 // pred_fallthru
      _
  $region6: #{bottleneck_forward.13} parent=0 // loop_footer
    %s16 = sadd.s32 1, %s12
  $region7: #{bottleneck_forward.13} parent=0 // loop_footer_branch
    %11 = sbr.rel target = $region3
  $region8: #{bottleneck_forward.13} parent=0 // loop_exit
    _

// kernel: bottleneck_forward.9
$region0: #{bottleneck_forward.9}
  #allocation0 [shape = 'u32[]', space=smem, size = 0x4, offset = 0x4, fixed_abs, tag = 'smem constant byte address 0x4 - core index']
  #allocation1 [shape = 'u32[144,128]{1,0:T(1,128)}', space=vmem, size = 0x12000, scoped, tag = 'internal scratch']
  %s0 = inlined_call_operand.vmem [shape: f32[2,18,18,128], index: 0, kind: input, shape index: {}]
  %s1 = inlined_call_operand.vmem [shape: bf16[9,128,128], index: 1, kind: input, shape index: {}]
  %s2 = inlined_call_operand.vmem [shape: f32[2,256,128], index: 2, kind: output, shape index: {0}]
  %s3 = inlined_call_operand.vmem [shape: f32[1,128], index: 3, kind: output, shape index: {1}]
  %s4 = inlined_call_operand.vmem [shape: f32[1,128], index: 4, kind: output, shape index: {2}]
  %5 = xla_tuple %s2, %s3, %s4
  %s6 = sld [smem:[#allocation0]]
  $region61: #{bottleneck_forward.9} parent=0
    _
  %s8 = ssub.s32 1, %s6
  %s9 = scalar_select 0, %s8, %s6
  loop: start=0, step=1, limit=4
  $region2: #{bottleneck_forward.9} parent=0 // loop_pre_header
    _
  $region3: #{bottleneck_forward.9} parent=0 // loop_header
    %s11 = sphi 0, %s15
    %p12 = scmp.ge.s32.totalorder %s11, 4
    %s21 = sphi 0, %s23
    %s24 = sphi 0, %s21
    %s25 = sphi 0, %s24
    %s41 = sphi 0, %s25
    %s45 = sphi 0, %s45
    %s47 = sphi 0, %s45
    %s48 = sphi 0, %s47
    %s62 = sphi 0, %s48
    %s68 = sphi 0, %s70
    %s71 = sphi 0, %s68
    %s72 = sphi 0, %s71
    %s88 = sphi 0, %s72
    %s92 = sphi 0, %s92
    %s94 = sphi 0, %s92
    %s95 = sphi 0, %s94
    %s109 = sphi 0, %s95
    %s113 = sphi 0, %s113
    %s115 = sphi 0, %s113
    %s116 = sphi 0, %s115
    %s130 = sphi 0, %s116
  $region4: #{bottleneck_forward.9} parent=0 // loop_header_branch
    %14 = sbr.rel (%p12) target = $region8
  $region5: #{bottleneck_forward.9} parent=0 // loop_body
    %s16 = ssub.s32 %s11, 1
    %s17 = ssub.s32 %s11, 2
    %s18 = sadd.s32 %s11, 1
    %s19 = ssub.s32 %s11, %s18
    %p20 = scmp.eq.s32.totalorder %s19, 0
    %s22 = sadd.s32 %s21, 1
    %s23 = scalar_select %p20, %s21, %s22
    %p26 = pneg %p20
    %p27 = scmp.eq.s32.totalorder %s11, 1
    %p28 = por %p26, %p27
    %p29 = scmp.ne.s32.totalorder %s21, %s24
    %p30 = scmp.eq.s32.totalorder %s11, 0
    %p31 = por %p29, %p30
    %p32 = scmp.ne.s32.totalorder %s21, %s24
    %p33 = scmp.eq.s32.totalorder %s16, 1
    %p34 = por %p32, %p33
    %p35 = scmp.ne.s32.totalorder %s24, %s25
    %p36 = scmp.eq.s32.totalorder %s16, 0
    %p37 = por %p35, %p36
    %p38 = scmp.ne.s32.totalorder %s24, %s25
    %p39 = scmp.eq.s32.totalorder %s17, 1
    %p40 = por %p38, %p39
    %p42 = scmp.ne.s32.totalorder %s25, %s41
    %p43 = scmp.eq.s32.totalorder %s17, 0
    %p44 = por %p42, %p43
    %s46 = sadd.s32 %s45, 1
    %p49 = scmp.eq.s32.totalorder %s11, 1
    %p50 = scmp.ne.s32.totalorder %s45, %s47
    %p51 = scmp.eq.s32.totalorder %s11, 0
    %p52 = por %p50, %p51
    %p53 = scmp.ne.s32.totalorder %s45, %s47
    %p54 = scmp.eq.s32.totalorder %s16, 1
    %p55 = por %p53, %p54
    %p56 = scmp.ne.s32.totalorder %s47, %s48
    %p57 = scmp.eq.s32.totalorder %s16, 0
    %p58 = por %p56, %p57
    %p59 = scmp.ne.s32.totalorder %s47, %s48
    %p60 = scmp.eq.s32.totalorder %s17, 1
    %p61 = por %p59, %p60
    %p63 = scmp.ne.s32.totalorder %s48, %s62
    %p64 = scmp.eq.s32.totalorder %s17, 0
    %p65 = por %p63, %p64
    %s66 = ssub.s32 %s11, %s18
    %p67 = scmp.eq.s32.totalorder %s66, 0
    %s69 = sadd.s32 %s68, 1
    %s70 = scalar_select %p67, %s68, %s69
    %p73 = pneg %p67
    %p74 = scmp.eq.s32.totalorder %s11, 1
    %p75 = por %p73, %p74
    %p76 = scmp.ne.s32.totalorder %s68, %s71
    %p77 = scmp.eq.s32.totalorder %s11, 0
    %p78 = por %p76, %p77
    %p79 = scmp.ne.s32.totalorder %s68, %s71
    %p80 = scmp.eq.s32.totalorder %s16, 1
    %p81 = por %p79, %p80
    %p82 = scmp.ne.s32.totalorder %s71, %s72
    %p83 = scmp.eq.s32.totalorder %s16, 0
    %p84 = por %p82, %p83
    %p85 = scmp.ne.s32.totalorder %s71, %s72
    %p86 = scmp.eq.s32.totalorder %s17, 1
    %p87 = por %p85, %p86
    %p89 = scmp.ne.s32.totalorder %s72, %s88
    %p90 = scmp.eq.s32.totalorder %s17, 0
    %p91 = por %p89, %p90
    %s93 = sadd.s32 %s92, 1
    %p96 = scmp.eq.s32.totalorder %s11, 1
    %p97 = scmp.ne.s32.totalorder %s92, %s94
    %p98 = scmp.eq.s32.totalorder %s11, 0
    %p99 = por %p97, %p98
    %p100 = scmp.ne.s32.totalorder %s92, %s94
    %p101 = scmp.eq.s32.totalorder %s16, 1
    %p102 = por %p100, %p101
    %p103 = scmp.ne.s32.totalorder %s94, %s95
    %p104 = scmp.eq.s32.totalorder %s16, 0
    %p105 = por %p103, %p104
    %p106 = scmp.ne.s32.totalorder %s94, %s95
    %p107 = scmp.eq.s32.totalorder %s17, 1
    %p108 = por %p106, %p107
    %p110 = scmp.ne.s32.totalorder %s95, %s109
    %p111 = scmp.eq.s32.totalorder %s17, 0
    %p112 = por %p110, %p111
    %s114 = sadd.s32 %s113, 1
    %p117 = scmp.eq.s32.totalorder %s11, 1
    %p118 = scmp.ne.s32.totalorder %s113, %s115
    %p119 = scmp.eq.s32.totalorder %s11, 0
    %p120 = por %p118, %p119
    %p121 = scmp.ne.s32.totalorder %s113, %s115
    %p122 = scmp.eq.s32.totalorder %s16, 1
    %p123 = por %p121, %p122
    %p124 = scmp.ne.s32.totalorder %s115, %s116
    %p125 = scmp.eq.s32.totalorder %s16, 0
    %p126 = por %p124, %p125
    %p127 = scmp.ne.s32.totalorder %s115, %s116
    %p128 = scmp.eq.s32.totalorder %s17, 1
    %p129 = por %p127, %p128
    %p131 = scmp.ne.s32.totalorder %s116, %s130
    %p132 = scmp.eq.s32.totalorder %s17, 0
    %p133 = por %p131, %p132
    %p134 = scmp.le.s32.totalorder 1, %s11
    %p135 = scmp.lt.s32.totalorder %s11, 3
    %p136 = pnand %p134, %p135
    %p137 = pneg %p136
    // Predicated region
    $region9: #{bottleneck_forward.9} parent=5 // pred_check
      _
    $region10: #{bottleneck_forward.9} parent=5 // pred_check_branch
      %139 = sbr.rel (%p136) target = $region12
    $region11: #{bottleneck_forward.9} parent=5 // pred_region
      %s140 = ssub.s32 %s11, 1
      // Predicated region
      $region13: #{bottleneck_forward.9} parent=11 // pred_check
        %p141 = pneg %p58
      $region14: #{bottleneck_forward.9} parent=11 // pred_check_branch
        %143 = sbr.rel (%p141) target = $region16
      $region15: #{bottleneck_forward.9} parent=11 // pred_region
        _
      $region16: #{bottleneck_forward.9} parent=11 // pred_fallthru
        _
    $region12: #{bottleneck_forward.9} parent=5 // pred_fallthru
      _
    %p144 = scmp.lt.s32.totalorder %s11, 2
    // Predicated region
    $region17: #{bottleneck_forward.9} parent=5 // pred_check
      %p145 = pneg %p144
    $region18: #{bottleneck_forward.9} parent=5 // pred_check_branch
      %147 = sbr.rel (%p145) target = $region20
    $region19: #{bottleneck_forward.9} parent=5 // pred_region
      // Predicated region
      $region21: #{bottleneck_forward.9} parent=19 // pred_check
        %p148 = pneg %p31
      $region22: #{bottleneck_forward.9} parent=19 // pred_check_branch
        %150 = sbr.rel (%p148) target = $region24
      $region23: #{bottleneck_forward.9} parent=19 // pred_region
        %p151 = scmp.lt.s32.totalorder %s11, 1
        %s152 = scalar_select %p151, %s11, 1
        %s153 = smul.addr %s152, 54
        %s154 = smul.addr %s153, 8
        %s155 = scalar_lea.vmem %s0, %s154
      $region24: #{bottleneck_forward.9} parent=19 // pred_fallthru
        _
    $region20: #{bottleneck_forward.9} parent=5 // pred_fallthru
      _
    %p156 = scmp.le.s32.totalorder 1, %s11
    %p157 = scmp.lt.s32.totalorder %s11, 3
    %p158 = pnand %p156, %p157
    %p159 = pneg %p158
    // Predicated region
    $region25: #{bottleneck_forward.9} parent=5 // pred_check
      _
    $region26: #{bottleneck_forward.9} parent=5 // pred_check_branch
      %161 = sbr.rel (%p158) target = $region28
    $region27: #{bottleneck_forward.9} parent=5 // pred_region
      %s162 = ssub.s32 %s11, 1
      %p163 = scmp.lt.s32.totalorder %s16, 1
      %s164 = scalar_select %p163, %s16, 1
      %s165 = smul.addr %s164, 54
      %s166 = smul.addr %s165, 8
      %s167 = scalar_lea.vmem %s0, %s166
      %p168 = pneg %p37
      %p169 = pneg %p34
      %p170 = pneg %p58
      %p171 = pneg %p55
      %p172 = pneg %p84
      %p173 = pneg %p81
      %p174 = scmp.lt.s32.totalorder %s16, 1
      %s175 = scalar_select %p174, %s16, 1
      %s176 = smul.addr %s175, 32
      %s177 = smul.addr %s176, 8
      %s178 = scalar_lea.vmem %s2, %s177
      %p179 = pneg %p105
      %p180 = pneg %p102
      %p181 = pneg %p126
      %p182 = pneg %p123
      %p183 = scmp.lt.s32.totalorder %s16, 1
      %s184 = scalar_select %p183, %s16, 1
      %s185 = smul.addr %s184, 54
      %s186 = smul.addr %s185, 8
      %s187 = scalar_lea.vmem %s0, %s186
      %p188 = scmp.lt.s32.totalorder %s16, 1
      %s189 = scalar_select %p188, %s16, 1
      %s190 = smul.addr %s189, 32
      %s191 = smul.addr %s190, 8
      %s192 = scalar_lea.vmem %s2, %s191
      %v194 = vld [vmem:[%s187] sm:$0xff]
      %v195 = vld [vmem:[%s187 + $0x8] sm:$0xff]
      %v196 = vld [vmem:[%s187 + $0x18] sm:$0xff]
      %v197 = vld [vmem:[%s187 + $0x20] sm:$0xff]
      %v198 = vld [vmem:[%s187 + $0x30] sm:$0xff]
      %v199 = vld [vmem:[%s187 + $0x38] sm:$0xff]
      %v200 = vld [vmem:[%s187 + $0x48] sm:$0xff]
      %v201 = vld [vmem:[%s187 + $0x50] sm:$0xff]
      %v202 = vld [vmem:[%s187 + $0x60] sm:$0xff]
      %v203 = vld [vmem:[%s187 + $0x68] sm:$0xff]
      %v204 = vld [vmem:[%s187 + $0x78] sm:$0xff]
      %v205 = vld [vmem:[%s187 + $0x80] sm:$0xff]
      %v206 = vld [vmem:[%s187 + $0x90] sm:$0xff]
      %v207 = vld [vmem:[%s187 + $0x98] sm:$0xff]
      %v208 = vld [vmem:[%s187 + $0xa8] sm:$0xff]
      %v209 = vld [vmem:[%s187 + $0xb0] sm:$0xff]
      %v210 = vld [vmem:[%s187 + $0xc0] sm:$0xff]
      %v211 = vld [vmem:[%s187 + $0xc8] sm:$0xff]
      %v212 = vld [vmem:[%s187 + $0xd8] sm:$0xff]
      %v213 = vld [vmem:[%s187 + $0xe0] sm:$0xff]
      %v214 = vld [vmem:[%s187 + $0xf0] sm:$0xff]
      %v215 = vld [vmem:[%s187 + $0xf8] sm:$0xff]
      %v216 = vld [vmem:[%s187 + $0x108] sm:$0xff]
      %v217 = vld [vmem:[%s187 + $0x110] sm:$0xff]
      %v218 = vld [vmem:[%s187 + $0x120] sm:$0xff]
      %v219 = vld [vmem:[%s187 + $0x128] sm:$0xff]
      %v220 = vld [vmem:[%s187 + $0x138] sm:$0xff]
      %v221 = vld [vmem:[%s187 + $0x140] sm:$0xff]
      %v222 = vld [vmem:[%s187 + $0x150] sm:$0xff]
      %v223 = vld [vmem:[%s187 + $0x158] sm:$0xff]
      %v224 = vld [vmem:[%s187 + $0x168] sm:$0xff]
      %v225 = vld [vmem:[%s187 + $0x170] sm:$0xff]
      %v226 = vpack.c.bf16 %v195, %v194
      %v227 = vpack.c.bf16 %v197, %v196
      %v228 = vpack.c.bf16 %v199, %v198
      %v229 = vpack.c.bf16 %v201, %v200
      %v230 = vpack.c.bf16 %v203, %v202
      %v231 = vpack.c.bf16 %v205, %v204
      %v232 = vpack.c.bf16 %v207, %v206
      %v233 = vpack.c.bf16 %v209, %v208
      %v234 = vpack.c.bf16 %v211, %v210
      %v235 = vpack.c.bf16 %v213, %v212
      %v236 = vpack.c.bf16 %v215, %v214
      %v237 = vpack.c.bf16 %v217, %v216
      %v238 = vpack.c.bf16 %v219, %v218
      %v239 = vpack.c.bf16 %v221, %v220
      %v240 = vpack.c.bf16 %v223, %v222
      %v241 = vpack.c.bf16 %v225, %v224
      %v242 = vld [vmem:[%s1] sm:$0xf]
      %v243 = vld [vmem:[%s1 + $0x4] sm:$0xf]
      %v244 = vld [vmem:[%s1 + $0x8] sm:$0xf]
      %v245 = vld [vmem:[%s1 + $0xc] sm:$0xf]
      %v246 = vld [vmem:[%s1 + $0x10] sm:$0xf]
      %v247 = vld [vmem:[%s1 + $0x14] sm:$0xf]
      %v248 = vld [vmem:[%s1 + $0x18] sm:$0xf]
      %v249 = vld [vmem:[%s1 + $0x1c] sm:$0xf]
      %v250 = vld [vmem:[%s1 + $0x20] sm:$0xf]
      %v251 = vld [vmem:[%s1 + $0x24] sm:$0xf]
      %v252 = vld [vmem:[%s1 + $0x28] sm:$0xf]
      %v253 = vld [vmem:[%s1 + $0x2c] sm:$0xf]
      %v254 = vld [vmem:[%s1 + $0x30] sm:$0xf]
      %v255 = vld [vmem:[%s1 + $0x34] sm:$0xf]
      %v256 = vld [vmem:[%s1 + $0x38] sm:$0xf]
      %v257 = vld [vmem:[%s1 + $0x3c] sm:$0xf]
      %v258 = vld [vmem:[%s187 + $0x1] sm:$0xff]
      %v259 = vld [vmem:[%s187 + $0x9] sm:$0xff]
      %v260 = vld [vmem:[%s187 + $0x19] sm:$0xff]
      %v261 = vld [vmem:[%s187 + $0x21] sm:$0xff]
      %v262 = vld [vmem:[%s187 + $0x31] sm:$0xff]
      %v263 = vld [vmem:[%s187 + $0x39] sm:$0xff]
      %v264 = vld [vmem:[%s187 + $0x49] sm:$0xff]
      %v265 = vld [vmem:[%s187 + $0x51] sm:$0xff]
      %v266 = vld [vmem:[%s187 + $0x61] sm:$0xff]
      %v267 = vld [vmem:[%s187 + $0x69] sm:$0xff]
      %v268 = vld [vmem:[%s187 + $0x79] sm:$0xff]
      %v269 = vld [vmem:[%s187 + $0x81] sm:$0xff]
      %v270 = vld [vmem:[%s187 + $0x91] sm:$0xff]
      %v271 = vld [vmem:[%s187 + $0x99] sm:$0xff]
      %v272 = vld [vmem:[%s187 + $0xa9] sm:$0xff]
      %v273 = vld [vmem:[%s187 + $0xb1] sm:$0xff]
      %v274 = vld [vmem:[%s187 + $0xc1] sm:$0xff]
      %v275 = vld [vmem:[%s187 + $0xc9] sm:$0xff]
      %v276 = vld [vmem:[%s187 + $0xd9] sm:$0xff]
      %v277 = vld [vmem:[%s187 + $0xe1] sm:$0xff]
      %v278 = vld [vmem:[%s187 + $0xf1] sm:$0xff]
      %v279 = vld [vmem:[%s187 + $0xf9] sm:$0xff]
      %v280 = vld [vmem:[%s187 + $0x109] sm:$0xff]
      %v281 = vld [vmem:[%s187 + $0x111] sm:$0xff]
      %v282 = vld [vmem:[%s187 + $0x121] sm:$0xff]
      %v283 = vld [vmem:[%s187 + $0x129] sm:$0xff]
      %v284 = vld [vmem:[%s187 + $0x139] sm:$0xff]
      %v285 = vld [vmem:[%s187 + $0x141] sm:$0xff]
      %v286 = vld [vmem:[%s187 + $0x151] sm:$0xff]
      %v287 = vld [vmem:[%s187 + $0x159] sm:$0xff]
      %v288 = vld [vmem:[%s187 + $0x169] sm:$0xff]
      %v289 = vld [vmem:[%s187 + $0x171] sm:$0xff]
      %v290 = vpack.c.bf16 %v259, %v258
      %v291 = vpack.c.bf16 %v261, %v260
      %v292 = vpack.c.bf16 %v263, %v262
      %v293 = vpack.c.bf16 %v265, %v264
      %v294 = vpack.c.bf16 %v267, %v266
      %v295 = vpack.c.bf16 %v269, %v268
      %v296 = vpack.c.bf16 %v271, %v270
      %v297 = vpack.c.bf16 %v273, %v272
      %v298 = vpack.c.bf16 %v275, %v274
      %v299 = vpack.c.bf16 %v277, %v276
      %v300 = vpack.c.bf16 %v279, %v278
      %v301 = vpack.c.bf16 %v281, %v280
      %v302 = vpack.c.bf16 %v283, %v282
      %v303 = vpack.c.bf16 %v285, %v284
      %v304 = vpack.c.bf16 %v287, %v286
      %v305 = vpack.c.bf16 %v289, %v288
      %s306 = scalar_lea.vmem %s1, 64
      %v307 = vld [vmem:[%s306] sm:$0xf]
      %v308 = vld [vmem:[%s306 + $0x4] sm:$0xf]
      %v309 = vld [vmem:[%s306 + $0x8] sm:$0xf]
      %v310 = vld [vmem:[%s306 + $0xc] sm:$0xf]
      %v311 = vld [vmem:[%s306 + $0x10] sm:$0xf]
      %v312 = vld [vmem:[%s306 + $0x14] sm:$0xf]
      %v313 = vld [vmem:[%s306 + $0x18] sm:$0xf]
      %v314 = vld [vmem:[%s306 + $0x1c] sm:$0xf]
      %v315 = vld [vmem:[%s306 + $0x20] sm:$0xf]
      %v316 = vld [vmem:[%s306 + $0x24] sm:$0xf]
      %v317 = vld [vmem:[%s306 + $0x28] sm:$0xf]
      %v318 = vld [vmem:[%s306 + $0x2c] sm:$0xf]
      %v319 = vld [vmem:[%s306 + $0x30] sm:$0xf]
      %v320 = vld [vmem:[%s306 + $0x34] sm:$0xf]
      %v321 = vld [vmem:[%s306 + $0x38] sm:$0xf]
      %v322 = vld [vmem:[%s306 + $0x3c] sm:$0xf]
      %v339 = vunpack.c.l.b16 %v307
      %v340 = vunpack.c.l.b16 %v308
      %v341 = vunpack.c.l.b16 %v309
      %v342 = vunpack.c.l.b16 %v310
      %v343 = vunpack.c.l.b16 %v311
      %v344 = vunpack.c.l.b16 %v312
      %v345 = vunpack.c.l.b16 %v313
      %v346 = vunpack.c.l.b16 %v314
      %v347 = vunpack.c.l.b16 %v315
      %v348 = vunpack.c.l.b16 %v316
      %v349 = vunpack.c.l.b16 %v317
      %v350 = vunpack.c.l.b16 %v318
      %v351 = vunpack.c.l.b16 %v319
      %v352 = vunpack.c.l.b16 %v320
      %v353 = vunpack.c.l.b16 %v321
      %v354 = vunpack.c.l.b16 %v322
      %v355 = vpack.c.b16 %v340, %v339
      %v356 = vpack.c.b16 %v342, %v341
      %v357 = vpack.c.b16 %v344, %v343
      %v358 = vpack.c.b16 %v346, %v345
      %v359 = vpack.c.b16 %v348, %v347
      %v360 = vpack.c.b16 %v350, %v349
      %v361 = vpack.c.b16 %v352, %v351
      %v362 = vpack.c.b16 %v354, %v353
      %371 = vmatprep.subr.bf16.mxu0 0
      %372 = vmatpush1.bf16.msra.mxu0 %v362
      %373 = vmatprep.subr.bf16.mxu0 0
      %374 = vmatpush1.bf16.msra.mxu0 %v361
      %375 = vmatprep.subr.bf16.mxu0 0
      %376 = vmatpush1.bf16.msra.mxu0 %v360
      %377 = vmatprep.subr.bf16.mxu0 0
      %378 = vmatpush1.bf16.msra.mxu0 %v359
      %379 = vmatprep.subr.bf16.mxu0 0
      %380 = vmatpush1.bf16.msra.mxu0 %v358
      %381 = vmatprep.subr.bf16.mxu0 0
      %382 = vmatpush1.bf16.msra.mxu0 %v357
      %383 = vmatprep.subr.bf16.mxu0 0
      %384 = vmatpush1.bf16.msra.mxu0 %v356
      %385 = vmatprep.subr.bf16.mxu0 0
      %386 = vmatpush1.bf16.msra.mxu0 %v355
      %387 = vmatprep.subr.bf16.mxu0 0
      %388 = vmatpush2.bf16.msra.mxu0 0
      %389 = vmatprep.subr.bf16.mxu0 0
      %390 = vmatpush2.bf16.msra.mxu0 0
      %391 = vmatprep.subr.bf16.mxu0 0
      %392 = vmatpush2.bf16.msra.mxu0 0
      %393 = vmatprep.subr.bf16.mxu0 0
      %394 = vmatpush2.bf16.msra.mxu0 0
      %395 = vmatprep.subr.bf16.mxu0 0
      %396 = vmatpush2.bf16.msra.mxu0 0
      %397 = vmatprep.subr.bf16.mxu0 0
      %398 = vmatpush2.bf16.msra.mxu0 0
      %399 = vmatprep.subr.bf16.mxu0 0
      %400 = vmatpush2.bf16.msra.mxu0 0
      %401 = vmatprep.subr.bf16.mxu0 0
      %402 = vmatpush2.bf16.msra.mxu0 0
      %403 = vmatprep.mubr.bf16.mxu0 0
      %404 = vmatmul.mubr.bf16.gmra.mxu0 %v290
      %v405 = vpop.f32.mrf.mxu0
      %v406 = vadd.f32 0.0, %v405
      %v407 = vpop.f32.mrf.mxu0
      %v408 = vpop.f32.mrf.mxu0
      %v409 = vadd.f32 0.0, %v408
      %v410 = vpop.f32.mrf.mxu0
      %411 = vmatprep.mubr.bf16.mxu0 0
      %412 = vmatmul.mubr.bf16.gmra.mxu0 %v291
      %v413 = vpop.f32.mrf.mxu0
      %v414 = vadd.f32 0.0, %v413
      %v415 = vpop.f32.mrf.mxu0
      %v416 = vpop.f32.mrf.mxu0
      %v417 = vadd.f32 0.0, %v416
      %v418 = vpop.f32.mrf.mxu0
      %419 = vmatprep.mubr.bf16.mxu0 0
      %420 = vmatmul.mubr.bf16.gmra.mxu0 %v292
      %v421 = vpop.f32.mrf.mxu0
      %v422 = vadd.f32 0.0, %v421
      %v423 = vpop.f32.mrf.mxu0
      %v424 = vpop.f32.mrf.mxu0
      %v425 = vadd.f32 0.0, %v424
      %v426 = vpop.f32.mrf.mxu0
      %427 = vmatprep.mubr.bf16.mxu0 0
      %428 = vmatmul.mubr.bf16.gmra.mxu0 %v293
      %v429 = vpop.f32.mrf.mxu0
      %v430 = vadd.f32 0.0, %v429
      %v431 = vpop.f32.mrf.mxu0
      %v432 = vpop.f32.mrf.mxu0
      %v433 = vadd.f32 0.0, %v432
      %v434 = vpop.f32.mrf.mxu0
      %435 = vmatprep.mubr.bf16.mxu0 0
      %436 = vmatmul.mubr.bf16.gmra.mxu0 %v294
      %v437 = vpop.f32.mrf.mxu0
      %v438 = vadd.f32 0.0, %v437
      %v439 = vpop.f32.mrf.mxu0
      %v440 = vpop.f32.mrf.mxu0
      %v441 = vadd.f32 0.0, %v440
      %v442 = vpop.f32.mrf.mxu0
      %443 = vmatprep.mubr.bf16.mxu0 0
      %444 = vmatmul.mubr.bf16.gmra.mxu0 %v295
      %v445 = vpop.f32.mrf.mxu0
      %v446 = vadd.f32 0.0, %v445
      %v447 = vpop.f32.mrf.mxu0
      %v448 = vpop.f32.mrf.mxu0
      %v449 = vadd.f32 0.0, %v448
      %v450 = vpop.f32.mrf.mxu0
      %451 = vmatprep.mubr.bf16.mxu0 0
      %452 = vmatmul.mubr.bf16.gmra.mxu0 %v296
      %v453 = vpop.f32.mrf.mxu0
      %v454 = vadd.f32 0.0, %v453
      %v455 = vpop.f32.mrf.mxu0
      %v456 = vpop.f32.mrf.mxu0
      %v457 = vadd.f32 0.0, %v456
      %v458 = vpop.f32.mrf.mxu0
      %459 = vmatprep.mubr.bf16.mxu0 0
      %460 = vmatmul.mubr.bf16.gmra.mxu0 %v297
      %v461 = vpop.f32.mrf.mxu0
      %v462 = vadd.f32 0.0, %v461
      %v463 = vpop.f32.mrf.mxu0
      %v464 = vpop.f32.mrf.mxu0
      %v465 = vadd.f32 0.0, %v464
      %v466 = vpop.f32.mrf.mxu0
      %467 = vmatprep.mubr.bf16.mxu0 0
      %468 = vmatmul.mubr.bf16.gmra.mxu0 %v298
      %v469 = vpop.f32.mrf.mxu0
      %v470 = vadd.f32 0.0, %v469
      %v471 = vpop.f32.mrf.mxu0
      %v472 = vpop.f32.mrf.mxu0
      %v473 = vadd.f32 0.0, %v472
      %v474 = vpop.f32.mrf.mxu0
      %475 = vmatprep.mubr.bf16.mxu0 0
      %476 = vmatmul.mubr.bf16.gmra.mxu0 %v299
      %v477 = vpop.f32.mrf.mxu0
      %v478 = vadd.f32 0.0, %v477
      %v479 = vpop.f32.mrf.mxu0
      %v480 = vpop.f32.mrf.mxu0
      %v481 = vadd.f32 0.0, %v480
      %v482 = vpop.f32.mrf.mxu0
      %483 = vmatprep.mubr.bf16.mxu0 0
      %484 = vmatmul.mubr.bf16.gmra.mxu0 %v300
      %v485 = vpop.f32.mrf.mxu0
      %v486 = vadd.f32 0.0, %v485
      %v487 = vpop.f32.mrf.mxu0
      %v488 = vpop.f32.mrf.mxu0
      %v489 = vadd.f32 0.0, %v488
      %v490 = vpop.f32.mrf.mxu0
      %491 = vmatprep.mubr.bf16.mxu0 0
      %492 = vmatmul.mubr.bf16.gmra.mxu0 %v301
      %v493 = vpop.f32.mrf.mxu0
      %v494 = vadd.f32 0.0, %v493
      %v495 = vpop.f32.mrf.mxu0
      %v496 = vpop.f32.mrf.mxu0
      %v497 = vadd.f32 0.0, %v496
      %v498 = vpop.f32.mrf.mxu0
      %499 = vmatprep.mubr.bf16.mxu0 0
      %500 = vmatmul.mubr.bf16.gmra.mxu0 %v302
      %v501 = vpop.f32.mrf.mxu0
      %v502 = vadd.f32 0.0, %v501
      %v503 = vpop.f32.mrf.mxu0
      %v504 = vpop.f32.mrf.mxu0
      %v505 = vadd.f32 0.0, %v504
      %v506 = vpop.f32.mrf.mxu0
      %507 = vmatprep.mubr.bf16.mxu0 0
      %508 = vmatmul.mubr.bf16.gmra.mxu0 %v303
      %v509 = vpop.f32.mrf.mxu0
      %v510 = vadd.f32 0.0, %v509
      %v511 = vpop.f32.mrf.mxu0
      %v512 = vpop.f32.mrf.mxu0
      %v513 = vadd.f32 0.0, %v512
      %v514 = vpop.f32.mrf.mxu0
      %515 = vmatprep.mubr.bf16.mxu0 0
      %516 = vmatmul.mubr.bf16.gmra.mxu0 %v304
      %v517 = vpop.f32.mrf.mxu0
      %v518 = vadd.f32 0.0, %v517
      %v519 = vpop.f32.mrf.mxu0
      %v520 = vpop.f32.mrf.mxu0
      %v521 = vadd.f32 0.0, %v520
      %v522 = vpop.f32.mrf.mxu0
      %523 = vmatprep.mubr.bf16.mxu0 0
      %524 = vmatmul.mubr.bf16.gmra.mxu0 %v305
      %v525 = vpop.f32.mrf.mxu0
      %v526 = vadd.f32 0.0, %v525
      %v527 = vpop.f32.mrf.mxu0
      %v528 = vpop.f32.mrf.mxu0
      %v529 = vadd.f32 0.0, %v528
      %v530 = vpop.f32.mrf.mxu0
      %531 = vdwg.mxu0
      %v548 = vunpack.c.l.b16 %v242
      %v549 = vunpack.c.l.b16 %v243
      %v550 = vunpack.c.l.b16 %v244
      %v551 = vunpack.c.l.b16 %v245
      %v552 = vunpack.c.l.b16 %v246
      %v553 = vunpack.c.l.b16 %v247
      %v554 = vunpack.c.l.b16 %v248
      %v555 = vunpack.c.l.b16 %v249
      %v556 = vunpack.c.l.b16 %v250
      %v557 = vunpack.c.l.b16 %v251
      %v558 = vunpack.c.l.b16 %v252
      %v559 = vunpack.c.l.b16 %v253
      %v560 = vunpack.c.l.b16 %v254
      %v561 = vunpack.c.l.b16 %v255
      %v562 = vunpack.c.l.b16 %v256
      %v563 = vunpack.c.l.b16 %v257
      %v564 = vpack.c.b16 %v549, %v548
      %v565 = vpack.c.b16 %v551, %v550
      %v566 = vpack.c.b16 %v553, %v552
      %v567 = vpack.c.b16 %v555, %v554
      %v568 = vpack.c.b16 %v557, %v556
      %v569 = vpack.c.b16 %v559, %v558
      %v570 = vpack.c.b16 %v561, %v560
      %v571 = vpack.c.b16 %v563, %v562
      %580 = vmatprep.subr.bf16.mxu0 0
      %581 = vmatpush1.bf16.msra.mxu0 %v571
      %582 = vmatprep.subr.bf16.mxu0 0
      %583 = vmatpush1.bf16.msra.mxu0 %v570
      %584 = vmatprep.subr.bf16.mxu0 0
      %585 = vmatpush1.bf16.msra.mxu0 %v569
      %586 = vmatprep.subr.bf16.mxu0 0
      %587 = vmatpush1.bf16.msra.mxu0 %v568
      %588 = vmatprep.subr.bf16.mxu0 0
      %589 = vmatpush1.bf16.msra.mxu0 %v567
      %590 = vmatprep.subr.bf16.mxu0 0
      %591 = vmatpush1.bf16.msra.mxu0 %v566
      %592 = vmatprep.subr.bf16.mxu0 0
      %593 = vmatpush1.bf16.msra.mxu0 %v565
      %594 = vmatprep.subr.bf16.mxu0 0
      %595 = vmatpush1.bf16.msra.mxu0 %v564
      %596 = vmatprep.subr.bf16.mxu0 0
      %597 = vmatpush2.bf16.msra.mxu0 0
      %598 = vmatprep.subr.bf16.mxu0 0
      %599 = vmatpush2.bf16.msra.mxu0 0
      %600 = vmatprep.subr.bf16.mxu0 0
      %601 = vmatpush2.bf16.msra.mxu0 0
      %602 = vmatprep.subr.bf16.mxu0 0
      %603 = vmatpush2.bf16.msra.mxu0 0
      %604 = vmatprep.subr.bf16.mxu0 0
      %605 = vmatpush2.bf16.msra.mxu0 0
      %606 = vmatprep.subr.bf16.mxu0 0
      %607 = vmatpush2.bf16.msra.mxu0 0
      %608 = vmatprep.subr.bf16.mxu0 0
      %609 = vmatpush2.bf16.msra.mxu0 0
      %610 = vmatprep.subr.bf16.mxu0 0
      %611 = vmatpush2.bf16.msra.mxu0 0
      %612 = vmatprep.mubr.bf16.mxu0 0
      %613 = vmatmul.mubr.bf16.gmra.mxu0 %v226
      %v614 = vpop.f32.mrf.mxu0
      %v615 = vadd.f32 %v406, %v614
      %v616 = vpop.f32.mrf.mxu0
      %v617 = vpop.f32.mrf.mxu0
      %v618 = vadd.f32 %v409, %v617
      %v619 = vpop.f32.mrf.mxu0
      %620 = vmatprep.mubr.bf16.mxu0 0
      %621 = vmatmul.mubr.bf16.gmra.mxu0 %v227
      %v622 = vpop.f32.mrf.mxu0
      %v623 = vadd.f32 %v414, %v622
      %v624 = vpop.f32.mrf.mxu0
      %v625 = vpop.f32.mrf.mxu0
      %v626 = vadd.f32 %v417, %v625
      %v627 = vpop.f32.mrf.mxu0
      %628 = vmatprep.mubr.bf16.mxu0 0
      %629 = vmatmul.mubr.bf16.gmra.mxu0 %v228
      %v630 = vpop.f32.mrf.mxu0
      %v631 = vadd.f32 %v422, %v630
      %v632 = vpop.f32.mrf.mxu0
      %v633 = vpop.f32.mrf.mxu0
      %v634 = vadd.f32 %v425, %v633
      %v635 = vpop.f32.mrf.mxu0
      %636 = vmatprep.mubr.bf16.mxu0 0
      %637 = vmatmul.mubr.bf16.gmra.mxu0 %v229
      %v638 = vpop.f32.mrf.mxu0
      %v639 = vadd.f32 %v430, %v638
      %v640 = vpop.f32.mrf.mxu0
      %v641 = vpop.f32.mrf.mxu0
      %v642 = vadd.f32 %v433, %v641
      %v643 = vpop.f32.mrf.mxu0
      %644 = vmatprep.mubr.bf16.mxu0 0
      %645 = vmatmul.mubr.bf16.gmra.mxu0 %v230
      %v646 = vpop.f32.mrf.mxu0
      %v647 = vadd.f32 %v438, %v646
      %v648 = vpop.f32.mrf.mxu0
      %v649 = vpop.f32.mrf.mxu0
      %v650 = vadd.f32 %v441, %v649
      %v651 = vpop.f32.mrf.mxu0
      %652 = vmatprep.mubr.bf16.mxu0 0
      %653 = vmatmul.mubr.bf16.gmra.mxu0 %v231
      %v654 = vpop.f32.mrf.mxu0
      %v655 = vadd.f32 %v446, %v654
      %v656 = vpop.f32.mrf.mxu0
      %v657 = vpop.f32.mrf.mxu0
      %v658 = vadd.f32 %v449, %v657
      %v659 = vpop.f32.mrf.mxu0
      %660 = vmatprep.mubr.bf16.mxu0 0
      %661 = vmatmul.mubr.bf16.gmra.mxu0 %v232
      %v662 = vpop.f32.mrf.mxu0
      %v663 = vadd.f32 %v454, %v662
      %v664 = vpop.f32.mrf.mxu0
      %v665 = vpop.f32.mrf.mxu0
      %v666 = vadd.f32 %v457, %v665
      %v667 = vpop.f32.mrf.mxu0
      %668 = vmatprep.mubr.bf16.mxu0 0
      %669 = vmatmul.mubr.bf16.gmra.mxu0 %v233
      %v670 = vpop.f32.mrf.mxu0
      %v671 = vadd.f32 %v462, %v670
      %v672 = vpop.f32.mrf.mxu0
      %v673 = vpop.f32.mrf.mxu0
      %v674 = vadd.f32 %v465, %v673
      %v675 = vpop.f32.mrf.mxu0
      %676 = vmatprep.mubr.bf16.mxu0 0
      %677 = vmatmul.mubr.bf16.gmra.mxu0 %v234
      %v678 = vpop.f32.mrf.mxu0
      %v679 = vadd.f32 %v470, %v678
      %v680 = vpop.f32.mrf.mxu0
      %v681 = vpop.f32.mrf.mxu0
      %v682 = vadd.f32 %v473, %v681
      %v683 = vpop.f32.mrf.mxu0
      %684 = vmatprep.mubr.bf16.mxu0 0
      %685 = vmatmul.mubr.bf16.gmra.mxu0 %v235
      %v686 = vpop.f32.mrf.mxu0
      %v687 = vadd.f32 %v478, %v686
      %v688 = vpop.f32.mrf.mxu0
      %v689 = vpop.f32.mrf.mxu0
      %v690 = vadd.f32 %v481, %v689
      %v691 = vpop.f32.mrf.mxu0
      %692 = vmatprep.mubr.bf16.mxu0 0
      %693 = vmatmul.mubr.bf16.gmra.mxu0 %v236
      %v694 = vpop.f32.mrf.mxu0
      %v695 = vadd.f32 %v486, %v694
      %v696 = vpop.f32.mrf.mxu0
      %v697 = vpop.f32.mrf.mxu0
      %v698 = vadd.f32 %v489, %v697
      %v699 = vpop.f32.mrf.mxu0
      %700 = vmatprep.mubr.bf16.mxu0 0
      %701 = vmatmul.mubr.bf16.gmra.mxu0 %v237
      %v702 = vpop.f32.mrf.mxu0
      %v703 = vadd.f32 %v494, %v702
      %v704 = vpop.f32.mrf.mxu0
      %v705 = vpop.f32.mrf.mxu0
      %v706 = vadd.f32 %v497, %v705
      %v707 = vpop.f32.mrf.mxu0
      %708 = vmatprep.mubr.bf16.mxu0 0
      %709 = vmatmul.mubr.bf16.gmra.mxu0 %v238
      %v710 = vpop.f32.mrf.mxu0
      %v711 = vadd.f32 %v502, %v710
      %v712 = vpop.f32.mrf.mxu0
      %v713 = vpop.f32.mrf.mxu0
      %v714 = vadd.f32 %v505, %v713
      %v715 = vpop.f32.mrf.mxu0
      %716 = vmatprep.mubr.bf16.mxu0 0
      %717 = vmatmul.mubr.bf16.gmra.mxu0 %v239
      %v718 = vpop.f32.mrf.mxu0
      %v719 = vadd.f32 %v510, %v718
      %v720 = vpop.f32.mrf.mxu0
      %v721 = vpop.f32.mrf.mxu0
      %v722 = vadd.f32 %v513, %v721
      %v723 = vpop.f32.mrf.mxu0
      %724 = vmatprep.mubr.bf16.mxu0 0
      %725 = vmatmul.mubr.bf16.gmra.mxu0 %v240
      %v726 = vpop.f32.mrf.mxu0
      %v727 = vadd.f32 %v518, %v726
      %v728 = vpop.f32.mrf.mxu0
      %v729 = vpop.f32.mrf.mxu0
      %v730 = vadd.f32 %v521, %v729
      %v731 = vpop.f32.mrf.mxu0
      %732 = vmatprep.mubr.bf16.mxu0 0
      %733 = vmatmul.mubr.bf16.gmra.mxu0 %v241
      %v734 = vpop.f32.mrf.mxu0
      %v735 = vadd.f32 %v526, %v734
      %v736 = vpop.f32.mrf.mxu0
      %v737 = vpop.f32.mrf.mxu0
      %v738 = vadd.f32 %v529, %v737
      %v739 = vpop.f32.mrf.mxu0
      %740 = vdwg.mxu0
      %v741 = vld [vmem:[%s187 + $0x2] sm:$0xff]
      %v742 = vld [vmem:[%s187 + $0xa] sm:$0xff]
      %v743 = vld [vmem:[%s187 + $0x1a] sm:$0xff]
      %v744 = vld [vmem:[%s187 + $0x22] sm:$0xff]
      %v745 = vld [vmem:[%s187 + $0x32] sm:$0xff]
      %v746 = vld [vmem:[%s187 + $0x3a] sm:$0xff]
      %v747 = vld [vmem:[%s187 + $0x4a] sm:$0xff]
      %v748 = vld [vmem:[%s187 + $0x52] sm:$0xff]
      %v749 = vld [vmem:[%s187 + $0x62] sm:$0xff]
      %v750 = vld [vmem:[%s187 + $0x6a] sm:$0xff]
      %v751 = vld [vmem:[%s187 + $0x7a] sm:$0xff]
      %v752 = vld [vmem:[%s187 + $0x82] sm:$0xff]
      %v753 = vld [vmem:[%s187 + $0x92] sm:$0xff]
      %v754 = vld [vmem:[%s187 + $0x9a] sm:$0xff]
      %v755 = vld [vmem:[%s187 + $0xaa] sm:$0xff]
      %v756 = vld [vmem:[%s187 + $0xb2] sm:$0xff]
      %v757 = vld [vmem:[%s187 + $0xc2] sm:$0xff]
      %v758 = vld [vmem:[%s187 + $0xca] sm:$0xff]
      %v759 = vld [vmem:[%s187 + $0xda] sm:$0xff]
      %v760 = vld [vmem:[%s187 + $0xe2] sm:$0xff]
      %v761 = vld [vmem:[%s187 + $0xf2] sm:$0xff]
      %v762 = vld [vmem:[%s187 + $0xfa] sm:$0xff]
      %v763 = vld [vmem:[%s187 + $0x10a] sm:$0xff]
      %v764 = vld [vmem:[%s187 + $0x112] sm:$0xff]
      %v765 = vld [vmem:[%s187 + $0x122] sm:$0xff]
      %v766 = vld [vmem:[%s187 + $0x12a] sm:$0xff]
      %v767 = vld [vmem:[%s187 + $0x13a] sm:$0xff]
      %v768 = vld [vmem:[%s187 + $0x142] sm:$0xff]
      %v769 = vld [vmem:[%s187 + $0x152] sm:$0xff]
      %v770 = vld [vmem:[%s187 + $0x15a] sm:$0xff]
      %v771 = vld [vmem:[%s187 + $0x16a] sm:$0xff]
      %v772 = vld [vmem:[%s187 + $0x172] sm:$0xff]
      %v773 = vpack.c.bf16 %v742, %v741
      %v774 = vpack.c.bf16 %v744, %v743
      %v775 = vpack.c.bf16 %v746, %v745
      %v776 = vpack.c.bf16 %v748, %v747
      %v777 = vpack.c.bf16 %v750, %v749
      %v778 = vpack.c.bf16 %v752, %v751
      %v779 = vpack.c.bf16 %v754, %v753
      %v780 = vpack.c.bf16 %v756, %v755
      %v781 = vpack.c.bf16 %v758, %v757
      %v782 = vpack.c.bf16 %v760, %v759
      %v783 = vpack.c.bf16 %v762, %v761
      %v784 = vpack.c.bf16 %v764, %v763
      %v785 = vpack.c.bf16 %v766, %v765
      %v786 = vpack.c.bf16 %v768, %v767
      %v787 = vpack.c.bf16 %v770, %v769
      %v788 = vpack.c.bf16 %v772, %v771
      %s789 = scalar_lea.vmem %s1, 128
      %v790 = vld [vmem:[%s789] sm:$0xf]
      %v791 = vld [vmem:[%s789 + $0x4] sm:$0xf]
      %v792 = vld [vmem:[%s789 + $0x8] sm:$0xf]
      %v793 = vld [vmem:[%s789 + $0xc] sm:$0xf]
      %v794 = vld [vmem:[%s789 + $0x10] sm:$0xf]
      %v795 = vld [vmem:[%s789 + $0x14] sm:$0xf]
      %v796 = vld [vmem:[%s789 + $0x18] sm:$0xf]
      %v797 = vld [vmem:[%s789 + $0x1c] sm:$0xf]
      %v798 = vld [vmem:[%s789 + $0x20] sm:$0xf]
      %v799 = vld [vmem:[%s789 + $0x24] sm:$0xf]
      %v800 = vld [vmem:[%s789 + $0x28] sm:$0xf]
      %v801 = vld [vmem:[%s789 + $0x2c] sm:$0xf]
      %v802 = vld [vmem:[%s789 + $0x30] sm:$0xf]
      %v803 = vld [vmem:[%s789 + $0x34] sm:$0xf]
      %v804 = vld [vmem:[%s789 + $0x38] sm:$0xf]
      %v805 = vld [vmem:[%s789 + $0x3c] sm:$0xf]
      %v822 = vunpack.c.l.b16 %v790
      %v823 = vunpack.c.l.b16 %v791
      %v824 = vunpack.c.l.b16 %v792
      %v825 = vunpack.c.l.b16 %v793
      %v826 = vunpack.c.l.b16 %v794
      %v827 = vunpack.c.l.b16 %v795
      %v828 = vunpack.c.l.b16 %v796
      %v829 = vunpack.c.l.b16 %v797
      %v830 = vunpack.c.l.b16 %v798
      %v831 = vunpack.c.l.b16 %v799
      %v832 = vunpack.c.l.b16 %v800
      %v833 = vunpack.c.l.b16 %v801
      %v834 = vunpack.c.l.b16 %v802
      %v835 = vunpack.c.l.b16 %v803
      %v836 = vunpack.c.l.b16 %v804
      %v837 = vunpack.c.l.b16 %v805
      %v838 = vpack.c.b16 %v823, %v822
      %v839 = vpack.c.b16 %v825, %v824
      %v840 = vpack.c.b16 %v827, %v826
      %v841 = vpack.c.b16 %v829, %v828
      %v842 = vpack.c.b16 %v831, %v830
      %v843 = vpack.c.b16 %v833, %v832
      %v844 = vpack.c.b16 %v835, %v834
      %v845 = vpack.c.b16 %v837, %v836
      %854 = vmatprep.subr.bf16.mxu0 0
      %855 = vmatpush1.bf16.msra.mxu0 %v845
      %856 = vmatprep.subr.bf16.mxu0 0
      %857 = vmatpush1.bf16.msra.mxu0 %v844
      %858 = vmatprep.subr.bf16.mxu0 0
      %859 = vmatpush1.bf16.msra.mxu0 %v843
      %860 = vmatprep.subr.bf16.mxu0 0
      %861 = vmatpush1.bf16.msra.mxu0 %v842
      %862 = vmatprep.subr.bf16.mxu0 0
      %863 = vmatpush1.bf16.msra.mxu0 %v841
      %864 = vmatprep.subr.bf16.mxu0 0
      %865 = vmatpush1.bf16.msra.mxu0 %v840
      %866 = vmatprep.subr.bf16.mxu0 0
      %867 = vmatpush1.bf16.msra.mxu0 %v839
      %868 = vmatprep.subr.bf16.mxu0 0
      %869 = vmatpush1.bf16.msra.mxu0 %v838
      %870 = vmatprep.subr.bf16.mxu0 0
      %871 = vmatpush2.bf16.msra.mxu0 0
      %872 = vmatprep.subr.bf16.mxu0 0
      %873 = vmatpush2.bf16.msra.mxu0 0
      %874 = vmatprep.subr.bf16.mxu0 0
      %875 = vmatpush2.bf16.msra.mxu0 0
      %876 = vmatprep.subr.bf16.mxu0 0
      %877 = vmatpush2.bf16.msra.mxu0 0
      %878 = vmatprep.subr.bf16.mxu0 0
      %879 = vmatpush2.bf16.msra.mxu0 0
      %880 = vmatprep.subr.bf16.mxu0 0
      %881 = vmatpush2.bf16.msra.mxu0 0
      %882 = vmatprep.subr.bf16.mxu0 0
      %883 = vmatpush2.bf16.msra.mxu0 0
      %884 = vmatprep.subr.bf16.mxu0 0
      %885 = vmatpush2.bf16.msra.mxu0 0
      %886 = vmatprep.mubr.bf16.mxu0 0
      %887 = vmatmul.mubr.bf16.gmra.mxu0 %v773
      %v888 = vpop.f32.mrf.mxu0
      %v889 = vadd.f32 0.0, %v888
      %v890 = vpop.f32.mrf.mxu0
      %v891 = vpop.f32.mrf.mxu0
      %v892 = vadd.f32 0.0, %v891
      %v893 = vpop.f32.mrf.mxu0
      %894 = vmatprep.mubr.bf16.mxu0 0
      %895 = vmatmul.mubr.bf16.gmra.mxu0 %v774
      %v896 = vpop.f32.mrf.mxu0
      %v897 = vadd.f32 0.0, %v896
      %v898 = vpop.f32.mrf.mxu0
      %v899 = vpop.f32.mrf.mxu0
      %v900 = vadd.f32 0.0, %v899
      %v901 = vpop.f32.mrf.mxu0
      %902 = vmatprep.mubr.bf16.mxu0 0
      %903 = vmatmul.mubr.bf16.gmra.mxu0 %v775
      %v904 = vpop.f32.mrf.mxu0
      %v905 = vadd.f32 0.0, %v904
      %v906 = vpop.f32.mrf.mxu0
      %v907 = vpop.f32.mrf.mxu0
      %v908 = vadd.f32 0.0, %v907
      %v909 = vpop.f32.mrf.mxu0
      %910 = vmatprep.mubr.bf16.mxu0 0
      %911 = vmatmul.mubr.bf16.gmra.mxu0 %v776
      %v912 = vpop.f32.mrf.mxu0
      %v913 = vadd.f32 0.0, %v912
      %v914 = vpop.f32.mrf.mxu0
      %v915 = vpop.f32.mrf.mxu0
      %v916 = vadd.f32 0.0, %v915
      %v917 = vpop.f32.mrf.mxu0
      %918 = vmatprep.mubr.bf16.mxu0 0
      %919 = vmatmul.mubr.bf16.gmra.mxu0 %v777
      %v920 = vpop.f32.mrf.mxu0
      %v921 = vadd.f32 0.0, %v920
      %v922 = vpop.f32.mrf.mxu0
      %v923 = vpop.f32.mrf.mxu0
      %v924 = vadd.f32 0.0, %v923
      %v925 = vpop.f32.mrf.mxu0
      %926 = vmatprep.mubr.bf16.mxu0 0
      %927 = vmatmul.mubr.bf16.gmra.mxu0 %v778
      %v928 = vpop.f32.mrf.mxu0
      %v929 = vadd.f32 0.0, %v928
      %v930 = vpop.f32.mrf.mxu0
      %v931 = vpop.f32.mrf.mxu0
      %v932 = vadd.f32 0.0, %v931
      %v933 = vpop.f32.mrf.mxu0
      %934 = vmatprep.mubr.bf16.mxu0 0
      %935 = vmatmul.mubr.bf16.gmra.mxu0 %v779
      %v936 = vpop.f32.mrf.mxu0
      %v937 = vadd.f32 0.0, %v936
      %v938 = vpop.f32.mrf.mxu0
      %v939 = vpop.f32.mrf.mxu0
      %v940 = vadd.f32 0.0, %v939
      %v941 = vpop.f32.mrf.mxu0
      %942 = vmatprep.mubr.bf16.mxu0 0
      %943 = vmatmul.mubr.bf16.gmra.mxu0 %v780
      %v944 = vpop.f32.mrf.mxu0
      %v945 = vadd.f32 0.0, %v944
      %v946 = vpop.f32.mrf.mxu0
      %v947 = vpop.f32.mrf.mxu0
      %v948 = vadd.f32 0.0, %v947
      %v949 = vpop.f32.mrf.mxu0
      %950 = vmatprep.mubr.bf16.mxu0 0
      %951 = vmatmul.mubr.bf16.gmra.mxu0 %v781
      %v952 = vpop.f32.mrf.mxu0
      %v953 = vadd.f32 0.0, %v952
      %v954 = vpop.f32.mrf.mxu0
      %v955 = vpop.f32.mrf.mxu0
      %v956 = vadd.f32 0.0, %v955
      %v957 = vpop.f32.mrf.mxu0
      %958 = vmatprep.mubr.bf16.mxu0 0
      %959 = vmatmul.mubr.bf16.gmra.mxu0 %v782
      %v960 = vpop.f32.mrf.mxu0
      %v961 = vadd.f32 0.0, %v960
      %v962 = vpop.f32.mrf.mxu0
      %v963 = vpop.f32.mrf.mxu0
      %v964 = vadd.f32 0.0, %v963
      %v965 = vpop.f32.mrf.mxu0
      %966 = vmatprep.mubr.bf16.mxu0 0
      %967 = vmatmul.mubr.bf16.gmra.mxu0 %v783
      %v968 = vpop.f32.mrf.mxu0
      %v969 = vadd.f32 0.0, %v968
      %v970 = vpop.f32.mrf.mxu0
      %v971 = vpop.f32.mrf.mxu0
      %v972 = vadd.f32 0.0, %v971
      %v973 = vpop.f32.mrf.mxu0
      %974 = vmatprep.mubr.bf16.mxu0 0
      %975 = vmatmul.mubr.bf16.gmra.mxu0 %v784
      %v976 = vpop.f32.mrf.mxu0
      %v977 = vadd.f32 0.0, %v976
      %v978 = vpop.f32.mrf.mxu0
      %v979 = vpop.f32.mrf.mxu0
      %v980 = vadd.f32 0.0, %v979
      %v981 = vpop.f32.mrf.mxu0
      %982 = vmatprep.mubr.bf16.mxu0 0
      %983 = vmatmul.mubr.bf16.gmra.mxu0 %v785
      %v984 = vpop.f32.mrf.mxu0
      %v985 = vadd.f32 0.0, %v984
      %v986 = vpop.f32.mrf.mxu0
      %v987 = vpop.f32.mrf.mxu0
      %v988 = vadd.f32 0.0, %v987
      %v989 = vpop.f32.mrf.mxu0
      %990 = vmatprep.mubr.bf16.mxu0 0
      %991 = vmatmul.mubr.bf16.gmra.mxu0 %v786
      %v992 = vpop.f32.mrf.mxu0
      %v993 = vadd.f32 0.0, %v992
      %v994 = vpop.f32.mrf.mxu0
      %v995 = vpop.f32.mrf.mxu0
      %v996 = vadd.f32 0.0, %v995
      %v997 = vpop.f32.mrf.mxu0
      %998 = vmatprep.mubr.bf16.mxu0 0
      %999 = vmatmul.mubr.bf16.gmra.mxu0 %v787
      %v1000 = vpop.f32.mrf.mxu0
      %v1001 = vadd.f32 0.0, %v1000
      %v1002 = vpop.f32.mrf.mxu0
      %v1003 = vpop.f32.mrf.mxu0
      %v1004 = vadd.f32 0.0, %v1003
      %v1005 = vpop.f32.mrf.mxu0
      %1006 = vmatprep.mubr.bf16.mxu0 0
      %1007 = vmatmul.mubr.bf16.gmra.mxu0 %v788
      %v1008 = vpop.f32.mrf.mxu0
      %v1009 = vadd.f32 0.0, %v1008
      %v1010 = vpop.f32.mrf.mxu0
      %v1011 = vpop.f32.mrf.mxu0
      %v1012 = vadd.f32 0.0, %v1011
      %v1013 = vpop.f32.mrf.mxu0
      %1014 = vdwg.mxu0
      %v1015 = vadd.f32 %v615, %v889
      %v1016 = vadd.f32 %v618, %v892
      %v1017 = vadd.f32 %v623, %v897
      %v1018 = vadd.f32 %v626, %v900
      %v1019 = vadd.f32 %v631, %v905
      %v1020 = vadd.f32 %v634, %v908
      %v1021 = vadd.f32 %v639, %v913
      %v1022 = vadd.f32 %v642, %v916
      %v1023 = vadd.f32 %v647, %v921
      %v1024 = vadd.f32 %v650, %v924
      %v1025 = vadd.f32 %v655, %v929
      %v1026 = vadd.f32 %v658, %v932
      %v1027 = vadd.f32 %v663, %v937
      %v1028 = vadd.f32 %v666, %v940
      %v1029 = vadd.f32 %v671, %v945
      %v1030 = vadd.f32 %v674, %v948
      %v1031 = vadd.f32 %v679, %v953
      %v1032 = vadd.f32 %v682, %v956
      %v1033 = vadd.f32 %v687, %v961
      %v1034 = vadd.f32 %v690, %v964
      %v1035 = vadd.f32 %v695, %v969
      %v1036 = vadd.f32 %v698, %v972
      %v1037 = vadd.f32 %v703, %v977
      %v1038 = vadd.f32 %v706, %v980
      %v1039 = vadd.f32 %v711, %v985
      %v1040 = vadd.f32 %v714, %v988
      %v1041 = vadd.f32 %v719, %v993
      %v1042 = vadd.f32 %v722, %v996
      %v1043 = vadd.f32 %v727, %v1001
      %v1044 = vadd.f32 %v730, %v1004
      %v1045 = vadd.f32 %v735, %v1009
      %v1046 = vadd.f32 %v738, %v1012
      %s1047 = scalar_lea.vmem %s187, 24
      %v1048 = vld [vmem:[%s1047] sm:$0xff]
      %v1049 = vld [vmem:[%s1047 + $0x8] sm:$0xff]
      %v1050 = vld [vmem:[%s1047 + $0x18] sm:$0xff]
      %v1051 = vld [vmem:[%s1047 + $0x20] sm:$0xff]
      %v1052 = vld [vmem:[%s1047 + $0x30] sm:$0xff]
      %v1053 = vld [vmem:[%s1047 + $0x38] sm:$0xff]
      %v1054 = vld [vmem:[%s1047 + $0x48] sm:$0xff]
      %v1055 = vld [vmem:[%s1047 + $0x50] sm:$0xff]
      %v1056 = vld [vmem:[%s1047 + $0x60] sm:$0xff]
      %v1057 = vld [vmem:[%s1047 + $0x68] sm:$0xff]
      %v1058 = vld [vmem:[%s1047 + $0x78] sm:$0xff]
      %v1059 = vld [vmem:[%s1047 + $0x80] sm:$0xff]
      %v1060 = vld [vmem:[%s1047 + $0x90] sm:$0xff]
      %v1061 = vld [vmem:[%s1047 + $0x98] sm:$0xff]
      %v1062 = vld [vmem:[%s1047 + $0xa8] sm:$0xff]
      %v1063 = vld [vmem:[%s1047 + $0xb0] sm:$0xff]
      %v1064 = vld [vmem:[%s1047 + $0xc0] sm:$0xff]
      %v1065 = vld [vmem:[%s1047 + $0xc8] sm:$0xff]
      %v1066 = vld [vmem:[%s1047 + $0xd8] sm:$0xff]
      %v1067 = vld [vmem:[%s1047 + $0xe0] sm:$0xff]
      %v1068 = vld [vmem:[%s1047 + $0xf0] sm:$0xff]
      %v1069 = vld [vmem:[%s1047 + $0xf8] sm:$0xff]
      %v1070 = vld [vmem:[%s1047 + $0x108] sm:$0xff]
      %v1071 = vld [vmem:[%s1047 + $0x110] sm:$0xff]
      %v1072 = vld [vmem:[%s1047 + $0x120] sm:$0xff]
      %v1073 = vld [vmem:[%s1047 + $0x128] sm:$0xff]
      %v1074 = vld [vmem:[%s1047 + $0x138] sm:$0xff]
      %v1075 = vld [vmem:[%s1047 + $0x140] sm:$0xff]
      %v1076 = vld [vmem:[%s1047 + $0x150] sm:$0xff]
      %v1077 = vld [vmem:[%s1047 + $0x158] sm:$0xff]
      %v1078 = vld [vmem:[%s1047 + $0x168] sm:$0xff]
      %v1079 = vld [vmem:[%s1047 + $0x170] sm:$0xff]
      %v1080 = vpack.c.bf16 %v1049, %v1048
      %v1081 = vpack.c.bf16 %v1051, %v1050
      %v1082 = vpack.c.bf16 %v1053, %v1052
      %v1083 = vpack.c.bf16 %v1055, %v1054
      %v1084 = vpack.c.bf16 %v1057, %v1056
      %v1085 = vpack.c.bf16 %v1059, %v1058
      %v1086 = vpack.c.bf16 %v1061, %v1060
      %v1087 = vpack.c.bf16 %v1063, %v1062
      %v1088 = vpack.c.bf16 %v1065, %v1064
      %v1089 = vpack.c.bf16 %v1067, %v1066
      %v1090 = vpack.c.bf16 %v1069, %v1068
      %v1091 = vpack.c.bf16 %v1071, %v1070
      %v1092 = vpack.c.bf16 %v1073, %v1072
      %v1093 = vpack.c.bf16 %v1075, %v1074
      %v1094 = vpack.c.bf16 %v1077, %v1076
      %v1095 = vpack.c.bf16 %v1079, %v1078
      %s1096 = scalar_lea.vmem %s1, 192
      %v1097 = vld [vmem:[%s1096] sm:$0xf]
      %v1098 = vld [vmem:[%s1096 + $0x4] sm:$0xf]
      %v1099 = vld [vmem:[%s1096 + $0x8] sm:$0xf]
      %v1100 = vld [vmem:[%s1096 + $0xc] sm:$0xf]
      %v1101 = vld [vmem:[%s1096 + $0x10] sm:$0xf]
      %v1102 = vld [vmem:[%s1096 + $0x14] sm:$0xf]
      %v1103 = vld [vmem:[%s1096 + $0x18] sm:$0xf]
      %v1104 = vld [vmem:[%s1096 + $0x1c] sm:$0xf]
      %v1105 = vld [vmem:[%s1096 + $0x20] sm:$0xf]
      %v1106 = vld [vmem:[%s1096 + $0x24] sm:$0xf]
      %v1107 = vld [vmem:[%s1096 + $0x28] sm:$0xf]
      %v1108 = vld [vmem:[%s1096 + $0x2c] sm:$0xf]
      %v1109 = vld [vmem:[%s1096 + $0x30] sm:$0xf]
      %v1110 = vld [vmem:[%s1096 + $0x34] sm:$0xf]
      %v1111 = vld [vmem:[%s1096 + $0x38] sm:$0xf]
      %v1112 = vld [vmem:[%s1096 + $0x3c] sm:$0xf]
      %v1129 = vunpack.c.l.b16 %v1097
      %v1130 = vunpack.c.l.b16 %v1098
      %v1131 = vunpack.c.l.b16 %v1099
      %v1132 = vunpack.c.l.b16 %v1100
      %v1133 = vunpack.c.l.b16 %v1101
      %v1134 = vunpack.c.l.b16 %v1102
      %v1135 = vunpack.c.l.b16 %v1103
      %v1136 = vunpack.c.l.b16 %v1104
      %v1137 = vunpack.c.l.b16 %v1105
      %v1138 = vunpack.c.l.b16 %v1106
      %v1139 = vunpack.c.l.b16 %v1107
      %v1140 = vunpack.c.l.b16 %v1108
      %v1141 = vunpack.c.l.b16 %v1109
      %v1142 = vunpack.c.l.b16 %v1110
      %v1143 = vunpack.c.l.b16 %v1111
      %v1144 = vunpack.c.l.b16 %v1112
      %v1145 = vpack.c.b16 %v1130, %v1129
      %v1146 = vpack.c.b16 %v1132, %v1131
      %v1147 = vpack.c.b16 %v1134, %v1133
      %v1148 = vpack.c.b16 %v1136, %v1135
      %v1149 = vpack.c.b16 %v1138, %v1137
      %v1150 = vpack.c.b16 %v1140, %v1139
      %v1151 = vpack.c.b16 %v1142, %v1141
      %v1152 = vpack.c.b16 %v1144, %v1143
      %1161 = vmatprep.subr.bf16.mxu0 0
      %1162 = vmatpush1.bf16.msra.mxu0 %v1152
      %1163 = vmatprep.subr.bf16.mxu0 0
      %1164 = vmatpush1.bf16.msra.mxu0 %v1151
      %1165 = vmatprep.subr.bf16.mxu0 0
      %1166 = vmatpush1.bf16.msra.mxu0 %v1150
      %1167 = vmatprep.subr.bf16.mxu0 0
      %1168 = vmatpush1.bf16.msra.mxu0 %v1149
      %1169 = vmatprep.subr.bf16.mxu0 0
      %1170 = vmatpush1.bf16.msra.mxu0 %v1148
      %1171 = vmatprep.subr.bf16.mxu0 0
      %1172 = vmatpush1.bf16.msra.mxu0 %v1147
      %1173 = vmatprep.subr.bf16.mxu0 0
      %1174 = vmatpush1.bf16.msra.mxu0 %v1146
      %1175 = vmatprep.subr.bf16.mxu0 0
      %1176 = vmatpush1.bf16.msra.mxu0 %v1145
      %1177 = vmatprep.subr.bf16.mxu0 0
      %1178 = vmatpush2.bf16.msra.mxu0 0
      %1179 = vmatprep.subr.bf16.mxu0 0
      %1180 = vmatpush2.bf16.msra.mxu0 0
      %1181 = vmatprep.subr.bf16.mxu0 0
      %1182 = vmatpush2.bf16.msra.mxu0 0
      %1183 = vmatprep.subr.bf16.mxu0 0
      %1184 = vmatpush2.bf16.msra.mxu0 0
      %1185 = vmatprep.subr.bf16.mxu0 0
      %1186 = vmatpush2.bf16.msra.mxu0 0
      %1187 = vmatprep.subr.bf16.mxu0 0
      %1188 = vmatpush2.bf16.msra.mxu0 0
      %1189 = vmatprep.subr.bf16.mxu0 0
      %1190 = vmatpush2.bf16.msra.mxu0 0
      %1191 = vmatprep.subr.bf16.mxu0 0
      %1192 = vmatpush2.bf16.msra.mxu0 0
      %1193 = vmatprep.mubr.bf16.mxu0 0
      %1194 = vmatmul.mubr.bf16.gmra.mxu0 %v1080
      %v1195 = vpop.f32.mrf.mxu0
      %v1196 = vadd.f32 0.0, %v1195
      %v1197 = vpop.f32.mrf.mxu0
      %v1198 = vpop.f32.mrf.mxu0
      %v1199 = vadd.f32 0.0, %v1198
      %v1200 = vpop.f32.mrf.mxu0
      %1201 = vmatprep.mubr.bf16.mxu0 0
      %1202 = vmatmul.mubr.bf16.gmra.mxu0 %v1081
      %v1203 = vpop.f32.mrf.mxu0
      %v1204 = vadd.f32 0.0, %v1203
      %v1205 = vpop.f32.mrf.mxu0
      %v1206 = vpop.f32.mrf.mxu0
      %v1207 = vadd.f32 0.0, %v1206
      %v1208 = vpop.f32.mrf.mxu0
      %1209 = vmatprep.mubr.bf16.mxu0 0
      %1210 = vmatmul.mubr.bf16.gmra.mxu0 %v1082
      %v1211 = vpop.f32.mrf.mxu0
      %v1212 = vadd.f32 0.0, %v1211
      %v1213 = vpop.f32.mrf.mxu0
      %v1214 = vpop.f32.mrf.mxu0
      %v1215 = vadd.f32 0.0, %v1214
      %v1216 = vpop.f32.mrf.mxu0
      %1217 = vmatprep.mubr.bf16.mxu0 0
      %1218 = vmatmul.mubr.bf16.gmra.mxu0 %v1083
      %v1219 = vpop.f32.mrf.mxu0
      %v1220 = vadd.f32 0.0, %v1219
      %v1221 = vpop.f32.mrf.mxu0
      %v1222 = vpop.f32.mrf.mxu0
      %v1223 = vadd.f32 0.0, %v1222
      %v1224 = vpop.f32.mrf.mxu0
      %1225 = vmatprep.mubr.bf16.mxu0 0
      %1226 = vmatmul.mubr.bf16.gmra.mxu0 %v1084
      %v1227 = vpop.f32.mrf.mxu0
      %v1228 = vadd.f32 0.0, %v1227
      %v1229 = vpop.f32.mrf.mxu0
      %v1230 = vpop.f32.mrf.mxu0
      %v1231 = vadd.f32 0.0, %v1230
      %v1232 = vpop.f32.mrf.mxu0
      %1233 = vmatprep.mubr.bf16.mxu0 0
      %1234 = vmatmul.mubr.bf16.gmra.mxu0 %v1085
      %v1235 = vpop.f32.mrf.mxu0
      %v1236 = vadd.f32 0.0, %v1235
      %v1237 = vpop.f32.mrf.mxu0
      %v1238 = vpop.f32.mrf.mxu0
      %v1239 = vadd.f32 0.0, %v1238
      %v1240 = vpop.f32.mrf.mxu0
      %1241 = vmatprep.mubr.bf16.mxu0 0
      %1242 = vmatmul.mubr.bf16.gmra.mxu0 %v1086
      %v1243 = vpop.f32.mrf.mxu0
      %v1244 = vadd.f32 0.0, %v1243
      %v1245 = vpop.f32.mrf.mxu0
      %v1246 = vpop.f32.mrf.mxu0
      %v1247 = vadd.f32 0.0, %v1246
      %v1248 = vpop.f32.mrf.mxu0
      %1249 = vmatprep.mubr.bf16.mxu0 0
      %1250 = vmatmul.mubr.bf16.gmra.mxu0 %v1087
      %v1251 = vpop.f32.mrf.mxu0
      %v1252 = vadd.f32 0.0, %v1251
      %v1253 = vpop.f32.mrf.mxu0
      %v1254 = vpop.f32.mrf.mxu0
      %v1255 = vadd.f32 0.0, %v1254
      %v1256 = vpop.f32.mrf.mxu0
      %1257 = vmatprep.mubr.bf16.mxu0 0
      %1258 = vmatmul.mubr.bf16.gmra.mxu0 %v1088
      %v1259 = vpop.f32.mrf.mxu0
      %v1260 = vadd.f32 0.0, %v1259
      %v1261 = vpop.f32.mrf.mxu0
      %v1262 = vpop.f32.mrf.mxu0
      %v1263 = vadd.f32 0.0, %v1262
      %v1264 = vpop.f32.mrf.mxu0
      %1265 = vmatprep.mubr.bf16.mxu0 0
      %1266 = vmatmul.mubr.bf16.gmra.mxu0 %v1089
      %v1267 = vpop.f32.mrf.mxu0
      %v1268 = vadd.f32 0.0, %v1267
      %v1269 = vpop.f32.mrf.mxu0
      %v1270 = vpop.f32.mrf.mxu0
      %v1271 = vadd.f32 0.0, %v1270
      %v1272 = vpop.f32.mrf.mxu0
      %1273 = vmatprep.mubr.bf16.mxu0 0
      %1274 = vmatmul.mubr.bf16.gmra.mxu0 %v1090
      %v1275 = vpop.f32.mrf.mxu0
      %v1276 = vadd.f32 0.0, %v1275
      %v1277 = vpop.f32.mrf.mxu0
      %v1278 = vpop.f32.mrf.mxu0
      %v1279 = vadd.f32 0.0, %v1278
      %v1280 = vpop.f32.mrf.mxu0
      %1281 = vmatprep.mubr.bf16.mxu0 0
      %1282 = vmatmul.mubr.bf16.gmra.mxu0 %v1091
      %v1283 = vpop.f32.mrf.mxu0
      %v1284 = vadd.f32 0.0, %v1283
      %v1285 = vpop.f32.mrf.mxu0
      %v1286 = vpop.f32.mrf.mxu0
      %v1287 = vadd.f32 0.0, %v1286
      %v1288 = vpop.f32.mrf.mxu0
      %1289 = vmatprep.mubr.bf16.mxu0 0
      %1290 = vmatmul.mubr.bf16.gmra.mxu0 %v1092
      %v1291 = vpop.f32.mrf.mxu0
      %v1292 = vadd.f32 0.0, %v1291
      %v1293 = vpop.f32.mrf.mxu0
      %v1294 = vpop.f32.mrf.mxu0
      %v1295 = vadd.f32 0.0, %v1294
      %v1296 = vpop.f32.mrf.mxu0
      %1297 = vmatprep.mubr.bf16.mxu0 0
      %1298 = vmatmul.mubr.bf16.gmra.mxu0 %v1093
      %v1299 = vpop.f32.mrf.mxu0
      %v1300 = vadd.f32 0.0, %v1299
      %v1301 = vpop.f32.mrf.mxu0
      %v1302 = vpop.f32.mrf.mxu0
      %v1303 = vadd.f32 0.0, %v1302
      %v1304 = vpop.f32.mrf.mxu0
      %1305 = vmatprep.mubr.bf16.mxu0 0
      %1306 = vmatmul.mubr.bf16.gmra.mxu0 %v1094
      %v1307 = vpop.f32.mrf.mxu0
      %v1308 = vadd.f32 0.0, %v1307
      %v1309 = vpop.f32.mrf.mxu0
      %v1310 = vpop.f32.mrf.mxu0
      %v1311 = vadd.f32 0.0, %v1310
      %v1312 = vpop.f32.mrf.mxu0
      %1313 = vmatprep.mubr.bf16.mxu0 0
      %1314 = vmatmul.mubr.bf16.gmra.mxu0 %v1095
      %v1315 = vpop.f32.mrf.mxu0
      %v1316 = vadd.f32 0.0, %v1315
      %v1317 = vpop.f32.mrf.mxu0
      %v1318 = vpop.f32.mrf.mxu0
      %v1319 = vadd.f32 0.0, %v1318
      %v1320 = vpop.f32.mrf.mxu0
      %1321 = vdwg.mxu0
      %v1322 = vadd.f32 %v1015, %v1196
      %v1323 = vadd.f32 %v1016, %v1199
      %v1324 = vadd.f32 %v1017, %v1204
      %v1325 = vadd.f32 %v1018, %v1207
      %v1326 = vadd.f32 %v1019, %v1212
      %v1327 = vadd.f32 %v1020, %v1215
      %v1328 = vadd.f32 %v1021, %v1220
      %v1329 = vadd.f32 %v1022, %v1223
      %v1330 = vadd.f32 %v1023, %v1228
      %v1331 = vadd.f32 %v1024, %v1231
      %v1332 = vadd.f32 %v1025, %v1236
      %v1333 = vadd.f32 %v1026, %v1239
      %v1334 = vadd.f32 %v1027, %v1244
      %v1335 = vadd.f32 %v1028, %v1247
      %v1336 = vadd.f32 %v1029, %v1252
      %v1337 = vadd.f32 %v1030, %v1255
      %v1338 = vadd.f32 %v1031, %v1260
      %v1339 = vadd.f32 %v1032, %v1263
      %v1340 = vadd.f32 %v1033, %v1268
      %v1341 = vadd.f32 %v1034, %v1271
      %v1342 = vadd.f32 %v1035, %v1276
      %v1343 = vadd.f32 %v1036, %v1279
      %v1344 = vadd.f32 %v1037, %v1284
      %v1345 = vadd.f32 %v1038, %v1287
      %v1346 = vadd.f32 %v1039, %v1292
      %v1347 = vadd.f32 %v1040, %v1295
      %v1348 = vadd.f32 %v1041, %v1300
      %v1349 = vadd.f32 %v1042, %v1303
      %v1350 = vadd.f32 %v1043, %v1308
      %v1351 = vadd.f32 %v1044, %v1311
      %v1352 = vadd.f32 %v1045, %v1316
      %v1353 = vadd.f32 %v1046, %v1319
      %v1354 = vld [vmem:[%s1047 + $0x1] sm:$0xff]
      %v1355 = vld [vmem:[%s1047 + $0x9] sm:$0xff]
      %v1356 = vld [vmem:[%s1047 + $0x19] sm:$0xff]
      %v1357 = vld [vmem:[%s1047 + $0x21] sm:$0xff]
      %v1358 = vld [vmem:[%s1047 + $0x31] sm:$0xff]
      %v1359 = vld [vmem:[%s1047 + $0x39] sm:$0xff]
      %v1360 = vld [vmem:[%s1047 + $0x49] sm:$0xff]
      %v1361 = vld [vmem:[%s1047 + $0x51] sm:$0xff]
      %v1362 = vld [vmem:[%s1047 + $0x61] sm:$0xff]
      %v1363 = vld [vmem:[%s1047 + $0x69] sm:$0xff]
      %v1364 = vld [vmem:[%s1047 + $0x79] sm:$0xff]
      %v1365 = vld [vmem:[%s1047 + $0x81] sm:$0xff]
      %v1366 = vld [vmem:[%s1047 + $0x91] sm:$0xff]
      %v1367 = vld [vmem:[%s1047 + $0x99] sm:$0xff]
      %v1368 = vld [vmem:[%s1047 + $0xa9] sm:$0xff]
      %v1369 = vld [vmem:[%s1047 + $0xb1] sm:$0xff]
      %v1370 = vld [vmem:[%s1047 + $0xc1] sm:$0xff]
      %v1371 = vld [vmem:[%s1047 + $0xc9] sm:$0xff]
      %v1372 = vld [vmem:[%s1047 + $0xd9] sm:$0xff]
      %v1373 = vld [vmem:[%s1047 + $0xe1] sm:$0xff]
      %v1374 = vld [vmem:[%s1047 + $0xf1] sm:$0xff]
      %v1375 = vld [vmem:[%s1047 + $0xf9] sm:$0xff]
      %v1376 = vld [vmem:[%s1047 + $0x109] sm:$0xff]
      %v1377 = vld [vmem:[%s1047 + $0x111] sm:$0xff]
      %v1378 = vld [vmem:[%s1047 + $0x121] sm:$0xff]
      %v1379 = vld [vmem:[%s1047 + $0x129] sm:$0xff]
      %v1380 = vld [vmem:[%s1047 + $0x139] sm:$0xff]
      %v1381 = vld [vmem:[%s1047 + $0x141] sm:$0xff]
      %v1382 = vld [vmem:[%s1047 + $0x151] sm:$0xff]
      %v1383 = vld [vmem:[%s1047 + $0x159] sm:$0xff]
      %v1384 = vld [vmem:[%s1047 + $0x169] sm:$0xff]
      %v1385 = vld [vmem:[%s1047 + $0x171] sm:$0xff]
      %v1386 = vpack.c.bf16 %v1355, %v1354
      %v1387 = vpack.c.bf16 %v1357, %v1356
      %v1388 = vpack.c.bf16 %v1359, %v1358
      %v1389 = vpack.c.bf16 %v1361, %v1360
      %v1390 = vpack.c.bf16 %v1363, %v1362
      %v1391 = vpack.c.bf16 %v1365, %v1364
      %v1392 = vpack.c.bf16 %v1367, %v1366
      %v1393 = vpack.c.bf16 %v1369, %v1368
      %v1394 = vpack.c.bf16 %v1371, %v1370
      %v1395 = vpack.c.bf16 %v1373, %v1372
      %v1396 = vpack.c.bf16 %v1375, %v1374
      %v1397 = vpack.c.bf16 %v1377, %v1376
      %v1398 = vpack.c.bf16 %v1379, %v1378
      %v1399 = vpack.c.bf16 %v1381, %v1380
      %v1400 = vpack.c.bf16 %v1383, %v1382
      %v1401 = vpack.c.bf16 %v1385, %v1384
      %s1402 = scalar_lea.vmem %s1, 256
      %v1403 = vld [vmem:[%s1402] sm:$0xf]
      %v1404 = vld [vmem:[%s1402 + $0x4] sm:$0xf]
      %v1405 = vld [vmem:[%s1402 + $0x8] sm:$0xf]
      %v1406 = vld [vmem:[%s1402 + $0xc] sm:$0xf]
      %v1407 = vld [vmem:[%s1402 + $0x10] sm:$0xf]
      %v1408 = vld [vmem:[%s1402 + $0x14] sm:$0xf]
      %v1409 = vld [vmem:[%s1402 + $0x18] sm:$0xf]
      %v1410 = vld [vmem:[%s1402 + $0x1c] sm:$0xf]
      %v1411 = vld [vmem:[%s1402 + $0x20] sm:$0xf]
      %v1412 = vld [vmem:[%s1402 + $0x24] sm:$0xf]
      %v1413 = vld [vmem:[%s1402 + $0x28] sm:$0xf]
      %v1414 = vld [vmem:[%s1402 + $0x2c] sm:$0xf]
      %v1415 = vld [vmem:[%s1402 + $0x30] sm:$0xf]
      %v1416 = vld [vmem:[%s1402 + $0x34] sm:$0xf]
      %v1417 = vld [vmem:[%s1402 + $0x38] sm:$0xf]
      %v1418 = vld [vmem:[%s1402 + $0x3c] sm:$0xf]
      %v1435 = vunpack.c.l.b16 %v1403
      %v1436 = vunpack.c.l.b16 %v1404
      %v1437 = vunpack.c.l.b16 %v1405
      %v1438 = vunpack.c.l.b16 %v1406
      %v1439 = vunpack.c.l.b16 %v1407
      %v1440 = vunpack.c.l.b16 %v1408
      %v1441 = vunpack.c.l.b16 %v1409
      %v1442 = vunpack.c.l.b16 %v1410
      %v1443 = vunpack.c.l.b16 %v1411
      %v1444 = vunpack.c.l.b16 %v1412
      %v1445 = vunpack.c.l.b16 %v1413
      %v1446 = vunpack.c.l.b16 %v1414
      %v1447 = vunpack.c.l.b16 %v1415
      %v1448 = vunpack.c.l.b16 %v1416
      %v1449 = vunpack.c.l.b16 %v1417
      %v1450 = vunpack.c.l.b16 %v1418
      %v1451 = vpack.c.b16 %v1436, %v1435
      %v1452 = vpack.c.b16 %v1438, %v1437
      %v1453 = vpack.c.b16 %v1440, %v1439
      %v1454 = vpack.c.b16 %v1442, %v1441
      %v1455 = vpack.c.b16 %v1444, %v1443
      %v1456 = vpack.c.b16 %v1446, %v1445
      %v1457 = vpack.c.b16 %v1448, %v1447
      %v1458 = vpack.c.b16 %v1450, %v1449
      %1467 = vmatprep.subr.bf16.mxu0 0
      %1468 = vmatpush1.bf16.msra.mxu0 %v1458
      %1469 = vmatprep.subr.bf16.mxu0 0
      %1470 = vmatpush1.bf16.msra.mxu0 %v1457
      %1471 = vmatprep.subr.bf16.mxu0 0
      %1472 = vmatpush1.bf16.msra.mxu0 %v1456
      %1473 = vmatprep.subr.bf16.mxu0 0
      %1474 = vmatpush1.bf16.msra.mxu0 %v1455
      %1475 = vmatprep.subr.bf16.mxu0 0
      %1476 = vmatpush1.bf16.msra.mxu0 %v1454
      %1477 = vmatprep.subr.bf16.mxu0 0
      %1478 = vmatpush1.bf16.msra.mxu0 %v1453
      %1479 = vmatprep.subr.bf16.mxu0 0
      %1480 = vmatpush1.bf16.msra.mxu0 %v1452
      %1481 = vmatprep.subr.bf16.mxu0 0
      %1482 = vmatpush1.bf16.msra.mxu0 %v1451
      %1483 = vmatprep.subr.bf16.mxu0 0
      %1484 = vmatpush2.bf16.msra.mxu0 0
      %1485 = vmatprep.subr.bf16.mxu0 0
      %1486 = vmatpush2.bf16.msra.mxu0 0
      %1487 = vmatprep.subr.bf16.mxu0 0
      %1488 = vmatpush2.bf16.msra.mxu0 0
      %1489 = vmatprep.subr.bf16.mxu0 0
      %1490 = vmatpush2.bf16.msra.mxu0 0
      %1491 = vmatprep.subr.bf16.mxu0 0
      %1492 = vmatpush2.bf16.msra.mxu0 0
      %1493 = vmatprep.subr.bf16.mxu0 0
      %1494 = vmatpush2.bf16.msra.mxu0 0
      %1495 = vmatprep.subr.bf16.mxu0 0
      %1496 = vmatpush2.bf16.msra.mxu0 0
      %1497 = vmatprep.subr.bf16.mxu0 0
      %1498 = vmatpush2.bf16.msra.mxu0 0
      %1499 = vmatprep.mubr.bf16.mxu0 0
      %1500 = vmatmul.mubr.bf16.gmra.mxu0 %v1386
      %v1501 = vpop.f32.mrf.mxu0
      %v1502 = vadd.f32 0.0, %v1501
      %v1503 = vpop.f32.mrf.mxu0
      %v1504 = vpop.f32.mrf.mxu0
      %v1505 = vadd.f32 0.0, %v1504
      %v1506 = vpop.f32.mrf.mxu0
      %1507 = vmatprep.mubr.bf16.mxu0 0
      %1508 = vmatmul.mubr.bf16.gmra.mxu0 %v1387
      %v1509 = vpop.f32.mrf.mxu0
      %v1510 = vadd.f32 0.0, %v1509
      %v1511 = vpop.f32.mrf.mxu0
      %v1512 = vpop.f32.mrf.mxu0
      %v1513 = vadd.f32 0.0, %v1512
      %v1514 = vpop.f32.mrf.mxu0
      %1515 = vmatprep.mubr.bf16.mxu0 0
      %1516 = vmatmul.mubr.bf16.gmra.mxu0 %v1388
      %v1517 = vpop.f32.mrf.mxu0
      %v1518 = vadd.f32 0.0, %v1517
      %v1519 = vpop.f32.mrf.mxu0
      %v1520 = vpop.f32.mrf.mxu0
      %v1521 = vadd.f32 0.0, %v1520
      %v1522 = vpop.f32.mrf.mxu0
      %1523 = vmatprep.mubr.bf16.mxu0 0
      %1524 = vmatmul.mubr.bf16.gmra.mxu0 %v1389
      %v1525 = vpop.f32.mrf.mxu0
      %v1526 = vadd.f32 0.0, %v1525
      %v1527 = vpop.f32.mrf.mxu0
      %v1528 = vpop.f32.mrf.mxu0
      %v1529 = vadd.f32 0.0, %v1528
      %v1530 = vpop.f32.mrf.mxu0
      %1531 = vmatprep.mubr.bf16.mxu0 0
      %1532 = vmatmul.mubr.bf16.gmra.mxu0 %v1390
      %v1533 = vpop.f32.mrf.mxu0
      %v1534 = vadd.f32 0.0, %v1533
      %v1535 = vpop.f32.mrf.mxu0
      %v1536 = vpop.f32.mrf.mxu0
      %v1537 = vadd.f32 0.0, %v1536
      %v1538 = vpop.f32.mrf.mxu0
      %1539 = vmatprep.mubr.bf16.mxu0 0
      %1540 = vmatmul.mubr.bf16.gmra.mxu0 %v1391
      %v1541 = vpop.f32.mrf.mxu0
      %v1542 = vadd.f32 0.0, %v1541
      %v1543 = vpop.f32.mrf.mxu0
      %v1544 = vpop.f32.mrf.mxu0
      %v1545 = vadd.f32 0.0, %v1544
      %v1546 = vpop.f32.mrf.mxu0
      %1547 = vmatprep.mubr.bf16.mxu0 0
      %1548 = vmatmul.mubr.bf16.gmra.mxu0 %v1392
      %v1549 = vpop.f32.mrf.mxu0
      %v1550 = vadd.f32 0.0, %v1549
      %v1551 = vpop.f32.mrf.mxu0
      %v1552 = vpop.f32.mrf.mxu0
      %v1553 = vadd.f32 0.0, %v1552
      %v1554 = vpop.f32.mrf.mxu0
      %1555 = vmatprep.mubr.bf16.mxu0 0
      %1556 = vmatmul.mubr.bf16.gmra.mxu0 %v1393
      %v1557 = vpop.f32.mrf.mxu0
      %v1558 = vadd.f32 0.0, %v1557
      %v1559 = vpop.f32.mrf.mxu0
      %v1560 = vpop.f32.mrf.mxu0
      %v1561 = vadd.f32 0.0, %v1560
      %v1562 = vpop.f32.mrf.mxu0
      %1563 = vmatprep.mubr.bf16.mxu0 0
      %1564 = vmatmul.mubr.bf16.gmra.mxu0 %v1394
      %v1565 = vpop.f32.mrf.mxu0
      %v1566 = vadd.f32 0.0, %v1565
      %v1567 = vpop.f32.mrf.mxu0
      %v1568 = vpop.f32.mrf.mxu0
      %v1569 = vadd.f32 0.0, %v1568
      %v1570 = vpop.f32.mrf.mxu0
      %1571 = vmatprep.mubr.bf16.mxu0 0
      %1572 = vmatmul.mubr.bf16.gmra.mxu0 %v1395
      %v1573 = vpop.f32.mrf.mxu0
      %v1574 = vadd.f32 0.0, %v1573
      %v1575 = vpop.f32.mrf.mxu0
      %v1576 = vpop.f32.mrf.mxu0
      %v1577 = vadd.f32 0.0, %v1576
      %v1578 = vpop.f32.mrf.mxu0
      %1579 = vmatprep.mubr.bf16.mxu0 0
      %1580 = vmatmul.mubr.bf16.gmra.mxu0 %v1396
      %v1581 = vpop.f32.mrf.mxu0
      %v1582 = vadd.f32 0.0, %v1581
      %v1583 = vpop.f32.mrf.mxu0
      %v1584 = vpop.f32.mrf.mxu0
      %v1585 = vadd.f32 0.0, %v1584
      %v1586 = vpop.f32.mrf.mxu0
      %1587 = vmatprep.mubr.bf16.mxu0 0
      %1588 = vmatmul.mubr.bf16.gmra.mxu0 %v1397
      %v1589 = vpop.f32.mrf.mxu0
      %v1590 = vadd.f32 0.0, %v1589
      %v1591 = vpop.f32.mrf.mxu0
      %v1592 = vpop.f32.mrf.mxu0
      %v1593 = vadd.f32 0.0, %v1592
      %v1594 = vpop.f32.mrf.mxu0
      %1595 = vmatprep.mubr.bf16.mxu0 0
      %1596 = vmatmul.mubr.bf16.gmra.mxu0 %v1398
      %v1597 = vpop.f32.mrf.mxu0
      %v1598 = vadd.f32 0.0, %v1597
      %v1599 = vpop.f32.mrf.mxu0
      %v1600 = vpop.f32.mrf.mxu0
      %v1601 = vadd.f32 0.0, %v1600
      %v1602 = vpop.f32.mrf.mxu0
      %1603 = vmatprep.mubr.bf16.mxu0 0
      %1604 = vmatmul.mubr.bf16.gmra.mxu0 %v1399
      %v1605 = vpop.f32.mrf.mxu0
      %v1606 = vadd.f32 0.0, %v1605
      %v1607 = vpop.f32.mrf.mxu0
      %v1608 = vpop.f32.mrf.mxu0
      %v1609 = vadd.f32 0.0, %v1608
      %v1610 = vpop.f32.mrf.mxu0
      %1611 = vmatprep.mubr.bf16.mxu0 0
      %1612 = vmatmul.mubr.bf16.gmra.mxu0 %v1400
      %v1613 = vpop.f32.mrf.mxu0
      %v1614 = vadd.f32 0.0, %v1613
      %v1615 = vpop.f32.mrf.mxu0
      %v1616 = vpop.f32.mrf.mxu0
      %v1617 = vadd.f32 0.0, %v1616
      %v1618 = vpop.f32.mrf.mxu0
      %1619 = vmatprep.mubr.bf16.mxu0 0
      %1620 = vmatmul.mubr.bf16.gmra.mxu0 %v1401
      %v1621 = vpop.f32.mrf.mxu0
      %v1622 = vadd.f32 0.0, %v1621
      %v1623 = vpop.f32.mrf.mxu0
      %v1624 = vpop.f32.mrf.mxu0
      %v1625 = vadd.f32 0.0, %v1624
      %v1626 = vpop.f32.mrf.mxu0
      %1627 = vdwg.mxu0
      %v1628 = vadd.f32 %v1322, %v1502
      %v1629 = vadd.f32 %v1323, %v1505
      %v1630 = vadd.f32 %v1324, %v1510
      %v1631 = vadd.f32 %v1325, %v1513
      %v1632 = vadd.f32 %v1326, %v1518
      %v1633 = vadd.f32 %v1327, %v1521
      %v1634 = vadd.f32 %v1328, %v1526
      %v1635 = vadd.f32 %v1329, %v1529
      %v1636 = vadd.f32 %v1330, %v1534
      %v1637 = vadd.f32 %v1331, %v1537
      %v1638 = vadd.f32 %v1332, %v1542
      %v1639 = vadd.f32 %v1333, %v1545
      %v1640 = vadd.f32 %v1334, %v1550
      %v1641 = vadd.f32 %v1335, %v1553
      %v1642 = vadd.f32 %v1336, %v1558
      %v1643 = vadd.f32 %v1337, %v1561
      %v1644 = vadd.f32 %v1338, %v1566
      %v1645 = vadd.f32 %v1339, %v1569
      %v1646 = vadd.f32 %v1340, %v1574
      %v1647 = vadd.f32 %v1341, %v1577
      %v1648 = vadd.f32 %v1342, %v1582
      %v1649 = vadd.f32 %v1343, %v1585
      %v1650 = vadd.f32 %v1344, %v1590
      %v1651 = vadd.f32 %v1345, %v1593
      %v1652 = vadd.f32 %v1346, %v1598
      %v1653 = vadd.f32 %v1347, %v1601
      %v1654 = vadd.f32 %v1348, %v1606
      %v1655 = vadd.f32 %v1349, %v1609
      %v1656 = vadd.f32 %v1350, %v1614
      %v1657 = vadd.f32 %v1351, %v1617
      %v1658 = vadd.f32 %v1352, %v1622
      %v1659 = vadd.f32 %v1353, %v1625
      %v1660 = vld [vmem:[%s1047 + $0x2] sm:$0xff]
      %v1661 = vld [vmem:[%s1047 + $0xa] sm:$0xff]
      %v1662 = vld [vmem:[%s1047 + $0x1a] sm:$0xff]
      %v1663 = vld [vmem:[%s1047 + $0x22] sm:$0xff]
      %v1664 = vld [vmem:[%s1047 + $0x32] sm:$0xff]
      %v1665 = vld [vmem:[%s1047 + $0x3a] sm:$0xff]
      %v1666 = vld [vmem:[%s1047 + $0x4a] sm:$0xff]
      %v1667 = vld [vmem:[%s1047 + $0x52] sm:$0xff]
      %v1668 = vld [vmem:[%s1047 + $0x62] sm:$0xff]
      %v1669 = vld [vmem:[%s1047 + $0x6a] sm:$0xff]
      %v1670 = vld [vmem:[%s1047 + $0x7a] sm:$0xff]
      %v1671 = vld [vmem:[%s1047 + $0x82] sm:$0xff]
      %v1672 = vld [vmem:[%s1047 + $0x92] sm:$0xff]
      %v1673 = vld [vmem:[%s1047 + $0x9a] sm:$0xff]
      %v1674 = vld [vmem:[%s1047 + $0xaa] sm:$0xff]
      %v1675 = vld [vmem:[%s1047 + $0xb2] sm:$0xff]
      %v1676 = vld [vmem:[%s1047 + $0xc2] sm:$0xff]
      %v1677 = vld [vmem:[%s1047 + $0xca] sm:$0xff]
      %v1678 = vld [vmem:[%s1047 + $0xda] sm:$0xff]
      %v1679 = vld [vmem:[%s1047 + $0xe2] sm:$0xff]
      %v1680 = vld [vmem:[%s1047 + $0xf2] sm:$0xff]
      %v1681 = vld [vmem:[%s1047 + $0xfa] sm:$0xff]
      %v1682 = vld [vmem:[%s1047 + $0x10a] sm:$0xff]
      %v1683 = vld [vmem:[%s1047 + $0x112] sm:$0xff]
      %v1684 = vld [vmem:[%s1047 + $0x122] sm:$0xff]
      %v1685 = vld [vmem:[%s1047 + $0x12a] sm:$0xff]
      %v1686 = vld [vmem:[%s1047 + $0x13a] sm:$0xff]
      %v1687 = vld [vmem:[%s1047 + $0x142] sm:$0xff]
      %v1688 = vld [vmem:[%s1047 + $0x152] sm:$0xff]
      %v1689 = vld [vmem:[%s1047 + $0x15a] sm:$0xff]
      %v1690 = vld [vmem:[%s1047 + $0x16a] sm:$0xff]
      %v1691 = vld [vmem:[%s1047 + $0x172] sm:$0xff]
      %v1692 = vpack.c.bf16 %v1661, %v1660
      %v1693 = vpack.c.bf16 %v1663, %v1662
      %v1694 = vpack.c.bf16 %v1665, %v1664
      %v1695 = vpack.c.bf16 %v1667, %v1666
      %v1696 = vpack.c.bf16 %v1669, %v1668
      %v1697 = vpack.c.bf16 %v1671, %v1670
      %v1698 = vpack.c.bf16 %v1673, %v1672
      %v1699 = vpack.c.bf16 %v1675, %v1674
      %v1700 = vpack.c.bf16 %v1677, %v1676
      %v1701 = vpack.c.bf16 %v1679, %v1678
      %v1702 = vpack.c.bf16 %v1681, %v1680
      %v1703 = vpack.c.bf16 %v1683, %v1682
      %v1704 = vpack.c.bf16 %v1685, %v1684
      %v1705 = vpack.c.bf16 %v1687, %v1686
      %v1706 = vpack.c.bf16 %v1689, %v1688
      %v1707 = vpack.c.bf16 %v1691, %v1690
      %s1708 = scalar_lea.vmem %s1, 320
      %v1709 = vld [vmem:[%s1708] sm:$0xf]
      %v1710 = vld [vmem:[%s1708 + $0x4] sm:$0xf]
      %v1711 = vld [vmem:[%s1708 + $0x8] sm:$0xf]
      %v1712 = vld [vmem:[%s1708 + $0xc] sm:$0xf]
      %v1713 = vld [vmem:[%s1708 + $0x10] sm:$0xf]
      %v1714 = vld [vmem:[%s1708 + $0x14] sm:$0xf]
      %v1715 = vld [vmem:[%s1708 + $0x18] sm:$0xf]
      %v1716 = vld [vmem:[%s1708 + $0x1c] sm:$0xf]
      %v1717 = vld [vmem:[%s1708 + $0x20] sm:$0xf]
      %v1718 = vld [vmem:[%s1708 + $0x24] sm:$0xf]
      %v1719 = vld [vmem:[%s1708 + $0x28] sm:$0xf]
      %v1720 = vld [vmem:[%s1708 + $0x2c] sm:$0xf]
      %v1721 = vld [vmem:[%s1708 + $0x30] sm:$0xf]
      %v1722 = vld [vmem:[%s1708 + $0x34] sm:$0xf]
      %v1723 = vld [vmem:[%s1708 + $0x38] sm:$0xf]
      %v1724 = vld [vmem:[%s1708 + $0x3c] sm:$0xf]
      %v1741 = vunpack.c.l.b16 %v1709
      %v1742 = vunpack.c.l.b16 %v1710
      %v1743 = vunpack.c.l.b16 %v1711
      %v1744 = vunpack.c.l.b16 %v1712
      %v1745 = vunpack.c.l.b16 %v1713
      %v1746 = vunpack.c.l.b16 %v1714
      %v1747 = vunpack.c.l.b16 %v1715
      %v1748 = vunpack.c.l.b16 %v1716
      %v1749 = vunpack.c.l.b16 %v1717
      %v1750 = vunpack.c.l.b16 %v1718
      %v1751 = vunpack.c.l.b16 %v1719
      %v1752 = vunpack.c.l.b16 %v1720
      %v1753 = vunpack.c.l.b16 %v1721
      %v1754 = vunpack.c.l.b16 %v1722
      %v1755 = vunpack.c.l.b16 %v1723
      %v1756 = vunpack.c.l.b16 %v1724
      %v1757 = vpack.c.b16 %v1742, %v1741
      %v1758 = vpack.c.b16 %v1744, %v1743
      %v1759 = vpack.c.b16 %v1746, %v1745
      %v1760 = vpack.c.b16 %v1748, %v1747
      %v1761 = vpack.c.b16 %v1750, %v1749
      %v1762 = vpack.c.b16 %v1752, %v1751
      %v1763 = vpack.c.b16 %v1754, %v1753
      %v1764 = vpack.c.b16 %v1756, %v1755
      %1773 = vmatprep.subr.bf16.mxu0 0
      %1774 = vmatpush1.bf16.msra.mxu0 %v1764
      %1775 = vmatprep.subr.bf16.mxu0 0
      %1776 = vmatpush1.bf16.msra.mxu0 %v1763
      %1777 = vmatprep.subr.bf16.mxu0 0
      %1778 = vmatpush1.bf16.msra.mxu0 %v1762
      %1779 = vmatprep.subr.bf16.mxu0 0
      %1780 = vmatpush1.bf16.msra.mxu0 %v1761
      %1781 = vmatprep.subr.bf16.mxu0 0
      %1782 = vmatpush1.bf16.msra.mxu0 %v1760
      %1783 = vmatprep.subr.bf16.mxu0 0
      %1784 = vmatpush1.bf16.msra.mxu0 %v1759
      %1785 = vmatprep.subr.bf16.mxu0 0
      %1786 = vmatpush1.bf16.msra.mxu0 %v1758
      %1787 = vmatprep.subr.bf16.mxu0 0
      %1788 = vmatpush1.bf16.msra.mxu0 %v1757
      %1789 = vmatprep.subr.bf16.mxu0 0
      %1790 = vmatpush2.bf16.msra.mxu0 0
      %1791 = vmatprep.subr.bf16.mxu0 0
      %1792 = vmatpush2.bf16.msra.mxu0 0
      %1793 = vmatprep.subr.bf16.mxu0 0
      %1794 = vmatpush2.bf16.msra.mxu0 0
      %1795 = vmatprep.subr.bf16.mxu0 0
      %1796 = vmatpush2.bf16.msra.mxu0 0
      %1797 = vmatprep.subr.bf16.mxu0 0
      %1798 = vmatpush2.bf16.msra.mxu0 0
      %1799 = vmatprep.subr.bf16.mxu0 0
      %1800 = vmatpush2.bf16.msra.mxu0 0
      %1801 = vmatprep.subr.bf16.mxu0 0
      %1802 = vmatpush2.bf16.msra.mxu0 0
      %1803 = vmatprep.subr.bf16.mxu0 0
      %1804 = vmatpush2.bf16.msra.mxu0 0
      %1805 = vmatprep.mubr.bf16.mxu0 0
      %1806 = vmatmul.mubr.bf16.gmra.mxu0 %v1692
      %v1807 = vpop.f32.mrf.mxu0
      %v1808 = vadd.f32 0.0, %v1807
      %v1809 = vpop.f32.mrf.mxu0
      %v1810 = vpop.f32.mrf.mxu0
      %v1811 = vadd.f32 0.0, %v1810
      %v1812 = vpop.f32.mrf.mxu0
      %1813 = vmatprep.mubr.bf16.mxu0 0
      %1814 = vmatmul.mubr.bf16.gmra.mxu0 %v1693
      %v1815 = vpop.f32.mrf.mxu0
      %v1816 = vadd.f32 0.0, %v1815
      %v1817 = vpop.f32.mrf.mxu0
      %v1818 = vpop.f32.mrf.mxu0
      %v1819 = vadd.f32 0.0, %v1818
      %v1820 = vpop.f32.mrf.mxu0
      %1821 = vmatprep.mubr.bf16.mxu0 0
      %1822 = vmatmul.mubr.bf16.gmra.mxu0 %v1694
      %v1823 = vpop.f32.mrf.mxu0
      %v1824 = vadd.f32 0.0, %v1823
      %v1825 = vpop.f32.mrf.mxu0
      %v1826 = vpop.f32.mrf.mxu0
      %v1827 = vadd.f32 0.0, %v1826
      %v1828 = vpop.f32.mrf.mxu0
      %1829 = vmatprep.mubr.bf16.mxu0 0
      %1830 = vmatmul.mubr.bf16.gmra.mxu0 %v1695
      %v1831 = vpop.f32.mrf.mxu0
      %v1832 = vadd.f32 0.0, %v1831
      %v1833 = vpop.f32.mrf.mxu0
      %v1834 = vpop.f32.mrf.mxu0
      %v1835 = vadd.f32 0.0, %v1834
      %v1836 = vpop.f32.mrf.mxu0
      %1837 = vmatprep.mubr.bf16.mxu0 0
      %1838 = vmatmul.mubr.bf16.gmra.mxu0 %v1696
      %v1839 = vpop.f32.mrf.mxu0
      %v1840 = vadd.f32 0.0, %v1839
      %v1841 = vpop.f32.mrf.mxu0
      %v1842 = vpop.f32.mrf.mxu0
      %v1843 = vadd.f32 0.0, %v1842
      %v1844 = vpop.f32.mrf.mxu0
      %1845 = vmatprep.mubr.bf16.mxu0 0
      %1846 = vmatmul.mubr.bf16.gmra.mxu0 %v1697
      %v1847 = vpop.f32.mrf.mxu0
      %v1848 = vadd.f32 0.0, %v1847
      %v1849 = vpop.f32.mrf.mxu0
      %v1850 = vpop.f32.mrf.mxu0
      %v1851 = vadd.f32 0.0, %v1850
      %v1852 = vpop.f32.mrf.mxu0
      %1853 = vmatprep.mubr.bf16.mxu0 0
      %1854 = vmatmul.mubr.bf16.gmra.mxu0 %v1698
      %v1855 = vpop.f32.mrf.mxu0
      %v1856 = vadd.f32 0.0, %v1855
      %v1857 = vpop.f32.mrf.mxu0
      %v1858 = vpop.f32.mrf.mxu0
      %v1859 = vadd.f32 0.0, %v1858
      %v1860 = vpop.f32.mrf.mxu0
      %1861 = vmatprep.mubr.bf16.mxu0 0
      %1862 = vmatmul.mubr.bf16.gmra.mxu0 %v1699
      %v1863 = vpop.f32.mrf.mxu0
      %v1864 = vadd.f32 0.0, %v1863
      %v1865 = vpop.f32.mrf.mxu0
      %v1866 = vpop.f32.mrf.mxu0
      %v1867 = vadd.f32 0.0, %v1866
      %v1868 = vpop.f32.mrf.mxu0
      %1869 = vmatprep.mubr.bf16.mxu0 0
      %1870 = vmatmul.mubr.bf16.gmra.mxu0 %v1700
      %v1871 = vpop.f32.mrf.mxu0
      %v1872 = vadd.f32 0.0, %v1871
      %v1873 = vpop.f32.mrf.mxu0
      %v1874 = vpop.f32.mrf.mxu0
      %v1875 = vadd.f32 0.0, %v1874
      %v1876 = vpop.f32.mrf.mxu0
      %1877 = vmatprep.mubr.bf16.mxu0 0
      %1878 = vmatmul.mubr.bf16.gmra.mxu0 %v1701
      %v1879 = vpop.f32.mrf.mxu0
      %v1880 = vadd.f32 0.0, %v1879
      %v1881 = vpop.f32.mrf.mxu0
      %v1882 = vpop.f32.mrf.mxu0
      %v1883 = vadd.f32 0.0, %v1882
      %v1884 = vpop.f32.mrf.mxu0
      %1885 = vmatprep.mubr.bf16.mxu0 0
      %1886 = vmatmul.mubr.bf16.gmra.mxu0 %v1702
      %v1887 = vpop.f32.mrf.mxu0
      %v1888 = vadd.f32 0.0, %v1887
      %v1889 = vpop.f32.mrf.mxu0
      %v1890 = vpop.f32.mrf.mxu0
      %v1891 = vadd.f32 0.0, %v1890
      %v1892 = vpop.f32.mrf.mxu0
      %1893 = vmatprep.mubr.bf16.mxu0 0
      %1894 = vmatmul.mubr.bf16.gmra.mxu0 %v1703
      %v1895 = vpop.f32.mrf.mxu0
      %v1896 = vadd.f32 0.0, %v1895
      %v1897 = vpop.f32.mrf.mxu0
      %v1898 = vpop.f32.mrf.mxu0
      %v1899 = vadd.f32 0.0, %v1898
      %v1900 = vpop.f32.mrf.mxu0
      %1901 = vmatprep.mubr.bf16.mxu0 0
      %1902 = vmatmul.mubr.bf16.gmra.mxu0 %v1704
      %v1903 = vpop.f32.mrf.mxu0
      %v1904 = vadd.f32 0.0, %v1903
      %v1905 = vpop.f32.mrf.mxu0
      %v1906 = vpop.f32.mrf.mxu0
      %v1907 = vadd.f32 0.0, %v1906
      %v1908 = vpop.f32.mrf.mxu0
      %1909 = vmatprep.mubr.bf16.mxu0 0
      %1910 = vmatmul.mubr.bf16.gmra.mxu0 %v1705
      %v1911 = vpop.f32.mrf.mxu0
      %v1912 = vadd.f32 0.0, %v1911
      %v1913 = vpop.f32.mrf.mxu0
      %v1914 = vpop.f32.mrf.mxu0
      %v1915 = vadd.f32 0.0, %v1914
      %v1916 = vpop.f32.mrf.mxu0
      %1917 = vmatprep.mubr.bf16.mxu0 0
      %1918 = vmatmul.mubr.bf16.gmra.mxu0 %v1706
      %v1919 = vpop.f32.mrf.mxu0
      %v1920 = vadd.f32 0.0, %v1919
      %v1921 = vpop.f32.mrf.mxu0
      %v1922 = vpop.f32.mrf.mxu0
      %v1923 = vadd.f32 0.0, %v1922
      %v1924 = vpop.f32.mrf.mxu0
      %1925 = vmatprep.mubr.bf16.mxu0 0
      %1926 = vmatmul.mubr.bf16.gmra.mxu0 %v1707
      %v1927 = vpop.f32.mrf.mxu0
      %v1928 = vadd.f32 0.0, %v1927
      %v1929 = vpop.f32.mrf.mxu0
      %v1930 = vpop.f32.mrf.mxu0
      %v1931 = vadd.f32 0.0, %v1930
      %v1932 = vpop.f32.mrf.mxu0
      %1933 = vdwg.mxu0
      %v1934 = vadd.f32 %v1628, %v1808
      %v1935 = vadd.f32 %v1629, %v1811
      %v1936 = vadd.f32 %v1630, %v1816
      %v1937 = vadd.f32 %v1631, %v1819
      %v1938 = vadd.f32 %v1632, %v1824
      %v1939 = vadd.f32 %v1633, %v1827
      %v1940 = vadd.f32 %v1634, %v1832
      %v1941 = vadd.f32 %v1635, %v1835
      %v1942 = vadd.f32 %v1636, %v1840
      %v1943 = vadd.f32 %v1637, %v1843
      %v1944 = vadd.f32 %v1638, %v1848
      %v1945 = vadd.f32 %v1639, %v1851
      %v1946 = vadd.f32 %v1640, %v1856
      %v1947 = vadd.f32 %v1641, %v1859
      %v1948 = vadd.f32 %v1642, %v1864
      %v1949 = vadd.f32 %v1643, %v1867
      %v1950 = vadd.f32 %v1644, %v1872
      %v1951 = vadd.f32 %v1645, %v1875
      %v1952 = vadd.f32 %v1646, %v1880
      %v1953 = vadd.f32 %v1647, %v1883
      %v1954 = vadd.f32 %v1648, %v1888
      %v1955 = vadd.f32 %v1649, %v1891
      %v1956 = vadd.f32 %v1650, %v1896
      %v1957 = vadd.f32 %v1651, %v1899
      %v1958 = vadd.f32 %v1652, %v1904
      %v1959 = vadd.f32 %v1653, %v1907
      %v1960 = vadd.f32 %v1654, %v1912
      %v1961 = vadd.f32 %v1655, %v1915
      %v1962 = vadd.f32 %v1656, %v1920
      %v1963 = vadd.f32 %v1657, %v1923
      %v1964 = vadd.f32 %v1658, %v1928
      %v1965 = vadd.f32 %v1659, %v1931
      %s1966 = scalar_lea.vmem %s187, 48
      %v1967 = vld [vmem:[%s1966] sm:$0xff]
      %v1968 = vld [vmem:[%s1966 + $0x8] sm:$0xff]
      %v1969 = vld [vmem:[%s1966 + $0x18] sm:$0xff]
      %v1970 = vld [vmem:[%s1966 + $0x20] sm:$0xff]
      %v1971 = vld [vmem:[%s1966 + $0x30] sm:$0xff]
      %v1972 = vld [vmem:[%s1966 + $0x38] sm:$0xff]
      %v1973 = vld [vmem:[%s1966 + $0x48] sm:$0xff]
      %v1974 = vld [vmem:[%s1966 + $0x50] sm:$0xff]
      %v1975 = vld [vmem:[%s1966 + $0x60] sm:$0xff]
      %v1976 = vld [vmem:[%s1966 + $0x68] sm:$0xff]
      %v1977 = vld [vmem:[%s1966 + $0x78] sm:$0xff]
      %v1978 = vld [vmem:[%s1966 + $0x80] sm:$0xff]
      %v1979 = vld [vmem:[%s1966 + $0x90] sm:$0xff]
      %v1980 = vld [vmem:[%s1966 + $0x98] sm:$0xff]
      %v1981 = vld [vmem:[%s1966 + $0xa8] sm:$0xff]
      %v1982 = vld [vmem:[%s1966 + $0xb0] sm:$0xff]
      %v1983 = vld [vmem:[%s1966 + $0xc0] sm:$0xff]
      %v1984 = vld [vmem:[%s1966 + $0xc8] sm:$0xff]
      %v1985 = vld [vmem:[%s1966 + $0xd8] sm:$0xff]
      %v1986 = vld [vmem:[%s1966 + $0xe0] sm:$0xff]
      %v1987 = vld [vmem:[%s1966 + $0xf0] sm:$0xff]
      %v1988 = vld [vmem:[%s1966 + $0xf8] sm:$0xff]
      %v1989 = vld [vmem:[%s1966 + $0x108] sm:$0xff]
      %v1990 = vld [vmem:[%s1966 + $0x110] sm:$0xff]
      %v1991 = vld [vmem:[%s1966 + $0x120] sm:$0xff]
      %v1992 = vld [vmem:[%s1966 + $0x128] sm:$0xff]
      %v1993 = vld [vmem:[%s1966 + $0x138] sm:$0xff]
      %v1994 = vld [vmem:[%s1966 + $0x140] sm:$0xff]
      %v1995 = vld [vmem:[%s1966 + $0x150] sm:$0xff]
      %v1996 = vld [vmem:[%s1966 + $0x158] sm:$0xff]
      %v1997 = vld [vmem:[%s1966 + $0x168] sm:$0xff]
      %v1998 = vld [vmem:[%s1966 + $0x170] sm:$0xff]
      %v1999 = vpack.c.bf16 %v1968, %v1967
      %v2000 = vpack.c.bf16 %v1970, %v1969
      %v2001 = vpack.c.bf16 %v1972, %v1971
      %v2002 = vpack.c.bf16 %v1974, %v1973
      %v2003 = vpack.c.bf16 %v1976, %v1975
      %v2004 = vpack.c.bf16 %v1978, %v1977
      %v2005 = vpack.c.bf16 %v1980, %v1979
      %v2006 = vpack.c.bf16 %v1982, %v1981
      %v2007 = vpack.c.bf16 %v1984, %v1983
      %v2008 = vpack.c.bf16 %v1986, %v1985
      %v2009 = vpack.c.bf16 %v1988, %v1987
      %v2010 = vpack.c.bf16 %v1990, %v1989
      %v2011 = vpack.c.bf16 %v1992, %v1991
      %v2012 = vpack.c.bf16 %v1994, %v1993
      %v2013 = vpack.c.bf16 %v1996, %v1995
      %v2014 = vpack.c.bf16 %v1998, %v1997
      %s2015 = scalar_lea.vmem %s1, 384
      %v2016 = vld [vmem:[%s2015] sm:$0xf]
      %v2017 = vld [vmem:[%s2015 + $0x4] sm:$0xf]
      %v2018 = vld [vmem:[%s2015 + $0x8] sm:$0xf]
      %v2019 = vld [vmem:[%s2015 + $0xc] sm:$0xf]
      %v2020 = vld [vmem:[%s2015 + $0x10] sm:$0xf]
      %v2021 = vld [vmem:[%s2015 + $0x14] sm:$0xf]
      %v2022 = vld [vmem:[%s2015 + $0x18] sm:$0xf]
      %v2023 = vld [vmem:[%s2015 + $0x1c] sm:$0xf]
      %v2024 = vld [vmem:[%s2015 + $0x20] sm:$0xf]
      %v2025 = vld [vmem:[%s2015 + $0x24] sm:$0xf]
      %v2026 = vld [vmem:[%s2015 + $0x28] sm:$0xf]
      %v2027 = vld [vmem:[%s2015 + $0x2c] sm:$0xf]
      %v2028 = vld [vmem:[%s2015 + $0x30] sm:$0xf]
      %v2029 = vld [vmem:[%s2015 + $0x34] sm:$0xf]
      %v2030 = vld [vmem:[%s2015 + $0x38] sm:$0xf]
      %v2031 = vld [vmem:[%s2015 + $0x3c] sm:$0xf]
      %v2048 = vunpack.c.l.b16 %v2016
      %v2049 = vunpack.c.l.b16 %v2017
      %v2050 = vunpack.c.l.b16 %v2018
      %v2051 = vunpack.c.l.b16 %v2019
      %v2052 = vunpack.c.l.b16 %v2020
      %v2053 = vunpack.c.l.b16 %v2021
      %v2054 = vunpack.c.l.b16 %v2022
      %v2055 = vunpack.c.l.b16 %v2023
      %v2056 = vunpack.c.l.b16 %v2024
      %v2057 = vunpack.c.l.b16 %v2025
      %v2058 = vunpack.c.l.b16 %v2026
      %v2059 = vunpack.c.l.b16 %v2027
      %v2060 = vunpack.c.l.b16 %v2028
      %v2061 = vunpack.c.l.b16 %v2029
      %v2062 = vunpack.c.l.b16 %v2030
      %v2063 = vunpack.c.l.b16 %v2031
      %v2064 = vpack.c.b16 %v2049, %v2048
      %v2065 = vpack.c.b16 %v2051, %v2050
      %v2066 = vpack.c.b16 %v2053, %v2052
      %v2067 = vpack.c.b16 %v2055, %v2054
      %v2068 = vpack.c.b16 %v2057, %v2056
      %v2069 = vpack.c.b16 %v2059, %v2058
      %v2070 = vpack.c.b16 %v2061, %v2060
      %v2071 = vpack.c.b16 %v2063, %v2062
      %2080 = vmatprep.subr.bf16.mxu0 0
      %2081 = vmatpush1.bf16.msra.mxu0 %v2071
      %2082 = vmatprep.subr.bf16.mxu0 0
      %2083 = vmatpush1.bf16.msra.mxu0 %v2070
      %2084 = vmatprep.subr.bf16.mxu0 0
      %2085 = vmatpush1.bf16.msra.mxu0 %v2069
      %2086 = vmatprep.subr.bf16.mxu0 0
      %2087 = vmatpush1.bf16.msra.mxu0 %v2068
      %2088 = vmatprep.subr.bf16.mxu0 0
      %2089 = vmatpush1.bf16.msra.mxu0 %v2067
      %2090 = vmatprep.subr.bf16.mxu0 0
      %2091 = vmatpush1.bf16.msra.mxu0 %v2066
      %2092 = vmatprep.subr.bf16.mxu0 0
      %2093 = vmatpush1.bf16.msra.mxu0 %v2065
      %2094 = vmatprep.subr.bf16.mxu0 0
      %2095 = vmatpush1.bf16.msra.mxu0 %v2064
      %2096 = vmatprep.subr.bf16.mxu0 0
      %2097 = vmatpush2.bf16.msra.mxu0 0
      %2098 = vmatprep.subr.bf16.mxu0 0
      %2099 = vmatpush2.bf16.msra.mxu0 0
      %2100 = vmatprep.subr.bf16.mxu0 0
      %2101 = vmatpush2.bf16.msra.mxu0 0
      %2102 = vmatprep.subr.bf16.mxu0 0
      %2103 = vmatpush2.bf16.msra.mxu0 0
      %2104 = vmatprep.subr.bf16.mxu0 0
      %2105 = vmatpush2.bf16.msra.mxu0 0
      %2106 = vmatprep.subr.bf16.mxu0 0
      %2107 = vmatpush2.bf16.msra.mxu0 0
      %2108 = vmatprep.subr.bf16.mxu0 0
      %2109 = vmatpush2.bf16.msra.mxu0 0
      %2110 = vmatprep.subr.bf16.mxu0 0
      %2111 = vmatpush2.bf16.msra.mxu0 0
      %2112 = vmatprep.mubr.bf16.mxu0 0
      %2113 = vmatmul.mubr.bf16.gmra.mxu0 %v1999
      %v2114 = vpop.f32.mrf.mxu0
      %v2115 = vadd.f32 0.0, %v2114
      %v2116 = vpop.f32.mrf.mxu0
      %v2117 = vpop.f32.mrf.mxu0
      %v2118 = vadd.f32 0.0, %v2117
      %v2119 = vpop.f32.mrf.mxu0
      %2120 = vmatprep.mubr.bf16.mxu0 0
      %2121 = vmatmul.mubr.bf16.gmra.mxu0 %v2000
      %v2122 = vpop.f32.mrf.mxu0
      %v2123 = vadd.f32 0.0, %v2122
      %v2124 = vpop.f32.mrf.mxu0
      %v2125 = vpop.f32.mrf.mxu0
      %v2126 = vadd.f32 0.0, %v2125
      %v2127 = vpop.f32.mrf.mxu0
      %2128 = vmatprep.mubr.bf16.mxu0 0
      %2129 = vmatmul.mubr.bf16.gmra.mxu0 %v2001
      %v2130 = vpop.f32.mrf.mxu0
      %v2131 = vadd.f32 0.0, %v2130
      %v2132 = vpop.f32.mrf.mxu0
      %v2133 = vpop.f32.mrf.mxu0
      %v2134 = vadd.f32 0.0, %v2133
      %v2135 = vpop.f32.mrf.mxu0
      %2136 = vmatprep.mubr.bf16.mxu0 0
      %2137 = vmatmul.mubr.bf16.gmra.mxu0 %v2002
      %v2138 = vpop.f32.mrf.mxu0
      %v2139 = vadd.f32 0.0, %v2138
      %v2140 = vpop.f32.mrf.mxu0
      %v2141 = vpop.f32.mrf.mxu0
      %v2142 = vadd.f32 0.0, %v2141
      %v2143 = vpop.f32.mrf.mxu0
      %2144 = vmatprep.mubr.bf16.mxu0 0
      %2145 = vmatmul.mubr.bf16.gmra.mxu0 %v2003
      %v2146 = vpop.f32.mrf.mxu0
      %v2147 = vadd.f32 0.0, %v2146
      %v2148 = vpop.f32.mrf.mxu0
      %v2149 = vpop.f32.mrf.mxu0
      %v2150 = vadd.f32 0.0, %v2149
      %v2151 = vpop.f32.mrf.mxu0
      %2152 = vmatprep.mubr.bf16.mxu0 0
      %2153 = vmatmul.mubr.bf16.gmra.mxu0 %v2004
      %v2154 = vpop.f32.mrf.mxu0
      %v2155 = vadd.f32 0.0, %v2154
      %v2156 = vpop.f32.mrf.mxu0
      %v2157 = vpop.f32.mrf.mxu0
      %v2158 = vadd.f32 0.0, %v2157
      %v2159 = vpop.f32.mrf.mxu0
      %2160 = vmatprep.mubr.bf16.mxu0 0
      %2161 = vmatmul.mubr.bf16.gmra.mxu0 %v2005
      %v2162 = vpop.f32.mrf.mxu0
      %v2163 = vadd.f32 0.0, %v2162
      %v2164 = vpop.f32.mrf.mxu0
      %v2165 = vpop.f32.mrf.mxu0
      %v2166 = vadd.f32 0.0, %v2165
      %v2167 = vpop.f32.mrf.mxu0
      %2168 = vmatprep.mubr.bf16.mxu0 0
      %2169 = vmatmul.mubr.bf16.gmra.mxu0 %v2006
      %v2170 = vpop.f32.mrf.mxu0
      %v2171 = vadd.f32 0.0, %v2170
      %v2172 = vpop.f32.mrf.mxu0
      %v2173 = vpop.f32.mrf.mxu0
      %v2174 = vadd.f32 0.0, %v2173
      %v2175 = vpop.f32.mrf.mxu0
      %2176 = vmatprep.mubr.bf16.mxu0 0
      %2177 = vmatmul.mubr.bf16.gmra.mxu0 %v2007
      %v2178 = vpop.f32.mrf.mxu0
      %v2179 = vadd.f32 0.0, %v2178
      %v2180 = vpop.f32.mrf.mxu0
      %v2181 = vpop.f32.mrf.mxu0
      %v2182 = vadd.f32 0.0, %v2181
      %v2183 = vpop.f32.mrf.mxu0
      %2184 = vmatprep.mubr.bf16.mxu0 0
      %2185 = vmatmul.mubr.bf16.gmra.mxu0 %v2008
      %v2186 = vpop.f32.mrf.mxu0
      %v2187 = vadd.f32 0.0, %v2186
      %v2188 = vpop.f32.mrf.mxu0
      %v2189 = vpop.f32.mrf.mxu0
      %v2190 = vadd.f32 0.0, %v2189
      %v2191 = vpop.f32.mrf.mxu0
      %2192 = vmatprep.mubr.bf16.mxu0 0
      %2193 = vmatmul.mubr.bf16.gmra.mxu0 %v2009
      %v2194 = vpop.f32.mrf.mxu0
      %v2195 = vadd.f32 0.0, %v2194
      %v2196 = vpop.f32.mrf.mxu0
      %v2197 = vpop.f32.mrf.mxu0
      %v2198 = vadd.f32 0.0, %v2197
      %v2199 = vpop.f32.mrf.mxu0
      %2200 = vmatprep.mubr.bf16.mxu0 0
      %2201 = vmatmul.mubr.bf16.gmra.mxu0 %v2010
      %v2202 = vpop.f32.mrf.mxu0
      %v2203 = vadd.f32 0.0, %v2202
      %v2204 = vpop.f32.mrf.mxu0
      %v2205 = vpop.f32.mrf.mxu0
      %v2206 = vadd.f32 0.0, %v2205
      %v2207 = vpop.f32.mrf.mxu0
      %2208 = vmatprep.mubr.bf16.mxu0 0
      %2209 = vmatmul.mubr.bf16.gmra.mxu0 %v2011
      %v2210 = vpop.f32.mrf.mxu0
      %v2211 = vadd.f32 0.0, %v2210
      %v2212 = vpop.f32.mrf.mxu0
      %v2213 = vpop.f32.mrf.mxu0
      %v2214 = vadd.f32 0.0, %v2213
      %v2215 = vpop.f32.mrf.mxu0
      %2216 = vmatprep.mubr.bf16.mxu0 0
      %2217 = vmatmul.mubr.bf16.gmra.mxu0 %v2012
      %v2218 = vpop.f32.mrf.mxu0
      %v2219 = vadd.f32 0.0, %v2218
      %v2220 = vpop.f32.mrf.mxu0
      %v2221 = vpop.f32.mrf.mxu0
      %v2222 = vadd.f32 0.0, %v2221
      %v2223 = vpop.f32.mrf.mxu0
      %2224 = vmatprep.mubr.bf16.mxu0 0
      %2225 = vmatmul.mubr.bf16.gmra.mxu0 %v2013
      %v2226 = vpop.f32.mrf.mxu0
      %v2227 = vadd.f32 0.0, %v2226
      %v2228 = vpop.f32.mrf.mxu0
      %v2229 = vpop.f32.mrf.mxu0
      %v2230 = vadd.f32 0.0, %v2229
      %v2231 = vpop.f32.mrf.mxu0
      %2232 = vmatprep.mubr.bf16.mxu0 0
      %2233 = vmatmul.mubr.bf16.gmra.mxu0 %v2014
      %v2234 = vpop.f32.mrf.mxu0
      %v2235 = vadd.f32 0.0, %v2234
      %v2236 = vpop.f32.mrf.mxu0
      %v2237 = vpop.f32.mrf.mxu0
      %v2238 = vadd.f32 0.0, %v2237
      %v2239 = vpop.f32.mrf.mxu0
      %2240 = vdwg.mxu0
      %v2241 = vadd.f32 %v1934, %v2115
      %v2242 = vadd.f32 %v1935, %v2118
      %v2243 = vadd.f32 %v1936, %v2123
      %v2244 = vadd.f32 %v1937, %v2126
      %v2245 = vadd.f32 %v1938, %v2131
      %v2246 = vadd.f32 %v1939, %v2134
      %v2247 = vadd.f32 %v1940, %v2139
      %v2248 = vadd.f32 %v1941, %v2142
      %v2249 = vadd.f32 %v1942, %v2147
      %v2250 = vadd.f32 %v1943, %v2150
      %v2251 = vadd.f32 %v1944, %v2155
      %v2252 = vadd.f32 %v1945, %v2158
      %v2253 = vadd.f32 %v1946, %v2163
      %v2254 = vadd.f32 %v1947, %v2166
      %v2255 = vadd.f32 %v1948, %v2171
      %v2256 = vadd.f32 %v1949, %v2174
      %v2257 = vadd.f32 %v1950, %v2179
      %v2258 = vadd.f32 %v1951, %v2182
      %v2259 = vadd.f32 %v1952, %v2187
      %v2260 = vadd.f32 %v1953, %v2190
      %v2261 = vadd.f32 %v1954, %v2195
      %v2262 = vadd.f32 %v1955, %v2198
      %v2263 = vadd.f32 %v1956, %v2203
      %v2264 = vadd.f32 %v1957, %v2206
      %v2265 = vadd.f32 %v1958, %v2211
      %v2266 = vadd.f32 %v1959, %v2214
      %v2267 = vadd.f32 %v1960, %v2219
      %v2268 = vadd.f32 %v1961, %v2222
      %v2269 = vadd.f32 %v1962, %v2227
      %v2270 = vadd.f32 %v1963, %v2230
      %v2271 = vadd.f32 %v1964, %v2235
      %v2272 = vadd.f32 %v1965, %v2238
      %v2273 = vld [vmem:[%s1966 + $0x1] sm:$0xff]
      %v2274 = vld [vmem:[%s1966 + $0x9] sm:$0xff]
      %v2275 = vld [vmem:[%s1966 + $0x19] sm:$0xff]
      %v2276 = vld [vmem:[%s1966 + $0x21] sm:$0xff]
      %v2277 = vld [vmem:[%s1966 + $0x31] sm:$0xff]
      %v2278 = vld [vmem:[%s1966 + $0x39] sm:$0xff]
      %v2279 = vld [vmem:[%s1966 + $0x49] sm:$0xff]
      %v2280 = vld [vmem:[%s1966 + $0x51] sm:$0xff]
      %v2281 = vld [vmem:[%s1966 + $0x61] sm:$0xff]
      %v2282 = vld [vmem:[%s1966 + $0x69] sm:$0xff]
      %v2283 = vld [vmem:[%s1966 + $0x79] sm:$0xff]
      %v2284 = vld [vmem:[%s1966 + $0x81] sm:$0xff]
      %v2285 = vld [vmem:[%s1966 + $0x91] sm:$0xff]
      %v2286 = vld [vmem:[%s1966 + $0x99] sm:$0xff]
      %v2287 = vld [vmem:[%s1966 + $0xa9] sm:$0xff]
      %v2288 = vld [vmem:[%s1966 + $0xb1] sm:$0xff]
      %v2289 = vld [vmem:[%s1966 + $0xc1] sm:$0xff]
      %v2290 = vld [vmem:[%s1966 + $0xc9] sm:$0xff]
      %v2291 = vld [vmem:[%s1966 + $0xd9] sm:$0xff]
      %v2292 = vld [vmem:[%s1966 + $0xe1] sm:$0xff]
      %v2293 = vld [vmem:[%s1966 + $0xf1] sm:$0xff]
      %v2294 = vld [vmem:[%s1966 + $0xf9] sm:$0xff]
      %v2295 = vld [vmem:[%s1966 + $0x109] sm:$0xff]
      %v2296 = vld [vmem:[%s1966 + $0x111] sm:$0xff]
      %v2297 = vld [vmem:[%s1966 + $0x121] sm:$0xff]
      %v2298 = vld [vmem:[%s1966 + $0x129] sm:$0xff]
      %v2299 = vld [vmem:[%s1966 + $0x139] sm:$0xff]
      %v2300 = vld [vmem:[%s1966 + $0x141] sm:$0xff]
      %v2301 = vld [vmem:[%s1966 + $0x151] sm:$0xff]
      %v2302 = vld [vmem:[%s1966 + $0x159] sm:$0xff]
      %v2303 = vld [vmem:[%s1966 + $0x169] sm:$0xff]
      %v2304 = vld [vmem:[%s1966 + $0x171] sm:$0xff]
      %v2305 = vpack.c.bf16 %v2274, %v2273
      %v2306 = vpack.c.bf16 %v2276, %v2275
      %v2307 = vpack.c.bf16 %v2278, %v2277
      %v2308 = vpack.c.bf16 %v2280, %v2279
      %v2309 = vpack.c.bf16 %v2282, %v2281
      %v2310 = vpack.c.bf16 %v2284, %v2283
      %v2311 = vpack.c.bf16 %v2286, %v2285
      %v2312 = vpack.c.bf16 %v2288, %v2287
      %v2313 = vpack.c.bf16 %v2290, %v2289
      %v2314 = vpack.c.bf16 %v2292, %v2291
      %v2315 = vpack.c.bf16 %v2294, %v2293
      %v2316 = vpack.c.bf16 %v2296, %v2295
      %v2317 = vpack.c.bf16 %v2298, %v2297
      %v2318 = vpack.c.bf16 %v2300, %v2299
      %v2319 = vpack.c.bf16 %v2302, %v2301
      %v2320 = vpack.c.bf16 %v2304, %v2303
      %s2321 = scalar_lea.vmem %s1, 448
      %v2322 = vld [vmem:[%s2321] sm:$0xf]
      %v2323 = vld [vmem:[%s2321 + $0x4] sm:$0xf]
      %v2324 = vld [vmem:[%s2321 + $0x8] sm:$0xf]
      %v2325 = vld [vmem:[%s2321 + $0xc] sm:$0xf]
      %v2326 = vld [vmem:[%s2321 + $0x10] sm:$0xf]
      %v2327 = vld [vmem:[%s2321 + $0x14] sm:$0xf]
      %v2328 = vld [vmem:[%s2321 + $0x18] sm:$0xf]
      %v2329 = vld [vmem:[%s2321 + $0x1c] sm:$0xf]
      %v2330 = vld [vmem:[%s2321 + $0x20] sm:$0xf]
      %v2331 = vld [vmem:[%s2321 + $0x24] sm:$0xf]
      %v2332 = vld [vmem:[%s2321 + $0x28] sm:$0xf]
      %v2333 = vld [vmem:[%s2321 + $0x2c] sm:$0xf]
      %v2334 = vld [vmem:[%s2321 + $0x30] sm:$0xf]
      %v2335 = vld [vmem:[%s2321 + $0x34] sm:$0xf]
      %v2336 = vld [vmem:[%s2321 + $0x38] sm:$0xf]
      %v2337 = vld [vmem:[%s2321 + $0x3c] sm:$0xf]
      %v2354 = vunpack.c.l.b16 %v2322
      %v2355 = vunpack.c.l.b16 %v2323
      %v2356 = vunpack.c.l.b16 %v2324
      %v2357 = vunpack.c.l.b16 %v2325
      %v2358 = vunpack.c.l.b16 %v2326
      %v2359 = vunpack.c.l.b16 %v2327
      %v2360 = vunpack.c.l.b16 %v2328
      %v2361 = vunpack.c.l.b16 %v2329
      %v2362 = vunpack.c.l.b16 %v2330
      %v2363 = vunpack.c.l.b16 %v2331
      %v2364 = vunpack.c.l.b16 %v2332
      %v2365 = vunpack.c.l.b16 %v2333
      %v2366 = vunpack.c.l.b16 %v2334
      %v2367 = vunpack.c.l.b16 %v2335
      %v2368 = vunpack.c.l.b16 %v2336
      %v2369 = vunpack.c.l.b16 %v2337
      %v2370 = vpack.c.b16 %v2355, %v2354
      %v2371 = vpack.c.b16 %v2357, %v2356
      %v2372 = vpack.c.b16 %v2359, %v2358
      %v2373 = vpack.c.b16 %v2361, %v2360
      %v2374 = vpack.c.b16 %v2363, %v2362
      %v2375 = vpack.c.b16 %v2365, %v2364
      %v2376 = vpack.c.b16 %v2367, %v2366
      %v2377 = vpack.c.b16 %v2369, %v2368
      %2386 = vmatprep.subr.bf16.mxu0 0
      %2387 = vmatpush1.bf16.msra.mxu0 %v2377
      %2388 = vmatprep.subr.bf16.mxu0 0
      %2389 = vmatpush1.bf16.msra.mxu0 %v2376
      %2390 = vmatprep.subr.bf16.mxu0 0
      %2391 = vmatpush1.bf16.msra.mxu0 %v2375
      %2392 = vmatprep.subr.bf16.mxu0 0
      %2393 = vmatpush1.bf16.msra.mxu0 %v2374
      %2394 = vmatprep.subr.bf16.mxu0 0
      %2395 = vmatpush1.bf16.msra.mxu0 %v2373
      %2396 = vmatprep.subr.bf16.mxu0 0
      %2397 = vmatpush1.bf16.msra.mxu0 %v2372
      %2398 = vmatprep.subr.bf16.mxu0 0
      %2399 = vmatpush1.bf16.msra.mxu0 %v2371
      %2400 = vmatprep.subr.bf16.mxu0 0
      %2401 = vmatpush1.bf16.msra.mxu0 %v2370
      %2402 = vmatprep.subr.bf16.mxu0 0
      %2403 = vmatpush2.bf16.msra.mxu0 0
      %2404 = vmatprep.subr.bf16.mxu0 0
      %2405 = vmatpush2.bf16.msra.mxu0 0
      %2406 = vmatprep.subr.bf16.mxu0 0
      %2407 = vmatpush2.bf16.msra.mxu0 0
      %2408 = vmatprep.subr.bf16.mxu0 0
      %2409 = vmatpush2.bf16.msra.mxu0 0
      %2410 = vmatprep.subr.bf16.mxu0 0
      %2411 = vmatpush2.bf16.msra.mxu0 0
      %2412 = vmatprep.subr.bf16.mxu0 0
      %2413 = vmatpush2.bf16.msra.mxu0 0
      %2414 = vmatprep.subr.bf16.mxu0 0
      %2415 = vmatpush2.bf16.msra.mxu0 0
      %2416 = vmatprep.subr.bf16.mxu0 0
      %2417 = vmatpush2.bf16.msra.mxu0 0
      %2418 = vmatprep.mubr.bf16.mxu0 0
      %2419 = vmatmul.mubr.bf16.gmra.mxu0 %v2305
      %v2420 = vpop.f32.mrf.mxu0
      %v2421 = vadd.f32 0.0, %v2420
      %v2422 = vpop.f32.mrf.mxu0
      %v2423 = vpop.f32.mrf.mxu0
      %v2424 = vadd.f32 0.0, %v2423
      %v2425 = vpop.f32.mrf.mxu0
      %2426 = vmatprep.mubr.bf16.mxu0 0
      %2427 = vmatmul.mubr.bf16.gmra.mxu0 %v2306
      %v2428 = vpop.f32.mrf.mxu0
      %v2429 = vadd.f32 0.0, %v2428
      %v2430 = vpop.f32.mrf.mxu0
      %v2431 = vpop.f32.mrf.mxu0
      %v2432 = vadd.f32 0.0, %v2431
      %v2433 = vpop.f32.mrf.mxu0
      %2434 = vmatprep.mubr.bf16.mxu0 0
      %2435 = vmatmul.mubr.bf16.gmra.mxu0 %v2307
      %v2436 = vpop.f32.mrf.mxu0
      %v2437 = vadd.f32 0.0, %v2436
      %v2438 = vpop.f32.mrf.mxu0
      %v2439 = vpop.f32.mrf.mxu0
      %v2440 = vadd.f32 0.0, %v2439
      %v2441 = vpop.f32.mrf.mxu0
      %2442 = vmatprep.mubr.bf16.mxu0 0
      %2443 = vmatmul.mubr.bf16.gmra.mxu0 %v2308
      %v2444 = vpop.f32.mrf.mxu0
      %v2445 = vadd.f32 0.0, %v2444
      %v2446 = vpop.f32.mrf.mxu0
      %v2447 = vpop.f32.mrf.mxu0
      %v2448 = vadd.f32 0.0, %v2447
      %v2449 = vpop.f32.mrf.mxu0
      %2450 = vmatprep.mubr.bf16.mxu0 0
      %2451 = vmatmul.mubr.bf16.gmra.mxu0 %v2309
      %v2452 = vpop.f32.mrf.mxu0
      %v2453 = vadd.f32 0.0, %v2452
      %v2454 = vpop.f32.mrf.mxu0
      %v2455 = vpop.f32.mrf.mxu0
      %v2456 = vadd.f32 0.0, %v2455
      %v2457 = vpop.f32.mrf.mxu0
      %2458 = vmatprep.mubr.bf16.mxu0 0
      %2459 = vmatmul.mubr.bf16.gmra.mxu0 %v2310
      %v2460 = vpop.f32.mrf.mxu0
      %v2461 = vadd.f32 0.0, %v2460
      %v2462 = vpop.f32.mrf.mxu0
      %v2463 = vpop.f32.mrf.mxu0
      %v2464 = vadd.f32 0.0, %v2463
      %v2465 = vpop.f32.mrf.mxu0
      %2466 = vmatprep.mubr.bf16.mxu0 0
      %2467 = vmatmul.mubr.bf16.gmra.mxu0 %v2311
      %v2468 = vpop.f32.mrf.mxu0
      %v2469 = vadd.f32 0.0, %v2468
      %v2470 = vpop.f32.mrf.mxu0
      %v2471 = vpop.f32.mrf.mxu0
      %v2472 = vadd.f32 0.0, %v2471
      %v2473 = vpop.f32.mrf.mxu0
      %2474 = vmatprep.mubr.bf16.mxu0 0
      %2475 = vmatmul.mubr.bf16.gmra.mxu0 %v2312
      %v2476 = vpop.f32.mrf.mxu0
      %v2477 = vadd.f32 0.0, %v2476
      %v2478 = vpop.f32.mrf.mxu0
      %v2479 = vpop.f32.mrf.mxu0
      %v2480 = vadd.f32 0.0, %v2479
      %v2481 = vpop.f32.mrf.mxu0
      %2482 = vmatprep.mubr.bf16.mxu0 0
      %2483 = vmatmul.mubr.bf16.gmra.mxu0 %v2313
      %v2484 = vpop.f32.mrf.mxu0
      %v2485 = vadd.f32 0.0, %v2484
      %v2486 = vpop.f32.mrf.mxu0
      %v2487 = vpop.f32.mrf.mxu0
      %v2488 = vadd.f32 0.0, %v2487
      %v2489 = vpop.f32.mrf.mxu0
      %2490 = vmatprep.mubr.bf16.mxu0 0
      %2491 = vmatmul.mubr.bf16.gmra.mxu0 %v2314
      %v2492 = vpop.f32.mrf.mxu0
      %v2493 = vadd.f32 0.0, %v2492
      %v2494 = vpop.f32.mrf.mxu0
      %v2495 = vpop.f32.mrf.mxu0
      %v2496 = vadd.f32 0.0, %v2495
      %v2497 = vpop.f32.mrf.mxu0
      %2498 = vmatprep.mubr.bf16.mxu0 0
      %2499 = vmatmul.mubr.bf16.gmra.mxu0 %v2315
      %v2500 = vpop.f32.mrf.mxu0
      %v2501 = vadd.f32 0.0, %v2500
      %v2502 = vpop.f32.mrf.mxu0
      %v2503 = vpop.f32.mrf.mxu0
      %v2504 = vadd.f32 0.0, %v2503
      %v2505 = vpop.f32.mrf.mxu0
      %2506 = vmatprep.mubr.bf16.mxu0 0
      %2507 = vmatmul.mubr.bf16.gmra.mxu0 %v2316
      %v2508 = vpop.f32.mrf.mxu0
      %v2509 = vadd.f32 0.0, %v2508
      %v2510 = vpop.f32.mrf.mxu0
      %v2511 = vpop.f32.mrf.mxu0
      %v2512 = vadd.f32 0.0, %v2511
      %v2513 = vpop.f32.mrf.mxu0
      %2514 = vmatprep.mubr.bf16.mxu0 0
      %2515 = vmatmul.mubr.bf16.gmra.mxu0 %v2317
      %v2516 = vpop.f32.mrf.mxu0
      %v2517 = vadd.f32 0.0, %v2516
      %v2518 = vpop.f32.mrf.mxu0
      %v2519 = vpop.f32.mrf.mxu0
      %v2520 = vadd.f32 0.0, %v2519
      %v2521 = vpop.f32.mrf.mxu0
      %2522 = vmatprep.mubr.bf16.mxu0 0
      %2523 = vmatmul.mubr.bf16.gmra.mxu0 %v2318
      %v2524 = vpop.f32.mrf.mxu0
      %v2525 = vadd.f32 0.0, %v2524
      %v2526 = vpop.f32.mrf.mxu0
      %v2527 = vpop.f32.mrf.mxu0
      %v2528 = vadd.f32 0.0, %v2527
      %v2529 = vpop.f32.mrf.mxu0
      %2530 = vmatprep.mubr.bf16.mxu0 0
      %2531 = vmatmul.mubr.bf16.gmra.mxu0 %v2319
      %v2532 = vpop.f32.mrf.mxu0
      %v2533 = vadd.f32 0.0, %v2532
      %v2534 = vpop.f32.mrf.mxu0
      %v2535 = vpop.f32.mrf.mxu0
      %v2536 = vadd.f32 0.0, %v2535
      %v2537 = vpop.f32.mrf.mxu0
      %2538 = vmatprep.mubr.bf16.mxu0 0
      %2539 = vmatmul.mubr.bf16.gmra.mxu0 %v2320
      %v2540 = vpop.f32.mrf.mxu0
      %v2541 = vadd.f32 0.0, %v2540
      %v2542 = vpop.f32.mrf.mxu0
      %v2543 = vpop.f32.mrf.mxu0
      %v2544 = vadd.f32 0.0, %v2543
      %v2545 = vpop.f32.mrf.mxu0
      %2546 = vdwg.mxu0
      %v2547 = vadd.f32 %v2241, %v2421
      %v2548 = vadd.f32 %v2242, %v2424
      %v2549 = vadd.f32 %v2243, %v2429
      %v2550 = vadd.f32 %v2244, %v2432
      %v2551 = vadd.f32 %v2245, %v2437
      %v2552 = vadd.f32 %v2246, %v2440
      %v2553 = vadd.f32 %v2247, %v2445
      %v2554 = vadd.f32 %v2248, %v2448
      %v2555 = vadd.f32 %v2249, %v2453
      %v2556 = vadd.f32 %v2250, %v2456
      %v2557 = vadd.f32 %v2251, %v2461
      %v2558 = vadd.f32 %v2252, %v2464
      %v2559 = vadd.f32 %v2253, %v2469
      %v2560 = vadd.f32 %v2254, %v2472
      %v2561 = vadd.f32 %v2255, %v2477
      %v2562 = vadd.f32 %v2256, %v2480
      %v2563 = vadd.f32 %v2257, %v2485
      %v2564 = vadd.f32 %v2258, %v2488
      %v2565 = vadd.f32 %v2259, %v2493
      %v2566 = vadd.f32 %v2260, %v2496
      %v2567 = vadd.f32 %v2261, %v2501
      %v2568 = vadd.f32 %v2262, %v2504
      %v2569 = vadd.f32 %v2263, %v2509
      %v2570 = vadd.f32 %v2264, %v2512
      %v2571 = vadd.f32 %v2265, %v2517
      %v2572 = vadd.f32 %v2266, %v2520
      %v2573 = vadd.f32 %v2267, %v2525
      %v2574 = vadd.f32 %v2268, %v2528
      %v2575 = vadd.f32 %v2269, %v2533
      %v2576 = vadd.f32 %v2270, %v2536
      %v2577 = vadd.f32 %v2271, %v2541
      %v2578 = vadd.f32 %v2272, %v2544
      %v2579 = vld [vmem:[%s1966 + $0x2] sm:$0xff]
      %v2580 = vld [vmem:[%s1966 + $0xa] sm:$0xff]
      %v2581 = vld [vmem:[%s1966 + $0x1a] sm:$0xff]
      %v2582 = vld [vmem:[%s1966 + $0x22] sm:$0xff]
      %v2583 = vld [vmem:[%s1966 + $0x32] sm:$0xff]
      %v2584 = vld [vmem:[%s1966 + $0x3a] sm:$0xff]
      %v2585 = vld [vmem:[%s1966 + $0x4a] sm:$0xff]
      %v2586 = vld [vmem:[%s1966 + $0x52] sm:$0xff]
      %v2587 = vld [vmem:[%s1966 + $0x62] sm:$0xff]
      %v2588 = vld [vmem:[%s1966 + $0x6a] sm:$0xff]
      %v2589 = vld [vmem:[%s1966 + $0x7a] sm:$0xff]
      %v2590 = vld [vmem:[%s1966 + $0x82] sm:$0xff]
      %v2591 = vld [vmem:[%s1966 + $0x92] sm:$0xff]
      %v2592 = vld [vmem:[%s1966 + $0x9a] sm:$0xff]
      %v2593 = vld [vmem:[%s1966 + $0xaa] sm:$0xff]
      %v2594 = vld [vmem:[%s1966 + $0xb2] sm:$0xff]
      %v2595 = vld [vmem:[%s1966 + $0xc2] sm:$0xff]
      %v2596 = vld [vmem:[%s1966 + $0xca] sm:$0xff]
      %v2597 = vld [vmem:[%s1966 + $0xda] sm:$0xff]
      %v2598 = vld [vmem:[%s1966 + $0xe2] sm:$0xff]
      %v2599 = vld [vmem:[%s1966 + $0xf2] sm:$0xff]
      %v2600 = vld [vmem:[%s1966 + $0xfa] sm:$0xff]
      %v2601 = vld [vmem:[%s1966 + $0x10a] sm:$0xff]
      %v2602 = vld [vmem:[%s1966 + $0x112] sm:$0xff]
      %v2603 = vld [vmem:[%s1966 + $0x122] sm:$0xff]
      %v2604 = vld [vmem:[%s1966 + $0x12a] sm:$0xff]
      %v2605 = vld [vmem:[%s1966 + $0x13a] sm:$0xff]
      %v2606 = vld [vmem:[%s1966 + $0x142] sm:$0xff]
      %v2607 = vld [vmem:[%s1966 + $0x152] sm:$0xff]
      %v2608 = vld [vmem:[%s1966 + $0x15a] sm:$0xff]
      %v2609 = vld [vmem:[%s1966 + $0x16a] sm:$0xff]
      %v2610 = vld [vmem:[%s1966 + $0x172] sm:$0xff]
      %v2611 = vpack.c.bf16 %v2580, %v2579
      %v2612 = vpack.c.bf16 %v2582, %v2581
      %v2613 = vpack.c.bf16 %v2584, %v2583
      %v2614 = vpack.c.bf16 %v2586, %v2585
      %v2615 = vpack.c.bf16 %v2588, %v2587
      %v2616 = vpack.c.bf16 %v2590, %v2589
      %v2617 = vpack.c.bf16 %v2592, %v2591
      %v2618 = vpack.c.bf16 %v2594, %v2593
      %v2619 = vpack.c.bf16 %v2596, %v2595
      %v2620 = vpack.c.bf16 %v2598, %v2597
      %v2621 = vpack.c.bf16 %v2600, %v2599
      %v2622 = vpack.c.bf16 %v2602, %v2601
      %v2623 = vpack.c.bf16 %v2604, %v2603
      %v2624 = vpack.c.bf16 %v2606, %v2605
      %v2625 = vpack.c.bf16 %v2608, %v2607
      %v2626 = vpack.c.bf16 %v2610, %v2609
      %s2627 = scalar_lea.vmem %s1, 512
      %v2628 = vld [vmem:[%s2627] sm:$0xf]
      %v2629 = vld [vmem:[%s2627 + $0x4] sm:$0xf]
      %v2630 = vld [vmem:[%s2627 + $0x8] sm:$0xf]
      %v2631 = vld [vmem:[%s2627 + $0xc] sm:$0xf]
      %v2632 = vld [vmem:[%s2627 + $0x10] sm:$0xf]
      %v2633 = vld [vmem:[%s2627 + $0x14] sm:$0xf]
      %v2634 = vld [vmem:[%s2627 + $0x18] sm:$0xf]
      %v2635 = vld [vmem:[%s2627 + $0x1c] sm:$0xf]
      %v2636 = vld [vmem:[%s2627 + $0x20] sm:$0xf]
      %v2637 = vld [vmem:[%s2627 + $0x24] sm:$0xf]
      %v2638 = vld [vmem:[%s2627 + $0x28] sm:$0xf]
      %v2639 = vld [vmem:[%s2627 + $0x2c] sm:$0xf]
      %v2640 = vld [vmem:[%s2627 + $0x30] sm:$0xf]
      %v2641 = vld [vmem:[%s2627 + $0x34] sm:$0xf]
      %v2642 = vld [vmem:[%s2627 + $0x38] sm:$0xf]
      %v2643 = vld [vmem:[%s2627 + $0x3c] sm:$0xf]
      %v2660 = vunpack.c.l.b16 %v2628
      %v2661 = vunpack.c.l.b16 %v2629
      %v2662 = vunpack.c.l.b16 %v2630
      %v2663 = vunpack.c.l.b16 %v2631
      %v2664 = vunpack.c.l.b16 %v2632
      %v2665 = vunpack.c.l.b16 %v2633
      %v2666 = vunpack.c.l.b16 %v2634
      %v2667 = vunpack.c.l.b16 %v2635
      %v2668 = vunpack.c.l.b16 %v2636
      %v2669 = vunpack.c.l.b16 %v2637
      %v2670 = vunpack.c.l.b16 %v2638
      %v2671 = vunpack.c.l.b16 %v2639
      %v2672 = vunpack.c.l.b16 %v2640
      %v2673 = vunpack.c.l.b16 %v2641
      %v2674 = vunpack.c.l.b16 %v2642
      %v2675 = vunpack.c.l.b16 %v2643
      %v2676 = vpack.c.b16 %v2661, %v2660
      %v2677 = vpack.c.b16 %v2663, %v2662
      %v2678 = vpack.c.b16 %v2665, %v2664
      %v2679 = vpack.c.b16 %v2667, %v2666
      %v2680 = vpack.c.b16 %v2669, %v2668
      %v2681 = vpack.c.b16 %v2671, %v2670
      %v2682 = vpack.c.b16 %v2673, %v2672
      %v2683 = vpack.c.b16 %v2675, %v2674
      %2692 = vmatprep.subr.bf16.mxu0 0
      %2693 = vmatpush1.bf16.msra.mxu0 %v2683
      %2694 = vmatprep.subr.bf16.mxu0 0
      %2695 = vmatpush1.bf16.msra.mxu0 %v2682
      %2696 = vmatprep.subr.bf16.mxu0 0
      %2697 = vmatpush1.bf16.msra.mxu0 %v2681
      %2698 = vmatprep.subr.bf16.mxu0 0
      %2699 = vmatpush1.bf16.msra.mxu0 %v2680
      %2700 = vmatprep.subr.bf16.mxu0 0
      %2701 = vmatpush1.bf16.msra.mxu0 %v2679
      %2702 = vmatprep.subr.bf16.mxu0 0
      %2703 = vmatpush1.bf16.msra.mxu0 %v2678
      %2704 = vmatprep.subr.bf16.mxu0 0
      %2705 = vmatpush1.bf16.msra.mxu0 %v2677
      %2706 = vmatprep.subr.bf16.mxu0 0
      %2707 = vmatpush1.bf16.msra.mxu0 %v2676
      %2708 = vmatprep.subr.bf16.mxu0 0
      %2709 = vmatpush2.bf16.msra.mxu0 0
      %2710 = vmatprep.subr.bf16.mxu0 0
      %2711 = vmatpush2.bf16.msra.mxu0 0
      %2712 = vmatprep.subr.bf16.mxu0 0
      %2713 = vmatpush2.bf16.msra.mxu0 0
      %2714 = vmatprep.subr.bf16.mxu0 0
      %2715 = vmatpush2.bf16.msra.mxu0 0
      %2716 = vmatprep.subr.bf16.mxu0 0
      %2717 = vmatpush2.bf16.msra.mxu0 0
      %2718 = vmatprep.subr.bf16.mxu0 0
      %2719 = vmatpush2.bf16.msra.mxu0 0
      %2720 = vmatprep.subr.bf16.mxu0 0
      %2721 = vmatpush2.bf16.msra.mxu0 0
      %2722 = vmatprep.subr.bf16.mxu0 0
      %2723 = vmatpush2.bf16.msra.mxu0 0
      %2724 = vmatprep.mubr.bf16.mxu0 0
      %2725 = vmatmul.mubr.bf16.gmra.mxu0 %v2611
      %v2726 = vpop.f32.mrf.mxu0
      %v2727 = vadd.f32 0.0, %v2726
      %v2728 = vpop.f32.mrf.mxu0
      %v2729 = vpop.f32.mrf.mxu0
      %v2730 = vadd.f32 0.0, %v2729
      %v2731 = vpop.f32.mrf.mxu0
      %2732 = vmatprep.mubr.bf16.mxu0 0
      %2733 = vmatmul.mubr.bf16.gmra.mxu0 %v2612
      %v2734 = vpop.f32.mrf.mxu0
      %v2735 = vadd.f32 0.0, %v2734
      %v2736 = vpop.f32.mrf.mxu0
      %v2737 = vpop.f32.mrf.mxu0
      %v2738 = vadd.f32 0.0, %v2737
      %v2739 = vpop.f32.mrf.mxu0
      %2740 = vmatprep.mubr.bf16.mxu0 0
      %2741 = vmatmul.mubr.bf16.gmra.mxu0 %v2613
      %v2742 = vpop.f32.mrf.mxu0
      %v2743 = vadd.f32 0.0, %v2742
      %v2744 = vpop.f32.mrf.mxu0
      %v2745 = vpop.f32.mrf.mxu0
      %v2746 = vadd.f32 0.0, %v2745
      %v2747 = vpop.f32.mrf.mxu0
      %2748 = vmatprep.mubr.bf16.mxu0 0
      %2749 = vmatmul.mubr.bf16.gmra.mxu0 %v2614
      %v2750 = vpop.f32.mrf.mxu0
      %v2751 = vadd.f32 0.0, %v2750
      %v2752 = vpop.f32.mrf.mxu0
      %v2753 = vpop.f32.mrf.mxu0
      %v2754 = vadd.f32 0.0, %v2753
      %v2755 = vpop.f32.mrf.mxu0
      %2756 = vmatprep.mubr.bf16.mxu0 0
      %2757 = vmatmul.mubr.bf16.gmra.mxu0 %v2615
      %v2758 = vpop.f32.mrf.mxu0
      %v2759 = vadd.f32 0.0, %v2758
      %v2760 = vpop.f32.mrf.mxu0
      %v2761 = vpop.f32.mrf.mxu0
      %v2762 = vadd.f32 0.0, %v2761
      %v2763 = vpop.f32.mrf.mxu0
      %2764 = vmatprep.mubr.bf16.mxu0 0
      %2765 = vmatmul.mubr.bf16.gmra.mxu0 %v2616
      %v2766 = vpop.f32.mrf.mxu0
      %v2767 = vadd.f32 0.0, %v2766
      %v2768 = vpop.f32.mrf.mxu0
      %v2769 = vpop.f32.mrf.mxu0
      %v2770 = vadd.f32 0.0, %v2769
      %v2771 = vpop.f32.mrf.mxu0
      %2772 = vmatprep.mubr.bf16.mxu0 0
      %2773 = vmatmul.mubr.bf16.gmra.mxu0 %v2617
      %v2774 = vpop.f32.mrf.mxu0
      %v2775 = vadd.f32 0.0, %v2774
      %v2776 = vpop.f32.mrf.mxu0
      %v2777 = vpop.f32.mrf.mxu0
      %v2778 = vadd.f32 0.0, %v2777
      %v2779 = vpop.f32.mrf.mxu0
      %2780 = vmatprep.mubr.bf16.mxu0 0
      %2781 = vmatmul.mubr.bf16.gmra.mxu0 %v2618
      %v2782 = vpop.f32.mrf.mxu0
      %v2783 = vadd.f32 0.0, %v2782
      %v2784 = vpop.f32.mrf.mxu0
      %v2785 = vpop.f32.mrf.mxu0
      %v2786 = vadd.f32 0.0, %v2785
      %v2787 = vpop.f32.mrf.mxu0
      %2788 = vmatprep.mubr.bf16.mxu0 0
      %2789 = vmatmul.mubr.bf16.gmra.mxu0 %v2619
      %v2790 = vpop.f32.mrf.mxu0
      %v2791 = vadd.f32 0.0, %v2790
      %v2792 = vpop.f32.mrf.mxu0
      %v2793 = vpop.f32.mrf.mxu0
      %v2794 = vadd.f32 0.0, %v2793
      %v2795 = vpop.f32.mrf.mxu0
      %2796 = vmatprep.mubr.bf16.mxu0 0
      %2797 = vmatmul.mubr.bf16.gmra.mxu0 %v2620
      %v2798 = vpop.f32.mrf.mxu0
      %v2799 = vadd.f32 0.0, %v2798
      %v2800 = vpop.f32.mrf.mxu0
      %v2801 = vpop.f32.mrf.mxu0
      %v2802 = vadd.f32 0.0, %v2801
      %v2803 = vpop.f32.mrf.mxu0
      %2804 = vmatprep.mubr.bf16.mxu0 0
      %2805 = vmatmul.mubr.bf16.gmra.mxu0 %v2621
      %v2806 = vpop.f32.mrf.mxu0
      %v2807 = vadd.f32 0.0, %v2806
      %v2808 = vpop.f32.mrf.mxu0
      %v2809 = vpop.f32.mrf.mxu0
      %v2810 = vadd.f32 0.0, %v2809
      %v2811 = vpop.f32.mrf.mxu0
      %2812 = vmatprep.mubr.bf16.mxu0 0
      %2813 = vmatmul.mubr.bf16.gmra.mxu0 %v2622
      %v2814 = vpop.f32.mrf.mxu0
      %v2815 = vadd.f32 0.0, %v2814
      %v2816 = vpop.f32.mrf.mxu0
      %v2817 = vpop.f32.mrf.mxu0
      %v2818 = vadd.f32 0.0, %v2817
      %v2819 = vpop.f32.mrf.mxu0
      %2820 = vmatprep.mubr.bf16.mxu0 0
      %2821 = vmatmul.mubr.bf16.gmra.mxu0 %v2623
      %v2822 = vpop.f32.mrf.mxu0
      %v2823 = vadd.f32 0.0, %v2822
      %v2824 = vpop.f32.mrf.mxu0
      %v2825 = vpop.f32.mrf.mxu0
      %v2826 = vadd.f32 0.0, %v2825
      %v2827 = vpop.f32.mrf.mxu0
      %2828 = vmatprep.mubr.bf16.mxu0 0
      %2829 = vmatmul.mubr.bf16.gmra.mxu0 %v2624
      %v2830 = vpop.f32.mrf.mxu0
      %v2831 = vadd.f32 0.0, %v2830
      %v2832 = vpop.f32.mrf.mxu0
      %v2833 = vpop.f32.mrf.mxu0
      %v2834 = vadd.f32 0.0, %v2833
      %v2835 = vpop.f32.mrf.mxu0
      %2836 = vmatprep.mubr.bf16.mxu0 0
      %2837 = vmatmul.mubr.bf16.gmra.mxu0 %v2625
      %v2838 = vpop.f32.mrf.mxu0
      %v2839 = vadd.f32 0.0, %v2838
      %v2840 = vpop.f32.mrf.mxu0
      %v2841 = vpop.f32.mrf.mxu0
      %v2842 = vadd.f32 0.0, %v2841
      %v2843 = vpop.f32.mrf.mxu0
      %2844 = vmatprep.mubr.bf16.mxu0 0
      %2845 = vmatmul.mubr.bf16.gmra.mxu0 %v2626
      %v2846 = vpop.f32.mrf.mxu0
      %v2847 = vadd.f32 0.0, %v2846
      %v2848 = vpop.f32.mrf.mxu0
      %v2849 = vpop.f32.mrf.mxu0
      %v2850 = vadd.f32 0.0, %v2849
      %v2851 = vpop.f32.mrf.mxu0
      %2852 = vdwg.mxu0
      %v2853 = vadd.f32 %v2547, %v2727
      %v2854 = vadd.f32 %v2548, %v2730
      %v2855 = vadd.f32 %v2549, %v2735
      %v2856 = vadd.f32 %v2550, %v2738
      %v2857 = vadd.f32 %v2551, %v2743
      %v2858 = vadd.f32 %v2552, %v2746
      %v2859 = vadd.f32 %v2553, %v2751
      %v2860 = vadd.f32 %v2554, %v2754
      %v2861 = vadd.f32 %v2555, %v2759
      %v2862 = vadd.f32 %v2556, %v2762
      %v2863 = vadd.f32 %v2557, %v2767
      %v2864 = vadd.f32 %v2558, %v2770
      %v2865 = vadd.f32 %v2559, %v2775
      %v2866 = vadd.f32 %v2560, %v2778
      %v2867 = vadd.f32 %v2561, %v2783
      %v2868 = vadd.f32 %v2562, %v2786
      %v2869 = vadd.f32 %v2563, %v2791
      %v2870 = vadd.f32 %v2564, %v2794
      %v2871 = vadd.f32 %v2565, %v2799
      %v2872 = vadd.f32 %v2566, %v2802
      %v2873 = vadd.f32 %v2567, %v2807
      %v2874 = vadd.f32 %v2568, %v2810
      %v2875 = vadd.f32 %v2569, %v2815
      %v2876 = vadd.f32 %v2570, %v2818
      %v2877 = vadd.f32 %v2571, %v2823
      %v2878 = vadd.f32 %v2572, %v2826
      %v2879 = vadd.f32 %v2573, %v2831
      %v2880 = vadd.f32 %v2574, %v2834
      %v2881 = vadd.f32 %v2575, %v2839
      %v2882 = vadd.f32 %v2576, %v2842
      %v2883 = vadd.f32 %v2577, %v2847
      %v2884 = vadd.f32 %v2578, %v2850
      %2885 = vst [vmem:[%s192] sm:$0xff] %v2853
      %2886 = vst [vmem:[%s192 + $0x8] sm:$0xff] %v2854
      %2887 = vst [vmem:[%s192 + $0x10] sm:$0xff] %v2855
      %2888 = vst [vmem:[%s192 + $0x18] sm:$0xff] %v2856
      %2889 = vst [vmem:[%s192 + $0x20] sm:$0xff] %v2857
      %2890 = vst [vmem:[%s192 + $0x28] sm:$0xff] %v2858
      %2891 = vst [vmem:[%s192 + $0x30] sm:$0xff] %v2859
      %2892 = vst [vmem:[%s192 + $0x38] sm:$0xff] %v2860
      %2893 = vst [vmem:[%s192 + $0x40] sm:$0xff] %v2861
      %2894 = vst [vmem:[%s192 + $0x48] sm:$0xff] %v2862
      %2895 = vst [vmem:[%s192 + $0x50] sm:$0xff] %v2863
      %2896 = vst [vmem:[%s192 + $0x58] sm:$0xff] %v2864
      %2897 = vst [vmem:[%s192 + $0x60] sm:$0xff] %v2865
      %2898 = vst [vmem:[%s192 + $0x68] sm:$0xff] %v2866
      %2899 = vst [vmem:[%s192 + $0x70] sm:$0xff] %v2867
      %2900 = vst [vmem:[%s192 + $0x78] sm:$0xff] %v2868
      %2901 = vst [vmem:[%s192 + $0x80] sm:$0xff] %v2869
      %2902 = vst [vmem:[%s192 + $0x88] sm:$0xff] %v2870
      %2903 = vst [vmem:[%s192 + $0x90] sm:$0xff] %v2871
      %2904 = vst [vmem:[%s192 + $0x98] sm:$0xff] %v2872
      %2905 = vst [vmem:[%s192 + $0xa0] sm:$0xff] %v2873
      %2906 = vst [vmem:[%s192 + $0xa8] sm:$0xff] %v2874
      %2907 = vst [vmem:[%s192 + $0xb0] sm:$0xff] %v2875
      %2908 = vst [vmem:[%s192 + $0xb8] sm:$0xff] %v2876
      %2909 = vst [vmem:[%s192 + $0xc0] sm:$0xff] %v2877
      %2910 = vst [vmem:[%s192 + $0xc8] sm:$0xff] %v2878
      %2911 = vst [vmem:[%s192 + $0xd0] sm:$0xff] %v2879
      %2912 = vst [vmem:[%s192 + $0xd8] sm:$0xff] %v2880
      %2913 = vst [vmem:[%s192 + $0xe0] sm:$0xff] %v2881
      %2914 = vst [vmem:[%s192 + $0xe8] sm:$0xff] %v2882
      %2915 = vst [vmem:[%s192 + $0xf0] sm:$0xff] %v2883
      %2916 = vst [vmem:[%s192 + $0xf8] sm:$0xff] %v2884
      %p2917 = scmp.eq.s32.totalorder %s16, 0
      // Predicated region
      $region29: #{bottleneck_forward.9} parent=27 // pred_check
        %p2918 = pneg %p2917
      $region30: #{bottleneck_forward.9} parent=27 // pred_check_branch
        %2920 = sbr.rel (%p2918) target = $region32
      $region31: #{bottleneck_forward.9} parent=27 // pred_region
        %2921 = vst [vmem:[%s3] sm:$0x1] 0.0
        %2922 = vst [vmem:[%s4] sm:$0x1] 0.0
      $region32: #{bottleneck_forward.9} parent=27 // pred_fallthru
        _
      %v2923 = vld [vmem:[%s3] sm:$0x1]
      %v2924 = vadd.f32 %v2853, %v2854
      %v2925 = vadd.f32 %v2924, %v2855
      %v2926 = vadd.f32 %v2925, %v2856
      %v2927 = vadd.f32 %v2926, %v2857
      %v2928 = vadd.f32 %v2927, %v2858
      %v2929 = vadd.f32 %v2928, %v2859
      %v2930 = vadd.f32 %v2929, %v2860
      %v2931 = vadd.f32 %v2930, %v2861
      %v2932 = vadd.f32 %v2931, %v2862
      %v2933 = vadd.f32 %v2932, %v2863
      %v2934 = vadd.f32 %v2933, %v2864
      %v2935 = vadd.f32 %v2934, %v2865
      %v2936 = vadd.f32 %v2935, %v2866
      %v2937 = vadd.f32 %v2936, %v2867
      %v2938 = vadd.f32 %v2937, %v2868
      %v2939 = vadd.f32 %v2938, %v2869
      %v2940 = vadd.f32 %v2939, %v2870
      %v2941 = vadd.f32 %v2940, %v2871
      %v2942 = vadd.f32 %v2941, %v2872
      %v2943 = vadd.f32 %v2942, %v2873
      %v2944 = vadd.f32 %v2943, %v2874
      %v2945 = vadd.f32 %v2944, %v2875
      %v2946 = vadd.f32 %v2945, %v2876
      %v2947 = vadd.f32 %v2946, %v2877
      %v2948 = vadd.f32 %v2947, %v2878
      %v2949 = vadd.f32 %v2948, %v2879
      %v2950 = vadd.f32 %v2949, %v2880
      %v2951 = vadd.f32 %v2950, %v2881
      %v2952 = vadd.f32 %v2951, %v2882
      %v2953 = vadd.f32 %v2952, %v2883
      %v2954 = vadd.f32 %v2953, %v2884
      %v2955 = vrot.slane %v2954, 4
      %v2956 = vadd.f32 %v2954, %v2955
      %v2957 = vrot.slane %v2956, 2
      %v2958 = vadd.f32 %v2956, %v2957
      %v2959 = vrot.slane %v2958, 1
      %v2960 = vadd.f32 %v2958, %v2959
      %v2961 = vadd.f32 %v2923, %v2960
      %2962 = vst [vmem:[%s3] sm:$0x1] %v2961
      %v2963 = vld [vmem:[%s4] sm:$0x1]
      %v2964 = vmul.f32 %v2853, %v2853
      %v2965 = vmul.f32 %v2854, %v2854
      %v2966 = vmul.f32 %v2855, %v2855
      %v2967 = vmul.f32 %v2856, %v2856
      %v2968 = vmul.f32 %v2857, %v2857
      %v2969 = vmul.f32 %v2858, %v2858
      %v2970 = vmul.f32 %v2859, %v2859
      %v2971 = vmul.f32 %v2860, %v2860
      %v2972 = vmul.f32 %v2861, %v2861
      %v2973 = vmul.f32 %v2862, %v2862
      %v2974 = vmul.f32 %v2863, %v2863
      %v2975 = vmul.f32 %v2864, %v2864
      %v2976 = vmul.f32 %v2865, %v2865
      %v2977 = vmul.f32 %v2866, %v2866
      %v2978 = vmul.f32 %v2867, %v2867
      %v2979 = vmul.f32 %v2868, %v2868
      %v2980 = vmul.f32 %v2869, %v2869
      %v2981 = vmul.f32 %v2870, %v2870
      %v2982 = vmul.f32 %v2871, %v2871
      %v2983 = vmul.f32 %v2872, %v2872
      %v2984 = vmul.f32 %v2873, %v2873
      %v2985 = vmul.f32 %v2874, %v2874
      %v2986 = vmul.f32 %v2875, %v2875
      %v2987 = vmul.f32 %v2876, %v2876
      %v2988 = vmul.f32 %v2877, %v2877
      %v2989 = vmul.f32 %v2878, %v2878
      %v2990 = vmul.f32 %v2879, %v2879
      %v2991 = vmul.f32 %v2880, %v2880
      %v2992 = vmul.f32 %v2881, %v2881
      %v2993 = vmul.f32 %v2882, %v2882
      %v2994 = vmul.f32 %v2883, %v2883
      %v2995 = vmul.f32 %v2884, %v2884
      %v2996 = vadd.f32 %v2964, %v2965
      %v2997 = vadd.f32 %v2996, %v2966
      %v2998 = vadd.f32 %v2997, %v2967
      %v2999 = vadd.f32 %v2998, %v2968
      %v3000 = vadd.f32 %v2999, %v2969
      %v3001 = vadd.f32 %v3000, %v2970
      %v3002 = vadd.f32 %v3001, %v2971
      %v3003 = vadd.f32 %v3002, %v2972
      %v3004 = vadd.f32 %v3003, %v2973
      %v3005 = vadd.f32 %v3004, %v2974
      %v3006 = vadd.f32 %v3005, %v2975
      %v3007 = vadd.f32 %v3006, %v2976
      %v3008 = vadd.f32 %v3007, %v2977
      %v3009 = vadd.f32 %v3008, %v2978
      %v3010 = vadd.f32 %v3009, %v2979
      %v3011 = vadd.f32 %v3010, %v2980
      %v3012 = vadd.f32 %v3011, %v2981
      %v3013 = vadd.f32 %v3012, %v2982
      %v3014 = vadd.f32 %v3013, %v2983
      %v3015 = vadd.f32 %v3014, %v2984
      %v3016 = vadd.f32 %v3015, %v2985
      %v3017 = vadd.f32 %v3016, %v2986
      %v3018 = vadd.f32 %v3017, %v2987
      %v3019 = vadd.f32 %v3018, %v2988
      %v3020 = vadd.f32 %v3019, %v2989
      %v3021 = vadd.f32 %v3020, %v2990
      %v3022 = vadd.f32 %v3021, %v2991
      %v3023 = vadd.f32 %v3022, %v2992
      %v3024 = vadd.f32 %v3023, %v2993
      %v3025 = vadd.f32 %v3024, %v2994
      %v3026 = vadd.f32 %v3025, %v2995
      %v3027 = vrot.slane %v3026, 4
      %v3028 = vadd.f32 %v3026, %v3027
      %v3029 = vrot.slane %v3028, 2
      %v3030 = vadd.f32 %v3028, %v3029
      %v3031 = vrot.slane %v3030, 1
      %v3032 = vadd.f32 %v3030, %v3031
      %v3033 = vadd.f32 %v2963, %v3032
      %3034 = vst [vmem:[%s4] sm:$0x1] %v3033
      %p3035 = scmp.lt.s32.totalorder %s16, 1
      %s3036 = scalar_select %p3035, %s16, 1
      %s3037 = smul.addr %s3036, 32
      %s3038 = smul.addr %s3037, 8
      %s3039 = scalar_lea.vmem %s2, %s3038
      // Predicated region
      $region33: #{bottleneck_forward.9} parent=27 // pred_check
        %p3040 = pneg %p81
      $region34: #{bottleneck_forward.9} parent=27 // pred_check_branch
        %3042 = sbr.rel (%p3040) target = $region36
      $region35: #{bottleneck_forward.9} parent=27 // pred_region
        _
      $region36: #{bottleneck_forward.9} parent=27 // pred_fallthru
        _
      // Predicated region
      $region37: #{bottleneck_forward.9} parent=27 // pred_check
        %p3043 = pneg %p102
      $region38: #{bottleneck_forward.9} parent=27 // pred_check_branch
        %3045 = sbr.rel (%p3043) target = $region40
      $region39: #{bottleneck_forward.9} parent=27 // pred_region
        _
      $region40: #{bottleneck_forward.9} parent=27 // pred_fallthru
        _
      // Predicated region
      $region41: #{bottleneck_forward.9} parent=27 // pred_check
        %p3046 = pneg %p123
      $region42: #{bottleneck_forward.9} parent=27 // pred_check_branch
        %3048 = sbr.rel (%p3046) target = $region44
      $region43: #{bottleneck_forward.9} parent=27 // pred_region
        _
      $region44: #{bottleneck_forward.9} parent=27 // pred_fallthru
        _
      // Predicated region
      $region45: #{bottleneck_forward.9} parent=27 // pred_check
        %p3049 = pneg %p102
      $region46: #{bottleneck_forward.9} parent=27 // pred_check_branch
        %3051 = sbr.rel (%p3049) target = $region48
      $region47: #{bottleneck_forward.9} parent=27 // pred_region
        _
      $region48: #{bottleneck_forward.9} parent=27 // pred_fallthru
        _
      // Predicated region
      $region49: #{bottleneck_forward.9} parent=27 // pred_check
        %p3052 = pneg %p123
      $region50: #{bottleneck_forward.9} parent=27 // pred_check_branch
        %3054 = sbr.rel (%p3052) target = $region52
      $region51: #{bottleneck_forward.9} parent=27 // pred_region
        _
      $region52: #{bottleneck_forward.9} parent=27 // pred_fallthru
        _
    $region28: #{bottleneck_forward.9} parent=5 // pred_fallthru
      _
    %p3055 = scmp.le.s32.totalorder 2, %s11
    // Predicated region
    $region53: #{bottleneck_forward.9} parent=5 // pred_check
      %p3056 = pneg %p3055
    $region54: #{bottleneck_forward.9} parent=5 // pred_check_branch
      %3058 = sbr.rel (%p3056) target = $region56
    $region55: #{bottleneck_forward.9} parent=5 // pred_region
      %s3059 = ssub.s32 %s11, 2
      // Predicated region
      $region57: #{bottleneck_forward.9} parent=55 // pred_check
        %p3060 = pneg %p87
      $region58: #{bottleneck_forward.9} parent=55 // pred_check_branch
        %3062 = sbr.rel (%p3060) target = $region60
      $region59: #{bottleneck_forward.9} parent=55 // pred_region
        %p3063 = scmp.lt.s32.totalorder %s17, 1
        %s3064 = scalar_select %p3063, %s17, 1
        %s3065 = smul.addr %s3064, 32
        %s3066 = smul.addr %s3065, 8
        %s3067 = scalar_lea.vmem %s2, %s3066
      $region60: #{bottleneck_forward.9} parent=55 // pred_fallthru
        _
    $region56: #{bottleneck_forward.9} parent=5 // pred_fallthru
      _
  $region6: #{bottleneck_forward.9} parent=0 // loop_footer
    %s15 = sadd.s32 1, %s11
  $region7: #{bottleneck_forward.9} parent=0 // loop_footer_branch
    %10 = sbr.rel target = $region3
  $region8: #{bottleneck_forward.9} parent=0 // loop_exit
    _

</llo_original>
